<compile_context>
chip_gen: v7x
topology: tpu7x:2x2x1
jax: 0.10.0
libtpu: 0.0.40
codegen_flags: <defaults>
</compile_context>

<pallas_src>
import jax
import jax.numpy as jnp
from jax.experimental import pallas as pl
from jax.experimental.pallas import tpu as pltpu


# ----------------------------- fused kernel ---------------------------------
def _skip_upsample_kernel(xm_ref, xc_ref, xp_ref, w_ref, uh_ref, uw_ref,
                          y_ref, o_ref):
    """Per (batch n, input depth d): conv + trilinear x2 + skip add.

    xm/xc/xp: (1, Cin, 1, H, W) depth slices d-1 / d / d+1 (edge clamped via
              the BlockSpec index_maps).
    w:        (Cout, Cin) in SMEM (scalar reads).
    uh:       (2H, H)  H-direction interp+interleave matrix (edges baked in).
    uw:       (W, 2W)  W-direction interp+interleave matrix (edges baked in).
    y/o:      (1, Cout, 2, 2H, 2W) skip input / output block (depths 2d, 2d+1).
    """
    f32 = jnp.float32
    xm = xm_ref[0, :, 0].astype(f32)          # (Cin, H, W)
    xc = xc_ref[0, :, 0].astype(f32)          # (Cin, H, W)
    xp = xp_ref[0, :, 0].astype(f32)          # (Cin, H, W)

    cin = xc.shape[0]
    cout = o_ref.shape[1]

    uh = uh_ref[...].astype(f32)              # (2H, H)
    uw = uw_ref[...].astype(f32)              # (W, 2W)

    # Depth-direction trilinear interpolation -> planes for output depths
    # 2d (even) and 2d+1 (odd).  Edge clamping is handled by the index_maps.
    planes = (0.25 * xm + 0.75 * xc,          # even output depth
              0.75 * xc + 0.25 * xp)          # odd output depth

    for dd, plane in enumerate(planes):
        for o in range(cout):
            # 1x1x1 conv (no bias): channel mix with scalar SMEM weights.
            acc = w_ref[o, 0] * plane[0]
            for c in range(1, cin):
                acc = acc + w_ref[o, c] * plane[c]
            # Separable 2x upsample: W direction then H direction, as plain
            # 2-D matmuls whose matrices encode 0.25/0.75 weights, the 2x
            # interleave and the align_corners=False edge clamp.
            zw = jnp.dot(acc, uw, preferred_element_type=f32)    # (H, 2W)
            zu = jnp.dot(uh, zw, preferred_element_type=f32)     # (2H, 2W)
            o_ref[0, o, dd] = (zu + y_ref[0, o, dd].astype(f32)
                               ).astype(o_ref.dtype)


# ----------------------------- host wrapper ---------------------------------
def _up_matrix(L, dtype):
    """(L, 2L) matrix M with out[j] = sum_i in[i] * M[i, j] implementing
    1-D linear x2 upsampling, scale_factor=2, align_corners=False."""
    j = jnp.arange(2 * L)
    k = j // 2
    nb = jnp.where(j % 2 == 0, k - 1, k + 1)          # neighbour index
    nb = jnp.clip(nb, 0, L - 1)                       # edge clamp
    i = jnp.arange(L)[:, None]
    m = (0.75 * (i == k[None, :]).astype(jnp.float32)
         + 0.25 * (i == nb[None, :]).astype(jnp.float32))
    return m.astype(dtype)


def skip_upsample(x, y, weight, *, donate_y=False):
    """SkipUpSample.forward.

    x:      (N, Cin, D, H, W)   with Cin = in_channels + s_factor
    y:      (N, Cout, 2D, 2H, 2W) with Cout = in_channels
    weight: (Cout, Cin)         Conv3d 1x1x1 kernel (squeezed), no bias.
    donate_y: alias y's HBM buffer with the output (only if the caller does
              not need y afterwards).
    """
    N, Cin, D, H, W = x.shape
    Cout = weight.shape[0]
    assert weight.shape == (Cout, Cin)
    assert y.shape == (N, Cout, 2 * D, 2 * H, 2 * W)

    uw = _up_matrix(W, jnp.float32)           # (W, 2W)
    uh = _up_matrix(H, jnp.float32).T         # (2H, H)

    # x depth slices d-1 / d / d+1 via shifted index_maps (edge clamped).
    xm_spec = pl.BlockSpec((1, Cin, 1, H, W),
                           lambda n, d: (n, 0, jnp.maximum(d - 1, 0), 0, 0))
    xc_spec = pl.BlockSpec((1, Cin, 1, H, W),
                           lambda n, d: (n, 0, d, 0, 0))
    xp_spec = pl.BlockSpec((1, Cin, 1, H, W),
                           lambda n, d: (n, 0, jnp.minimum(d + 1, D - 1), 0, 0))
    w_spec = pl.BlockSpec(memory_space=pltpu.MemorySpace.SMEM)
    uh_spec = pl.BlockSpec((2 * H, H), lambda n, d: (0, 0))
    uw_spec = pl.BlockSpec((W, 2 * W), lambda n, d: (0, 0))
    y_spec = pl.BlockSpec((1, Cout, 2, 2 * H, 2 * W),
                          lambda n, d: (n, 0, d, 0, 0))
    o_spec = pl.BlockSpec((1, Cout, 2, 2 * H, 2 * W),
                          lambda n, d: (n, 0, d, 0, 0))

    # VMEM budget: double-buffered x slices + y + out blocks + interp matrices.
    step_bytes = 4 * (3 * Cin * H * W
                      + 2 * Cout * 2 * (2 * H) * (2 * W)
                      + 2 * H * H + 2 * W * W)
    vmem_limit = int(min(48 * 2**20, max(16 * 2**20, 4 * step_bytes)))

    out = pl.pallas_call(
        _skip_upsample_kernel,
        out_shape=jax.ShapeDtypeStruct(y.shape, x.dtype),
        grid=(N, D),
        in_specs=[xm_spec, xc_spec, xp_spec, w_spec, uh_spec, uw_spec, y_spec],
        out_specs=o_spec,
        input_output_aliases=({6: 0} if donate_y else {}),
        compiler_params=pltpu.CompilerParams(
            dimension_semantics=("parallel", "parallel"),
            vmem_limit_bytes=vmem_limit),
    )(x, x, x, weight, uh, uw, y)
    return out


# ------------------------- plain-JAX reference ------------------------------
def _upsample2_trilinear_ref(x):
    def up1(a, axis):
        L = a.shape[axis]
        idx = jnp.arange(L)
        prev = jnp.take(a, jnp.maximum(idx - 1, 0), axis=axis)
        nxt = jnp.take(a, jnp.minimum(idx + 1, L - 1), axis=axis)
        even = 0.25 * prev + 0.75 * a
        odd = 0.75 * a + 0.25 * nxt
        st = jnp.stack([even, odd], axis=axis + 1)
        return st.reshape(a.shape[:axis] + (2 * L,) + a.shape[axis + 1:])
    return up1(up1(up1(x, 2), 3), 4)


def skip_upsample_ref(x, y, weight):
    up = _upsample2_trilinear_ref(x.astype(jnp.float32))
    z = jnp.einsum('oc,ncdhw->nodhw', weight.astype(jnp.float32), up)
    return z + y.astype(jnp.float32)


if __name__ == "__main__":
    # SkipUpSample(in_channels=4, s_factor=4): x has 8 channels, y has 4.
    N, in_channels, s_factor = 2, 4, 4
    D = H = W = 8
    Cin = in_channels + s_factor
    Cout = in_channels

    key = jax.random.PRNGKey(0)
    kx, ky, kw = jax.random.split(key, 3)
    x = jax.random.normal(kx, (N, Cin, D, H, W), dtype=jnp.float32)
    y = jax.random.normal(ky, (N, Cout, 2 * D, 2 * H, 2 * W), dtype=jnp.float32)

    # Conv3d(Cin -> Cout, kernel 1x1x1, bias=False) init.
    bound = 1.0 / (Cin ** 0.5)
    weight = jax.random.uniform(kw, (Cout, Cin), dtype=jnp.float32,
                                minval=-bound, maxval=bound)

    out = jax.block_until_ready(skip_upsample(x, y, weight))
    ref = jax.block_until_ready(skip_upsample_ref(x, y, weight))

    assert out.shape == (N, Cout, 2 * D, 2 * H, 2 * W)
    # Conv is commuted before the upsample (mathematically exact); fp summation
    # order differs from the reference, hence tolerance-level comparison.
    assert jnp.allclose(out, ref, atol=1e-4, rtol=1e-4)
    print("KERNEL_OK")
</pallas_src>

<mosaic_0001>
module attributes {stable_mosaic.version = 11 : i64} {
  func.func @_skip_upsample_kernel(%arg0: i32, %arg1: i32, %arg2: memref<1x8x1x8x8xf32, #tpu.memory_space<vmem>>, %arg3: memref<1x8x1x8x8xf32, #tpu.memory_space<vmem>>, %arg4: memref<1x8x1x8x8xf32, #tpu.memory_space<vmem>>, %arg5: memref<4x8xf32, #tpu.memory_space<smem>>, %arg6: memref<16x8xf32, #tpu.memory_space<vmem>>, %arg7: memref<8x16xf32, #tpu.memory_space<vmem>>, %arg8: memref<1x4x2x16x16xf32, #tpu.memory_space<vmem>>, %arg9: memref<1x4x2x16x16xf32, #tpu.memory_space<vmem>>) attributes {dimension_semantics = [#tpu.dimension_semantics<parallel>, #tpu.dimension_semantics<parallel>], iteration_bounds = array<i64: 2, 8>, scalar_prefetch = 0 : i64, scratch_operands = 0 : i64, tpu.core_type = #tpu.core_type<tc>, window_params = [{transform_indices = @transform_0, window_bounds = array<i64: 1, 8, 1, 8, 8>}, {transform_indices = @transform_1, window_bounds = array<i64: 1, 8, 1, 8, 8>}, {transform_indices = @transform_2, window_bounds = array<i64: 1, 8, 1, 8, 8>}, {transform_indices = @transform_3, window_bounds = array<i64: 4, 8>}, {pipeline_mode = #tpu.pipeline_mode<synchronous>, transform_indices = @transform_4, window_bounds = array<i64: 16, 8>}, {pipeline_mode = #tpu.pipeline_mode<synchronous>, transform_indices = @transform_5, window_bounds = array<i64: 8, 16>}, {transform_indices = @transform_6, window_bounds = array<i64: 1, 4, 2, 16, 16>}, {transform_indices = @transform_7, window_bounds = array<i64: 1, 4, 2, 16, 16>}]} {
    %c0 = arith.constant 0 : index
    %c0_0 = arith.constant 0 : index
    %c0_1 = arith.constant 0 : index
    %c0_2 = arith.constant 0 : index
    %c0_3 = arith.constant 0 : index
    %0 = vector.load %arg2[%c0, %c0_0, %c0_1, %c0_2, %c0_3] : memref<1x8x1x8x8xf32, #tpu.memory_space<vmem>>, vector<1x8x1x8x8xf32>
    %1 = vector.shape_cast %0 : vector<1x8x1x8x8xf32> to vector<8x8x8xf32>
    %c0_4 = arith.constant 0 : index
    %c0_5 = arith.constant 0 : index
    %c0_6 = arith.constant 0 : index
    %c0_7 = arith.constant 0 : index
    %c0_8 = arith.constant 0 : index
    %2 = vector.load %arg3[%c0_4, %c0_5, %c0_6, %c0_7, %c0_8] : memref<1x8x1x8x8xf32, #tpu.memory_space<vmem>>, vector<1x8x1x8x8xf32>
    %3 = vector.shape_cast %2 : vector<1x8x1x8x8xf32> to vector<8x8x8xf32>
    %c0_9 = arith.constant 0 : index
    %c0_10 = arith.constant 0 : index
    %c0_11 = arith.constant 0 : index
    %c0_12 = arith.constant 0 : index
    %c0_13 = arith.constant 0 : index
    %4 = vector.load %arg4[%c0_9, %c0_10, %c0_11, %c0_12, %c0_13] : memref<1x8x1x8x8xf32, #tpu.memory_space<vmem>>, vector<1x8x1x8x8xf32>
    %5 = vector.shape_cast %4 : vector<1x8x1x8x8xf32> to vector<8x8x8xf32>
    %c0_14 = arith.constant 0 : index
    %c0_15 = arith.constant 0 : index
    %6 = vector.load %arg6[%c0_14, %c0_15] : memref<16x8xf32, #tpu.memory_space<vmem>>, vector<16x8xf32>
    %c0_16 = arith.constant 0 : index
    %c0_17 = arith.constant 0 : index
    %7 = vector.load %arg7[%c0_16, %c0_17] : memref<8x16xf32, #tpu.memory_space<vmem>>, vector<8x16xf32>
    %cst = arith.constant 2.500000e-01 : f32
    %8 = vector.broadcast %cst : f32 to vector<8x8x8xf32>
    %9 = arith.mulf %8, %1 : vector<8x8x8xf32>
    %cst_18 = arith.constant 7.500000e-01 : f32
    %10 = vector.broadcast %cst_18 : f32 to vector<8x8x8xf32>
    %11 = arith.mulf %10, %3 : vector<8x8x8xf32>
    %12 = arith.addf %9, %11 : vector<8x8x8xf32>
    %cst_19 = arith.constant 7.500000e-01 : f32
    %13 = vector.broadcast %cst_19 : f32 to vector<8x8x8xf32>
    %14 = arith.mulf %13, %3 : vector<8x8x8xf32>
    %cst_20 = arith.constant 2.500000e-01 : f32
    %15 = vector.broadcast %cst_20 : f32 to vector<8x8x8xf32>
    %16 = arith.mulf %15, %5 : vector<8x8x8xf32>
    %17 = arith.addf %14, %16 : vector<8x8x8xf32>
    %c0_21 = arith.constant 0 : index
    %c0_22 = arith.constant 0 : index
    %18 = memref.load %arg5[%c0_21, %c0_22] : memref<4x8xf32, #tpu.memory_space<smem>>
    %19 = vector.extract_strided_slice %12 {offsets = [0, 0, 0], sizes = [1, 8, 8], strides = [1, 1, 1]} : vector<8x8x8xf32> to vector<1x8x8xf32>
    %20 = vector.shape_cast %19 : vector<1x8x8xf32> to vector<8x8xf32>
    %21 = vector.broadcast %18 : f32 to vector<8x8xf32>
    %22 = arith.mulf %21, %20 : vector<8x8xf32>
    %c0_23 = arith.constant 0 : index
    %c1 = arith.constant 1 : index
    %23 = memref.load %arg5[%c0_23, %c1] : memref<4x8xf32, #tpu.memory_space<smem>>
    %24 = vector.extract_strided_slice %12 {offsets = [1, 0, 0], sizes = [1, 8, 8], strides = [1, 1, 1]} : vector<8x8x8xf32> to vector<1x8x8xf32>
    %25 = vector.shape_cast %24 : vector<1x8x8xf32> to vector<8x8xf32>
    %26 = vector.broadcast %23 : f32 to vector<8x8xf32>
    %27 = arith.mulf %26, %25 : vector<8x8xf32>
    %28 = arith.addf %22, %27 : vector<8x8xf32>
    %c0_24 = arith.constant 0 : index
    %c2 = arith.constant 2 : index
    %29 = memref.load %arg5[%c0_24, %c2] : memref<4x8xf32, #tpu.memory_space<smem>>
    %30 = vector.extract_strided_slice %12 {offsets = [2, 0, 0], sizes = [1, 8, 8], strides = [1, 1, 1]} : vector<8x8x8xf32> to vector<1x8x8xf32>
    %31 = vector.shape_cast %30 : vector<1x8x8xf32> to vector<8x8xf32>
    %32 = vector.broadcast %29 : f32 to vector<8x8xf32>
    %33 = arith.mulf %32, %31 : vector<8x8xf32>
    %34 = arith.addf %28, %33 : vector<8x8xf32>
    %c0_25 = arith.constant 0 : index
    %c3 = arith.constant 3 : index
    %35 = memref.load %arg5[%c0_25, %c3] : memref<4x8xf32, #tpu.memory_space<smem>>
    %36 = vector.extract_strided_slice %12 {offsets = [3, 0, 0], sizes = [1, 8, 8], strides = [1, 1, 1]} : vector<8x8x8xf32> to vector<1x8x8xf32>
    %37 = vector.shape_cast %36 : vector<1x8x8xf32> to vector<8x8xf32>
    %38 = vector.broadcast %35 : f32 to vector<8x8xf32>
    %39 = arith.mulf %38, %37 : vector<8x8xf32>
    %40 = arith.addf %34, %39 : vector<8x8xf32>
    %c0_26 = arith.constant 0 : index
    %c4 = arith.constant 4 : index
    %41 = memref.load %arg5[%c0_26, %c4] : memref<4x8xf32, #tpu.memory_space<smem>>
    %42 = vector.extract_strided_slice %12 {offsets = [4, 0, 0], sizes = [1, 8, 8], strides = [1, 1, 1]} : vector<8x8x8xf32> to vector<1x8x8xf32>
    %43 = vector.shape_cast %42 : vector<1x8x8xf32> to vector<8x8xf32>
    %44 = vector.broadcast %41 : f32 to vector<8x8xf32>
    %45 = arith.mulf %44, %43 : vector<8x8xf32>
    %46 = arith.addf %40, %45 : vector<8x8xf32>
    %c0_27 = arith.constant 0 : index
    %c5 = arith.constant 5 : index
    %47 = memref.load %arg5[%c0_27, %c5] : memref<4x8xf32, #tpu.memory_space<smem>>
    %48 = vector.extract_strided_slice %12 {offsets = [5, 0, 0], sizes = [1, 8, 8], strides = [1, 1, 1]} : vector<8x8x8xf32> to vector<1x8x8xf32>
    %49 = vector.shape_cast %48 : vector<1x8x8xf32> to vector<8x8xf32>
    %50 = vector.broadcast %47 : f32 to vector<8x8xf32>
    %51 = arith.mulf %50, %49 : vector<8x8xf32>
    %52 = arith.addf %46, %51 : vector<8x8xf32>
    %c0_28 = arith.constant 0 : index
    %c6 = arith.constant 6 : index
    %53 = memref.load %arg5[%c0_28, %c6] : memref<4x8xf32, #tpu.memory_space<smem>>
    %54 = vector.extract_strided_slice %12 {offsets = [6, 0, 0], sizes = [1, 8, 8], strides = [1, 1, 1]} : vector<8x8x8xf32> to vector<1x8x8xf32>
    %55 = vector.shape_cast %54 : vector<1x8x8xf32> to vector<8x8xf32>
    %56 = vector.broadcast %53 : f32 to vector<8x8xf32>
    %57 = arith.mulf %56, %55 : vector<8x8xf32>
    %58 = arith.addf %52, %57 : vector<8x8xf32>
    %c0_29 = arith.constant 0 : index
    %c7 = arith.constant 7 : index
    %59 = memref.load %arg5[%c0_29, %c7] : memref<4x8xf32, #tpu.memory_space<smem>>
    %60 = vector.extract_strided_slice %12 {offsets = [7, 0, 0], sizes = [1, 8, 8], strides = [1, 1, 1]} : vector<8x8x8xf32> to vector<1x8x8xf32>
    %61 = vector.shape_cast %60 : vector<1x8x8xf32> to vector<8x8xf32>
    %62 = vector.broadcast %59 : f32 to vector<8x8xf32>
    %63 = arith.mulf %62, %61 : vector<8x8xf32>
    %64 = arith.addf %58, %63 : vector<8x8xf32>
    %cst_30 = arith.constant dense<0.000000e+00> : vector<8x16xf32>
    %65 = tpu.matmul %64, %7, %cst_30 {dimension_numbers = #tpu.dot_dimension_numbers<[1], [0], [0], [1], [0, 0, 1, 1], [], []>} : vector<8x8xf32>, vector<8x16xf32>, vector<8x16xf32> -> vector<8x16xf32>
    %cst_31 = arith.constant dense<0.000000e+00> : vector<16x16xf32>
    %66 = tpu.matmul %6, %65, %cst_31 {dimension_numbers = #tpu.dot_dimension_numbers<[1], [0], [0], [1], [0, 0, 1, 1], [], []>} : vector<16x8xf32>, vector<8x16xf32>, vector<16x16xf32> -> vector<16x16xf32>
    %c0_32 = arith.constant 0 : index
    %c0_33 = arith.constant 0 : index
    %c0_34 = arith.constant 0 : index
    %c0_35 = arith.constant 0 : index
    %c0_36 = arith.constant 0 : index
    %67 = vector.load %arg8[%c0_32, %c0_33, %c0_34, %c0_35, %c0_36] : memref<1x4x2x16x16xf32, #tpu.memory_space<vmem>>, vector<1x1x1x16x16xf32>
    %68 = vector.shape_cast %67 : vector<1x1x1x16x16xf32> to vector<16x16xf32>
    %69 = arith.addf %66, %68 : vector<16x16xf32>
    %c0_37 = arith.constant 0 : index
    %c0_38 = arith.constant 0 : index
    %c0_39 = arith.constant 0 : index
    %c0_40 = arith.constant 0 : index
    %c0_41 = arith.constant 0 : index
    %70 = vector.load %arg9[%c0_37, %c0_38, %c0_39, %c0_40, %c0_41] : memref<1x4x2x16x16xf32, #tpu.memory_space<vmem>>, vector<1x1x1x16x16xf32>
    %71 = vector.shape_cast %70 : vector<1x1x1x16x16xf32> to vector<16x16xf32>
    %72 = vector.shape_cast %69 : vector<16x16xf32> to vector<1x1x1x16x16xf32>
    tpu.vector_store %arg9[%c0_37, %c0_38, %c0_39, %c0_40, %c0_41], %72 {strides = array<i32>} : memref<1x4x2x16x16xf32, #tpu.memory_space<vmem>>, vector<1x1x1x16x16xf32>,
    %c1_42 = arith.constant 1 : index
    %c0_43 = arith.constant 0 : index
    %73 = memref.load %arg5[%c1_42, %c0_43] : memref<4x8xf32, #tpu.memory_space<smem>>
    %74 = vector.extract_strided_slice %12 {offsets = [0, 0, 0], sizes = [1, 8, 8], strides = [1, 1, 1]} : vector<8x8x8xf32> to vector<1x8x8xf32>
    %75 = vector.shape_cast %74 : vector<1x8x8xf32> to vector<8x8xf32>
    %76 = vector.broadcast %73 : f32 to vector<8x8xf32>
    %77 = arith.mulf %76, %75 : vector<8x8xf32>
    %c1_44 = arith.constant 1 : index
    %c1_45 = arith.constant 1 : index
    %78 = memref.load %arg5[%c1_44, %c1_45] : memref<4x8xf32, #tpu.memory_space<smem>>
    %79 = vector.extract_strided_slice %12 {offsets = [1, 0, 0], sizes = [1, 8, 8], strides = [1, 1, 1]} : vector<8x8x8xf32> to vector<1x8x8xf32>
    %80 = vector.shape_cast %79 : vector<1x8x8xf32> to vector<8x8xf32>
    %81 = vector.broadcast %78 : f32 to vector<8x8xf32>
    %82 = arith.mulf %81, %80 : vector<8x8xf32>
    %83 = arith.addf %77, %82 : vector<8x8xf32>
    %c1_46 = arith.constant 1 : index
    %c2_47 = arith.constant 2 : index
    %84 = memref.load %arg5[%c1_46, %c2_47] : memref<4x8xf32, #tpu.memory_space<smem>>
    %85 = vector.extract_strided_slice %12 {offsets = [2, 0, 0], sizes = [1, 8, 8], strides = [1, 1, 1]} : vector<8x8x8xf32> to vector<1x8x8xf32>
    %86 = vector.shape_cast %85 : vector<1x8x8xf32> to vector<8x8xf32>
    %87 = vector.broadcast %84 : f32 to vector<8x8xf32>
    %88 = arith.mulf %87, %86 : vector<8x8xf32>
    %89 = arith.addf %83, %88 : vector<8x8xf32>
    %c1_48 = arith.constant 1 : index
    %c3_49 = arith.constant 3 : index
    %90 = memref.load %arg5[%c1_48, %c3_49] : memref<4x8xf32, #tpu.memory_space<smem>>
    %91 = vector.extract_strided_slice %12 {offsets = [3, 0, 0], sizes = [1, 8, 8], strides = [1, 1, 1]} : vector<8x8x8xf32> to vector<1x8x8xf32>
    %92 = vector.shape_cast %91 : vector<1x8x8xf32> to vector<8x8xf32>
    %93 = vector.broadcast %90 : f32 to vector<8x8xf32>
    %94 = arith.mulf %93, %92 : vector<8x8xf32>
    %95 = arith.addf %89, %94 : vector<8x8xf32>
    %c1_50 = arith.constant 1 : index
    %c4_51 = arith.constant 4 : index
    %96 = memref.load %arg5[%c1_50, %c4_51] : memref<4x8xf32, #tpu.memory_space<smem>>
    %97 = vector.extract_strided_slice %12 {offsets = [4, 0, 0], sizes = [1, 8, 8], strides = [1, 1, 1]} : vector<8x8x8xf32> to vector<1x8x8xf32>
    %98 = vector.shape_cast %97 : vector<1x8x8xf32> to vector<8x8xf32>
    %99 = vector.broadcast %96 : f32 to vector<8x8xf32>
    %100 = arith.mulf %99, %98 : vector<8x8xf32>
    %101 = arith.addf %95, %100 : vector<8x8xf32>
    %c1_52 = arith.constant 1 : index
    %c5_53 = arith.constant 5 : index
    %102 = memref.load %arg5[%c1_52, %c5_53] : memref<4x8xf32, #tpu.memory_space<smem>>
    %103 = vector.extract_strided_slice %12 {offsets = [5, 0, 0], sizes = [1, 8, 8], strides = [1, 1, 1]} : vector<8x8x8xf32> to vector<1x8x8xf32>
    %104 = vector.shape_cast %103 : vector<1x8x8xf32> to vector<8x8xf32>
    %105 = vector.broadcast %102 : f32 to vector<8x8xf32>
    %106 = arith.mulf %105, %104 : vector<8x8xf32>
    %107 = arith.addf %101, %106 : vector<8x8xf32>
    %c1_54 = arith.constant 1 : index
    %c6_55 = arith.constant 6 : index
    %108 = memref.load %arg5[%c1_54, %c6_55] : memref<4x8xf32, #tpu.memory_space<smem>>
    %109 = vector.extract_strided_slice %12 {offsets = [6, 0, 0], sizes = [1, 8, 8], strides = [1, 1, 1]} : vector<8x8x8xf32> to vector<1x8x8xf32>
    %110 = vector.shape_cast %109 : vector<1x8x8xf32> to vector<8x8xf32>
    %111 = vector.broadcast %108 : f32 to vector<8x8xf32>
    %112 = arith.mulf %111, %110 : vector<8x8xf32>
    %113 = arith.addf %107, %112 : vector<8x8xf32>
    %c1_56 = arith.constant 1 : index
    %c7_57 = arith.constant 7 : index
    %114 = memref.load %arg5[%c1_56, %c7_57] : memref<4x8xf32, #tpu.memory_space<smem>>
    %115 = vector.extract_strided_slice %12 {offsets = [7, 0, 0], sizes = [1, 8, 8], strides = [1, 1, 1]} : vector<8x8x8xf32> to vector<1x8x8xf32>
    %116 = vector.shape_cast %115 : vector<1x8x8xf32> to vector<8x8xf32>
    %117 = vector.broadcast %114 : f32 to vector<8x8xf32>
    %118 = arith.mulf %117, %116 : vector<8x8xf32>
    %119 = arith.addf %113, %118 : vector<8x8xf32>
    %cst_58 = arith.constant dense<0.000000e+00> : vector<8x16xf32>
    %120 = tpu.matmul %119, %7, %cst_58 {dimension_numbers = #tpu.dot_dimension_numbers<[1], [0], [0], [1], [0, 0, 1, 1], [], []>} : vector<8x8xf32>, vector<8x16xf32>, vector<8x16xf32> -> vector<8x16xf32>
    %cst_59 = arith.constant dense<0.000000e+00> : vector<16x16xf32>
    %121 = tpu.matmul %6, %120, %cst_59 {dimension_numbers = #tpu.dot_dimension_numbers<[1], [0], [0], [1], [0, 0, 1, 1], [], []>} : vector<16x8xf32>, vector<8x16xf32>, vector<16x16xf32> -> vector<16x16xf32>
    %c0_60 = arith.constant 0 : index
    %c1_61 = arith.constant 1 : index
    %c0_62 = arith.constant 0 : index
    %c0_63 = arith.constant 0 : index
    %c0_64 = arith.constant 0 : index
    %122 = vector.load %arg8[%c0_60, %c1_61, %c0_62, %c0_63, %c0_64] : memref<1x4x2x16x16xf32, #tpu.memory_space<vmem>>, vector<1x1x1x16x16xf32>
    %123 = vector.shape_cast %122 : vector<1x1x1x16x16xf32> to vector<16x16xf32>
    %124 = arith.addf %121, %123 : vector<16x16xf32>
    %c0_65 = arith.constant 0 : index
    %c1_66 = arith.constant 1 : index
    %c0_67 = arith.constant 0 : index
    %c0_68 = arith.constant 0 : index
    %c0_69 = arith.constant 0 : index
    %125 = vector.load %arg9[%c0_65, %c1_66, %c0_67, %c0_68, %c0_69] : memref<1x4x2x16x16xf32, #tpu.memory_space<vmem>>, vector<1x1x1x16x16xf32>
    %126 = vector.shape_cast %125 : vector<1x1x1x16x16xf32> to vector<16x16xf32>
    %127 = vector.shape_cast %124 : vector<16x16xf32> to vector<1x1x1x16x16xf32>
    tpu.vector_store %arg9[%c0_65, %c1_66, %c0_67, %c0_68, %c0_69], %127 {strides = array<i32>} : memref<1x4x2x16x16xf32, #tpu.memory_space<vmem>>, vector<1x1x1x16x16xf32>,
    %c2_70 = arith.constant 2 : index
    %c0_71 = arith.constant 0 : index
    %128 = memref.load %arg5[%c2_70, %c0_71] : memref<4x8xf32, #tpu.memory_space<smem>>
    %129 = vector.extract_strided_slice %12 {offsets = [0, 0, 0], sizes = [1, 8, 8], strides = [1, 1, 1]} : vector<8x8x8xf32> to vector<1x8x8xf32>
    %130 = vector.shape_cast %129 : vector<1x8x8xf32> to vector<8x8xf32>
    %131 = vector.broadcast %128 : f32 to vector<8x8xf32>
    %132 = arith.mulf %131, %130 : vector<8x8xf32>
    %c2_72 = arith.constant 2 : index
    %c1_73 = arith.constant 1 : index
    %133 = memref.load %arg5[%c2_72, %c1_73] : memref<4x8xf32, #tpu.memory_space<smem>>
    %134 = vector.extract_strided_slice %12 {offsets = [1, 0, 0], sizes = [1, 8, 8], strides = [1, 1, 1]} : vector<8x8x8xf32> to vector<1x8x8xf32>
    %135 = vector.shape_cast %134 : vector<1x8x8xf32> to vector<8x8xf32>
    %136 = vector.broadcast %133 : f32 to vector<8x8xf32>
    %137 = arith.mulf %136, %135 : vector<8x8xf32>
    %138 = arith.addf %132, %137 : vector<8x8xf32>
    %c2_74 = arith.constant 2 : index
    %c2_75 = arith.constant 2 : index
    %139 = memref.load %arg5[%c2_74, %c2_75] : memref<4x8xf32, #tpu.memory_space<smem>>
    %140 = vector.extract_strided_slice %12 {offsets = [2, 0, 0], sizes = [1, 8, 8], strides = [1, 1, 1]} : vector<8x8x8xf32> to vector<1x8x8xf32>
    %141 = vector.shape_cast %140 : vector<1x8x8xf32> to vector<8x8xf32>
    %142 = vector.broadcast %139 : f32 to vector<8x8xf32>
    %143 = arith.mulf %142, %141 : vector<8x8xf32>
    %144 = arith.addf %138, %143 : vector<8x8xf32>
    %c2_76 = arith.constant 2 : index
    %c3_77 = arith.constant 3 : index
    %145 = memref.load %arg5[%c2_76, %c3_77] : memref<4x8xf32, #tpu.memory_space<smem>>
    %146 = vector.extract_strided_slice %12 {offsets = [3, 0, 0], sizes = [1, 8, 8], strides = [1, 1, 1]} : vector<8x8x8xf32> to vector<1x8x8xf32>
    %147 = vector.shape_cast %146 : vector<1x8x8xf32> to vector<8x8xf32>
    %148 = vector.broadcast %145 : f32 to vector<8x8xf32>
    %149 = arith.mulf %148, %147 : vector<8x8xf32>
    %150 = arith.addf %144, %149 : vector<8x8xf32>
    %c2_78 = arith.constant 2 : index
    %c4_79 = arith.constant 4 : index
    %151 = memref.load %arg5[%c2_78, %c4_79] : memref<4x8xf32, #tpu.memory_space<smem>>
    %152 = vector.extract_strided_slice %12 {offsets = [4, 0, 0], sizes = [1, 8, 8], strides = [1, 1, 1]} : vector<8x8x8xf32> to vector<1x8x8xf32>
    %153 = vector.shape_cast %152 : vector<1x8x8xf32> to vector<8x8xf32>
    %154 = vector.broadcast %151 : f32 to vector<8x8xf32>
    %155 = arith.mulf %154, %153 : vector<8x8xf32>
    %156 = arith.addf %150, %155 : vector<8x8xf32>
    %c2_80 = arith.constant 2 : index
    %c5_81 = arith.constant 5 : index
    %157 = memref.load %arg5[%c2_80, %c5_81] : memref<4x8xf32, #tpu.memory_space<smem>>
    %158 = vector.extract_strided_slice %12 {offsets = [5, 0, 0], sizes = [1, 8, 8], strides = [1, 1, 1]} : vector<8x8x8xf32> to vector<1x8x8xf32>
    %159 = vector.shape_cast %158 : vector<1x8x8xf32> to vector<8x8xf32>
    %160 = vector.broadcast %157 : f32 to vector<8x8xf32>
    %161 = arith.mulf %160, %159 : vector<8x8xf32>
    %162 = arith.addf %156, %161 : vector<8x8xf32>
    %c2_82 = arith.constant 2 : index
    %c6_83 = arith.constant 6 : index
    %163 = memref.load %arg5[%c2_82, %c6_83] : memref<4x8xf32, #tpu.memory_space<smem>>
    %164 = vector.extract_strided_slice %12 {offsets = [6, 0, 0], sizes = [1, 8, 8], strides = [1, 1, 1]} : vector<8x8x8xf32> to vector<1x8x8xf32>
    %165 = vector.shape_cast %164 : vector<1x8x8xf32> to vector<8x8xf32>
    %166 = vector.broadcast %163 : f32 to vector<8x8xf32>
    %167 = arith.mulf %166, %165 : vector<8x8xf32>
    %168 = arith.addf %162, %167 : vector<8x8xf32>
    %c2_84 = arith.constant 2 : index
    %c7_85 = arith.constant 7 : index
    %169 = memref.load %arg5[%c2_84, %c7_85] : memref<4x8xf32, #tpu.memory_space<smem>>
    %170 = vector.extract_strided_slice %12 {offsets = [7, 0, 0], sizes = [1, 8, 8], strides = [1, 1, 1]} : vector<8x8x8xf32> to vector<1x8x8xf32>
    %171 = vector.shape_cast %170 : vector<1x8x8xf32> to vector<8x8xf32>
    %172 = vector.broadcast %169 : f32 to vector<8x8xf32>
    %173 = arith.mulf %172, %171 : vector<8x8xf32>
    %174 = arith.addf %168, %173 : vector<8x8xf32>
    %cst_86 = arith.constant dense<0.000000e+00> : vector<8x16xf32>
    %175 = tpu.matmul %174, %7, %cst_86 {dimension_numbers = #tpu.dot_dimension_numbers<[1], [0], [0], [1], [0, 0, 1, 1], [], []>} : vector<8x8xf32>, vector<8x16xf32>, vector<8x16xf32> -> vector<8x16xf32>
    %cst_87 = arith.constant dense<0.000000e+00> : vector<16x16xf32>
    %176 = tpu.matmul %6, %175, %cst_87 {dimension_numbers = #tpu.dot_dimension_numbers<[1], [0], [0], [1], [0, 0, 1, 1], [], []>} : vector<16x8xf32>, vector<8x16xf32>, vector<16x16xf32> -> vector<16x16xf32>
    %c0_88 = arith.constant 0 : index
    %c2_89 = arith.constant 2 : index
    %c0_90 = arith.constant 0 : index
    %c0_91 = arith.constant 0 : index
    %c0_92 = arith.constant 0 : index
    %177 = vector.load %arg8[%c0_88, %c2_89, %c0_90, %c0_91, %c0_92] : memref<1x4x2x16x16xf32, #tpu.memory_space<vmem>>, vector<1x1x1x16x16xf32>
    %178 = vector.shape_cast %177 : vector<1x1x1x16x16xf32> to vector<16x16xf32>
    %179 = arith.addf %176, %178 : vector<16x16xf32>
    %c0_93 = arith.constant 0 : index
    %c2_94 = arith.constant 2 : index
    %c0_95 = arith.constant 0 : index
    %c0_96 = arith.constant 0 : index
    %c0_97 = arith.constant 0 : index
    %180 = vector.load %arg9[%c0_93, %c2_94, %c0_95, %c0_96, %c0_97] : memref<1x4x2x16x16xf32, #tpu.memory_space<vmem>>, vector<1x1x1x16x16xf32>
    %181 = vector.shape_cast %180 : vector<1x1x1x16x16xf32> to vector<16x16xf32>
    %182 = vector.shape_cast %179 : vector<16x16xf32> to vector<1x1x1x16x16xf32>
    tpu.vector_store %arg9[%c0_93, %c2_94, %c0_95, %c0_96, %c0_97], %182 {strides = array<i32>} : memref<1x4x2x16x16xf32, #tpu.memory_space<vmem>>, vector<1x1x1x16x16xf32>,
    %c3_98 = arith.constant 3 : index
    %c0_99 = arith.constant 0 : index
    %183 = memref.load %arg5[%c3_98, %c0_99] : memref<4x8xf32, #tpu.memory_space<smem>>
    %184 = vector.extract_strided_slice %12 {offsets = [0, 0, 0], sizes = [1, 8, 8], strides = [1, 1, 1]} : vector<8x8x8xf32> to vector<1x8x8xf32>
    %185 = vector.shape_cast %184 : vector<1x8x8xf32> to vector<8x8xf32>
    %186 = vector.broadcast %183 : f32 to vector<8x8xf32>
    %187 = arith.mulf %186, %185 : vector<8x8xf32>
    %c3_100 = arith.constant 3 : index
    %c1_101 = arith.constant 1 : index
    %188 = memref.load %arg5[%c3_100, %c1_101] : memref<4x8xf32, #tpu.memory_space<smem>>
    %189 = vector.extract_strided_slice %12 {offsets = [1, 0, 0], sizes = [1, 8, 8], strides = [1, 1, 1]} : vector<8x8x8xf32> to vector<1x8x8xf32>
    %190 = vector.shape_cast %189 : vector<1x8x8xf32> to vector<8x8xf32>
    %191 = vector.broadcast %188 : f32 to vector<8x8xf32>
    %192 = arith.mulf %191, %190 : vector<8x8xf32>
    %193 = arith.addf %187, %192 : vector<8x8xf32>
    %c3_102 = arith.constant 3 : index
    %c2_103 = arith.constant 2 : index
    %194 = memref.load %arg5[%c3_102, %c2_103] : memref<4x8xf32, #tpu.memory_space<smem>>
    %195 = vector.extract_strided_slice %12 {offsets = [2, 0, 0], sizes = [1, 8, 8], strides = [1, 1, 1]} : vector<8x8x8xf32> to vector<1x8x8xf32>
    %196 = vector.shape_cast %195 : vector<1x8x8xf32> to vector<8x8xf32>
    %197 = vector.broadcast %194 : f32 to vector<8x8xf32>
    %198 = arith.mulf %197, %196 : vector<8x8xf32>
    %199 = arith.addf %193, %198 : vector<8x8xf32>
    %c3_104 = arith.constant 3 : index
    %c3_105 = arith.constant 3 : index
    %200 = memref.load %arg5[%c3_104, %c3_105] : memref<4x8xf32, #tpu.memory_space<smem>>
    %201 = vector.extract_strided_slice %12 {offsets = [3, 0, 0], sizes = [1, 8, 8], strides = [1, 1, 1]} : vector<8x8x8xf32> to vector<1x8x8xf32>
    %202 = vector.shape_cast %201 : vector<1x8x8xf32> to vector<8x8xf32>
    %203 = vector.broadcast %200 : f32 to vector<8x8xf32>
    %204 = arith.mulf %203, %202 : vector<8x8xf32>
    %205 = arith.addf %199, %204 : vector<8x8xf32>
    %c3_106 = arith.constant 3 : index
    %c4_107 = arith.constant 4 : index
    %206 = memref.load %arg5[%c3_106, %c4_107] : memref<4x8xf32, #tpu.memory_space<smem>>
    %207 = vector.extract_strided_slice %12 {offsets = [4, 0, 0], sizes = [1, 8, 8], strides = [1, 1, 1]} : vector<8x8x8xf32> to vector<1x8x8xf32>
    %208 = vector.shape_cast %207 : vector<1x8x8xf32> to vector<8x8xf32>
    %209 = vector.broadcast %206 : f32 to vector<8x8xf32>
    %210 = arith.mulf %209, %208 : vector<8x8xf32>
    %211 = arith.addf %205, %210 : vector<8x8xf32>
    %c3_108 = arith.constant 3 : index
    %c5_109 = arith.constant 5 : index
    %212 = memref.load %arg5[%c3_108, %c5_109] : memref<4x8xf32, #tpu.memory_space<smem>>
    %213 = vector.extract_strided_slice %12 {offsets = [5, 0, 0], sizes = [1, 8, 8], strides = [1, 1, 1]} : vector<8x8x8xf32> to vector<1x8x8xf32>
    %214 = vector.shape_cast %213 : vector<1x8x8xf32> to vector<8x8xf32>
    %215 = vector.broadcast %212 : f32 to vector<8x8xf32>
    %216 = arith.mulf %215, %214 : vector<8x8xf32>
    %217 = arith.addf %211, %216 : vector<8x8xf32>
    %c3_110 = arith.constant 3 : index
    %c6_111 = arith.constant 6 : index
    %218 = memref.load %arg5[%c3_110, %c6_111] : memref<4x8xf32, #tpu.memory_space<smem>>
    %219 = vector.extract_strided_slice %12 {offsets = [6, 0, 0], sizes = [1, 8, 8], strides = [1, 1, 1]} : vector<8x8x8xf32> to vector<1x8x8xf32>
    %220 = vector.shape_cast %219 : vector<1x8x8xf32> to vector<8x8xf32>
    %221 = vector.broadcast %218 : f32 to vector<8x8xf32>
    %222 = arith.mulf %221, %220 : vector<8x8xf32>
    %223 = arith.addf %217, %222 : vector<8x8xf32>
    %c3_112 = arith.constant 3 : index
    %c7_113 = arith.constant 7 : index
    %224 = memref.load %arg5[%c3_112, %c7_113] : memref<4x8xf32, #tpu.memory_space<smem>>
    %225 = vector.extract_strided_slice %12 {offsets = [7, 0, 0], sizes = [1, 8, 8], strides = [1, 1, 1]} : vector<8x8x8xf32> to vector<1x8x8xf32>
    %226 = vector.shape_cast %225 : vector<1x8x8xf32> to vector<8x8xf32>
    %227 = vector.broadcast %224 : f32 to vector<8x8xf32>
    %228 = arith.mulf %227, %226 : vector<8x8xf32>
    %229 = arith.addf %223, %228 : vector<8x8xf32>
    %cst_114 = arith.constant dense<0.000000e+00> : vector<8x16xf32>
    %230 = tpu.matmul %229, %7, %cst_114 {dimension_numbers = #tpu.dot_dimension_numbers<[1], [0], [0], [1], [0, 0, 1, 1], [], []>} : vector<8x8xf32>, vector<8x16xf32>, vector<8x16xf32> -> vector<8x16xf32>
    %cst_115 = arith.constant dense<0.000000e+00> : vector<16x16xf32>
    %231 = tpu.matmul %6, %230, %cst_115 {dimension_numbers = #tpu.dot_dimension_numbers<[1], [0], [0], [1], [0, 0, 1, 1], [], []>} : vector<16x8xf32>, vector<8x16xf32>, vector<16x16xf32> -> vector<16x16xf32>
    %c0_116 = arith.constant 0 : index
    %c3_117 = arith.constant 3 : index
    %c0_118 = arith.constant 0 : index
    %c0_119 = arith.constant 0 : index
    %c0_120 = arith.constant 0 : index
    %232 = vector.load %arg8[%c0_116, %c3_117, %c0_118, %c0_119, %c0_120] : memref<1x4x2x16x16xf32, #tpu.memory_space<vmem>>, vector<1x1x1x16x16xf32>
    %233 = vector.shape_cast %232 : vector<1x1x1x16x16xf32> to vector<16x16xf32>
    %234 = arith.addf %231, %233 : vector<16x16xf32>
    %c0_121 = arith.constant 0 : index
    %c3_122 = arith.constant 3 : index
    %c0_123 = arith.constant 0 : index
    %c0_124 = arith.constant 0 : index
    %c0_125 = arith.constant 0 : index
    %235 = vector.load %arg9[%c0_121, %c3_122, %c0_123, %c0_124, %c0_125] : memref<1x4x2x16x16xf32, #tpu.memory_space<vmem>>, vector<1x1x1x16x16xf32>
    %236 = vector.shape_cast %235 : vector<1x1x1x16x16xf32> to vector<16x16xf32>
    %237 = vector.shape_cast %234 : vector<16x16xf32> to vector<1x1x1x16x16xf32>
    tpu.vector_store %arg9[%c0_121, %c3_122, %c0_123, %c0_124, %c0_125], %237 {strides = array<i32>} : memref<1x4x2x16x16xf32, #tpu.memory_space<vmem>>, vector<1x1x1x16x16xf32>,
    %c0_126 = arith.constant 0 : index
    %c0_127 = arith.constant 0 : index
    %238 = memref.load %arg5[%c0_126, %c0_127] : memref<4x8xf32, #tpu.memory_space<smem>>
    %239 = vector.extract_strided_slice %17 {offsets = [0, 0, 0], sizes = [1, 8, 8], strides = [1, 1, 1]} : vector<8x8x8xf32> to vector<1x8x8xf32>
    %240 = vector.shape_cast %239 : vector<1x8x8xf32> to vector<8x8xf32>
    %241 = vector.broadcast %238 : f32 to vector<8x8xf32>
    %242 = arith.mulf %241, %240 : vector<8x8xf32>
    %c0_128 = arith.constant 0 : index
    %c1_129 = arith.constant 1 : index
    %243 = memref.load %arg5[%c0_128, %c1_129] : memref<4x8xf32, #tpu.memory_space<smem>>
    %244 = vector.extract_strided_slice %17 {offsets = [1, 0, 0], sizes = [1, 8, 8], strides = [1, 1, 1]} : vector<8x8x8xf32> to vector<1x8x8xf32>
    %245 = vector.shape_cast %244 : vector<1x8x8xf32> to vector<8x8xf32>
    %246 = vector.broadcast %243 : f32 to vector<8x8xf32>
    %247 = arith.mulf %246, %245 : vector<8x8xf32>
    %248 = arith.addf %242, %247 : vector<8x8xf32>
    %c0_130 = arith.constant 0 : index
    %c2_131 = arith.constant 2 : index
    %249 = memref.load %arg5[%c0_130, %c2_131] : memref<4x8xf32, #tpu.memory_space<smem>>
    %250 = vector.extract_strided_slice %17 {offsets = [2, 0, 0], sizes = [1, 8, 8], strides = [1, 1, 1]} : vector<8x8x8xf32> to vector<1x8x8xf32>
    %251 = vector.shape_cast %250 : vector<1x8x8xf32> to vector<8x8xf32>
    %252 = vector.broadcast %249 : f32 to vector<8x8xf32>
    %253 = arith.mulf %252, %251 : vector<8x8xf32>
    %254 = arith.addf %248, %253 : vector<8x8xf32>
    %c0_132 = arith.constant 0 : index
    %c3_133 = arith.constant 3 : index
    %255 = memref.load %arg5[%c0_132, %c3_133] : memref<4x8xf32, #tpu.memory_space<smem>>
    %256 = vector.extract_strided_slice %17 {offsets = [3, 0, 0], sizes = [1, 8, 8], strides = [1, 1, 1]} : vector<8x8x8xf32> to vector<1x8x8xf32>
    %257 = vector.shape_cast %256 : vector<1x8x8xf32> to vector<8x8xf32>
    %258 = vector.broadcast %255 : f32 to vector<8x8xf32>
    %259 = arith.mulf %258, %257 : vector<8x8xf32>
    %260 = arith.addf %254, %259 : vector<8x8xf32>
    %c0_134 = arith.constant 0 : index
    %c4_135 = arith.constant 4 : index
    %261 = memref.load %arg5[%c0_134, %c4_135] : memref<4x8xf32, #tpu.memory_space<smem>>
    %262 = vector.extract_strided_slice %17 {offsets = [4, 0, 0], sizes = [1, 8, 8], strides = [1, 1, 1]} : vector<8x8x8xf32> to vector<1x8x8xf32>
    %263 = vector.shape_cast %262 : vector<1x8x8xf32> to vector<8x8xf32>
    %264 = vector.broadcast %261 : f32 to vector<8x8xf32>
    %265 = arith.mulf %264, %263 : vector<8x8xf32>
    %266 = arith.addf %260, %265 : vector<8x8xf32>
    %c0_136 = arith.constant 0 : index
    %c5_137 = arith.constant 5 : index
    %267 = memref.load %arg5[%c0_136, %c5_137] : memref<4x8xf32, #tpu.memory_space<smem>>
    %268 = vector.extract_strided_slice %17 {offsets = [5, 0, 0], sizes = [1, 8, 8], strides = [1, 1, 1]} : vector<8x8x8xf32> to vector<1x8x8xf32>
    %269 = vector.shape_cast %268 : vector<1x8x8xf32> to vector<8x8xf32>
    %270 = vector.broadcast %267 : f32 to vector<8x8xf32>
    %271 = arith.mulf %270, %269 : vector<8x8xf32>
    %272 = arith.addf %266, %271 : vector<8x8xf32>
    %c0_138 = arith.constant 0 : index
    %c6_139 = arith.constant 6 : index
    %273 = memref.load %arg5[%c0_138, %c6_139] : memref<4x8xf32, #tpu.memory_space<smem>>
    %274 = vector.extract_strided_slice %17 {offsets = [6, 0, 0], sizes = [1, 8, 8], strides = [1, 1, 1]} : vector<8x8x8xf32> to vector<1x8x8xf32>
    %275 = vector.shape_cast %274 : vector<1x8x8xf32> to vector<8x8xf32>
    %276 = vector.broadcast %273 : f32 to vector<8x8xf32>
    %277 = arith.mulf %276, %275 : vector<8x8xf32>
    %278 = arith.addf %272, %277 : vector<8x8xf32>
    %c0_140 = arith.constant 0 : index
    %c7_141 = arith.constant 7 : index
    %279 = memref.load %arg5[%c0_140, %c7_141] : memref<4x8xf32, #tpu.memory_space<smem>>
    %280 = vector.extract_strided_slice %17 {offsets = [7, 0, 0], sizes = [1, 8, 8], strides = [1, 1, 1]} : vector<8x8x8xf32> to vector<1x8x8xf32>
    %281 = vector.shape_cast %280 : vector<1x8x8xf32> to vector<8x8xf32>
    %282 = vector.broadcast %279 : f32 to vector<8x8xf32>
    %283 = arith.mulf %282, %281 : vector<8x8xf32>
    %284 = arith.addf %278, %283 : vector<8x8xf32>
    %cst_142 = arith.constant dense<0.000000e+00> : vector<8x16xf32>
    %285 = tpu.matmul %284, %7, %cst_142 {dimension_numbers = #tpu.dot_dimension_numbers<[1], [0], [0], [1], [0, 0, 1, 1], [], []>} : vector<8x8xf32>, vector<8x16xf32>, vector<8x16xf32> -> vector<8x16xf32>
    %cst_143 = arith.constant dense<0.000000e+00> : vector<16x16xf32>
    %286 = tpu.matmul %6, %285, %cst_143 {dimension_numbers = #tpu.dot_dimension_numbers<[1], [0], [0], [1], [0, 0, 1, 1], [], []>} : vector<16x8xf32>, vector<8x16xf32>, vector<16x16xf32> -> vector<16x16xf32>
    %c0_144 = arith.constant 0 : index
    %c0_145 = arith.constant 0 : index
    %c1_146 = arith.constant 1 : index
    %c0_147 = arith.constant 0 : index
    %c0_148 = arith.constant 0 : index
    %287 = vector.load %arg8[%c0_144, %c0_145, %c1_146, %c0_147, %c0_148] : memref<1x4x2x16x16xf32, #tpu.memory_space<vmem>>, vector<1x1x1x16x16xf32>
    %288 = vector.shape_cast %287 : vector<1x1x1x16x16xf32> to vector<16x16xf32>
    %289 = arith.addf %286, %288 : vector<16x16xf32>
    %c0_149 = arith.constant 0 : index
    %c0_150 = arith.constant 0 : index
    %c1_151 = arith.constant 1 : index
    %c0_152 = arith.constant 0 : index
    %c0_153 = arith.constant 0 : index
    %290 = vector.load %arg9[%c0_149, %c0_150, %c1_151, %c0_152, %c0_153] : memref<1x4x2x16x16xf32, #tpu.memory_space<vmem>>, vector<1x1x1x16x16xf32>
    %291 = vector.shape_cast %290 : vector<1x1x1x16x16xf32> to vector<16x16xf32>
    %292 = vector.shape_cast %289 : vector<16x16xf32> to vector<1x1x1x16x16xf32>
    tpu.vector_store %arg9[%c0_149, %c0_150, %c1_151, %c0_152, %c0_153], %292 {strides = array<i32>} : memref<1x4x2x16x16xf32, #tpu.memory_space<vmem>>, vector<1x1x1x16x16xf32>,
    %c1_154 = arith.constant 1 : index
    %c0_155 = arith.constant 0 : index
    %293 = memref.load %arg5[%c1_154, %c0_155] : memref<4x8xf32, #tpu.memory_space<smem>>
    %294 = vector.extract_strided_slice %17 {offsets = [0, 0, 0], sizes = [1, 8, 8], strides = [1, 1, 1]} : vector<8x8x8xf32> to vector<1x8x8xf32>
    %295 = vector.shape_cast %294 : vector<1x8x8xf32> to vector<8x8xf32>
    %296 = vector.broadcast %293 : f32 to vector<8x8xf32>
    %297 = arith.mulf %296, %295 : vector<8x8xf32>
    %c1_156 = arith.constant 1 : index
    %c1_157 = arith.constant 1 : index
    %298 = memref.load %arg5[%c1_156, %c1_157] : memref<4x8xf32, #tpu.memory_space<smem>>
    %299 = vector.extract_strided_slice %17 {offsets = [1, 0, 0], sizes = [1, 8, 8], strides = [1, 1, 1]} : vector<8x8x8xf32> to vector<1x8x8xf32>
    %300 = vector.shape_cast %299 : vector<1x8x8xf32> to vector<8x8xf32>
    %301 = vector.broadcast %298 : f32 to vector<8x8xf32>
    %302 = arith.mulf %301, %300 : vector<8x8xf32>
    %303 = arith.addf %297, %302 : vector<8x8xf32>
    %c1_158 = arith.constant 1 : index
    %c2_159 = arith.constant 2 : index
    %304 = memref.load %arg5[%c1_158, %c2_159] : memref<4x8xf32, #tpu.memory_space<smem>>
    %305 = vector.extract_strided_slice %17 {offsets = [2, 0, 0], sizes = [1, 8, 8], strides = [1, 1, 1]} : vector<8x8x8xf32> to vector<1x8x8xf32>
    %306 = vector.shape_cast %305 : vector<1x8x8xf32> to vector<8x8xf32>
    %307 = vector.broadcast %304 : f32 to vector<8x8xf32>
    %308 = arith.mulf %307, %306 : vector<8x8xf32>
    %309 = arith.addf %303, %308 : vector<8x8xf32>
    %c1_160 = arith.constant 1 : index
    %c3_161 = arith.constant 3 : index
    %310 = memref.load %arg5[%c1_160, %c3_161] : memref<4x8xf32, #tpu.memory_space<smem>>
    %311 = vector.extract_strided_slice %17 {offsets = [3, 0, 0], sizes = [1, 8, 8], strides = [1, 1, 1]} : vector<8x8x8xf32> to vector<1x8x8xf32>
    %312 = vector.shape_cast %311 : vector<1x8x8xf32> to vector<8x8xf32>
    %313 = vector.broadcast %310 : f32 to vector<8x8xf32>
    %314 = arith.mulf %313, %312 : vector<8x8xf32>
    %315 = arith.addf %309, %314 : vector<8x8xf32>
    %c1_162 = arith.constant 1 : index
    %c4_163 = arith.constant 4 : index
    %316 = memref.load %arg5[%c1_162, %c4_163] : memref<4x8xf32, #tpu.memory_space<smem>>
    %317 = vector.extract_strided_slice %17 {offsets = [4, 0, 0], sizes = [1, 8, 8], strides = [1, 1, 1]} : vector<8x8x8xf32> to vector<1x8x8xf32>
    %318 = vector.shape_cast %317 : vector<1x8x8xf32> to vector<8x8xf32>
    %319 = vector.broadcast %316 : f32 to vector<8x8xf32>
    %320 = arith.mulf %319, %318 : vector<8x8xf32>
    %321 = arith.addf %315, %320 : vector<8x8xf32>
    %c1_164 = arith.constant 1 : index
    %c5_165 = arith.constant 5 : index
    %322 = memref.load %arg5[%c1_164, %c5_165] : memref<4x8xf32, #tpu.memory_space<smem>>
    %323 = vector.extract_strided_slice %17 {offsets = [5, 0, 0], sizes = [1, 8, 8], strides = [1, 1, 1]} : vector<8x8x8xf32> to vector<1x8x8xf32>
    %324 = vector.shape_cast %323 : vector<1x8x8xf32> to vector<8x8xf32>
    %325 = vector.broadcast %322 : f32 to vector<8x8xf32>
    %326 = arith.mulf %325, %324 : vector<8x8xf32>
    %327 = arith.addf %321, %326 : vector<8x8xf32>
    %c1_166 = arith.constant 1 : index
    %c6_167 = arith.constant 6 : index
    %328 = memref.load %arg5[%c1_166, %c6_167] : memref<4x8xf32, #tpu.memory_space<smem>>
    %329 = vector.extract_strided_slice %17 {offsets = [6, 0, 0], sizes = [1, 8, 8], strides = [1, 1, 1]} : vector<8x8x8xf32> to vector<1x8x8xf32>
    %330 = vector.shape_cast %329 : vector<1x8x8xf32> to vector<8x8xf32>
    %331 = vector.broadcast %328 : f32 to vector<8x8xf32>
    %332 = arith.mulf %331, %330 : vector<8x8xf32>
    %333 = arith.addf %327, %332 : vector<8x8xf32>
    %c1_168 = arith.constant 1 : index
    %c7_169 = arith.constant 7 : index
    %334 = memref.load %arg5[%c1_168, %c7_169] : memref<4x8xf32, #tpu.memory_space<smem>>
    %335 = vector.extract_strided_slice %17 {offsets = [7, 0, 0], sizes = [1, 8, 8], strides = [1, 1, 1]} : vector<8x8x8xf32> to vector<1x8x8xf32>
    %336 = vector.shape_cast %335 : vector<1x8x8xf32> to vector<8x8xf32>
    %337 = vector.broadcast %334 : f32 to vector<8x8xf32>
    %338 = arith.mulf %337, %336 : vector<8x8xf32>
    %339 = arith.addf %333, %338 : vector<8x8xf32>
    %cst_170 = arith.constant dense<0.000000e+00> : vector<8x16xf32>
    %340 = tpu.matmul %339, %7, %cst_170 {dimension_numbers = #tpu.dot_dimension_numbers<[1], [0], [0], [1], [0, 0, 1, 1], [], []>} : vector<8x8xf32>, vector<8x16xf32>, vector<8x16xf32> -> vector<8x16xf32>
    %cst_171 = arith.constant dense<0.000000e+00> : vector<16x16xf32>
    %341 = tpu.matmul %6, %340, %cst_171 {dimension_numbers = #tpu.dot_dimension_numbers<[1], [0], [0], [1], [0, 0, 1, 1], [], []>} : vector<16x8xf32>, vector<8x16xf32>, vector<16x16xf32> -> vector<16x16xf32>
    %c0_172 = arith.constant 0 : index
    %c1_173 = arith.constant 1 : index
    %c1_174 = arith.constant 1 : index
    %c0_175 = arith.constant 0 : index
    %c0_176 = arith.constant 0 : index
    %342 = vector.load %arg8[%c0_172, %c1_173, %c1_174, %c0_175, %c0_176] : memref<1x4x2x16x16xf32, #tpu.memory_space<vmem>>, vector<1x1x1x16x16xf32>
    %343 = vector.shape_cast %342 : vector<1x1x1x16x16xf32> to vector<16x16xf32>
    %344 = arith.addf %341, %343 : vector<16x16xf32>
    %c0_177 = arith.constant 0 : index
    %c1_178 = arith.constant 1 : index
    %c1_179 = arith.constant 1 : index
    %c0_180 = arith.constant 0 : index
    %c0_181 = arith.constant 0 : index
    %345 = vector.load %arg9[%c0_177, %c1_178, %c1_179, %c0_180, %c0_181] : memref<1x4x2x16x16xf32, #tpu.memory_space<vmem>>, vector<1x1x1x16x16xf32>
    %346 = vector.shape_cast %345 : vector<1x1x1x16x16xf32> to vector<16x16xf32>
    %347 = vector.shape_cast %344 : vector<16x16xf32> to vector<1x1x1x16x16xf32>
    tpu.vector_store %arg9[%c0_177, %c1_178, %c1_179, %c0_180, %c0_181], %347 {strides = array<i32>} : memref<1x4x2x16x16xf32, #tpu.memory_space<vmem>>, vector<1x1x1x16x16xf32>,
    %c2_182 = arith.constant 2 : index
    %c0_183 = arith.constant 0 : index
    %348 = memref.load %arg5[%c2_182, %c0_183] : memref<4x8xf32, #tpu.memory_space<smem>>
    %349 = vector.extract_strided_slice %17 {offsets = [0, 0, 0], sizes = [1, 8, 8], strides = [1, 1, 1]} : vector<8x8x8xf32> to vector<1x8x8xf32>
    %350 = vector.shape_cast %349 : vector<1x8x8xf32> to vector<8x8xf32>
    %351 = vector.broadcast %348 : f32 to vector<8x8xf32>
    %352 = arith.mulf %351, %350 : vector<8x8xf32>
    %c2_184 = arith.constant 2 : index
    %c1_185 = arith.constant 1 : index
    %353 = memref.load %arg5[%c2_184, %c1_185] : memref<4x8xf32, #tpu.memory_space<smem>>
    %354 = vector.extract_strided_slice %17 {offsets = [1, 0, 0], sizes = [1, 8, 8], strides = [1, 1, 1]} : vector<8x8x8xf32> to vector<1x8x8xf32>
    %355 = vector.shape_cast %354 : vector<1x8x8xf32> to vector<8x8xf32>
    %356 = vector.broadcast %353 : f32 to vector<8x8xf32>
    %357 = arith.mulf %356, %355 : vector<8x8xf32>
    %358 = arith.addf %352, %357 : vector<8x8xf32>
    %c2_186 = arith.constant 2 : index
    %c2_187 = arith.constant 2 : index
    %359 = memref.load %arg5[%c2_186, %c2_187] : memref<4x8xf32, #tpu.memory_space<smem>>
    %360 = vector.extract_strided_slice %17 {offsets = [2, 0, 0], sizes = [1, 8, 8], strides = [1, 1, 1]} : vector<8x8x8xf32> to vector<1x8x8xf32>
    %361 = vector.shape_cast %360 : vector<1x8x8xf32> to vector<8x8xf32>
    %362 = vector.broadcast %359 : f32 to vector<8x8xf32>
    %363 = arith.mulf %362, %361 : vector<8x8xf32>
    %364 = arith.addf %358, %363 : vector<8x8xf32>
    %c2_188 = arith.constant 2 : index
    %c3_189 = arith.constant 3 : index
    %365 = memref.load %arg5[%c2_188, %c3_189] : memref<4x8xf32, #tpu.memory_space<smem>>
    %366 = vector.extract_strided_slice %17 {offsets = [3, 0, 0], sizes = [1, 8, 8], strides = [1, 1, 1]} : vector<8x8x8xf32> to vector<1x8x8xf32>
    %367 = vector.shape_cast %366 : vector<1x8x8xf32> to vector<8x8xf32>
    %368 = vector.broadcast %365 : f32 to vector<8x8xf32>
    %369 = arith.mulf %368, %367 : vector<8x8xf32>
    %370 = arith.addf %364, %369 : vector<8x8xf32>
    %c2_190 = arith.constant 2 : index
    %c4_191 = arith.constant 4 : index
    %371 = memref.load %arg5[%c2_190, %c4_191] : memref<4x8xf32, #tpu.memory_space<smem>>
    %372 = vector.extract_strided_slice %17 {offsets = [4, 0, 0], sizes = [1, 8, 8], strides = [1, 1, 1]} : vector<8x8x8xf32> to vector<1x8x8xf32>
    %373 = vector.shape_cast %372 : vector<1x8x8xf32> to vector<8x8xf32>
    %374 = vector.broadcast %371 : f32 to vector<8x8xf32>
    %375 = arith.mulf %374, %373 : vector<8x8xf32>
    %376 = arith.addf %370, %375 : vector<8x8xf32>
    %c2_192 = arith.constant 2 : index
    %c5_193 = arith.constant 5 : index
    %377 = memref.load %arg5[%c2_192, %c5_193] : memref<4x8xf32, #tpu.memory_space<smem>>
    %378 = vector.extract_strided_slice %17 {offsets = [5, 0, 0], sizes = [1, 8, 8], strides = [1, 1, 1]} : vector<8x8x8xf32> to vector<1x8x8xf32>
    %379 = vector.shape_cast %378 : vector<1x8x8xf32> to vector<8x8xf32>
    %380 = vector.broadcast %377 : f32 to vector<8x8xf32>
    %381 = arith.mulf %380, %379 : vector<8x8xf32>
    %382 = arith.addf %376, %381 : vector<8x8xf32>
    %c2_194 = arith.constant 2 : index
    %c6_195 = arith.constant 6 : index
    %383 = memref.load %arg5[%c2_194, %c6_195] : memref<4x8xf32, #tpu.memory_space<smem>>
    %384 = vector.extract_strided_slice %17 {offsets = [6, 0, 0], sizes = [1, 8, 8], strides = [1, 1, 1]} : vector<8x8x8xf32> to vector<1x8x8xf32>
    %385 = vector.shape_cast %384 : vector<1x8x8xf32> to vector<8x8xf32>
    %386 = vector.broadcast %383 : f32 to vector<8x8xf32>
    %387 = arith.mulf %386, %385 : vector<8x8xf32>
    %388 = arith.addf %382, %387 : vector<8x8xf32>
    %c2_196 = arith.constant 2 : index
    %c7_197 = arith.constant 7 : index
    %389 = memref.load %arg5[%c2_196, %c7_197] : memref<4x8xf32, #tpu.memory_space<smem>>
    %390 = vector.extract_strided_slice %17 {offsets = [7, 0, 0], sizes = [1, 8, 8], strides = [1, 1, 1]} : vector<8x8x8xf32> to vector<1x8x8xf32>
    %391 = vector.shape_cast %390 : vector<1x8x8xf32> to vector<8x8xf32>
    %392 = vector.broadcast %389 : f32 to vector<8x8xf32>
    %393 = arith.mulf %392, %391 : vector<8x8xf32>
    %394 = arith.addf %388, %393 : vector<8x8xf32>
    %cst_198 = arith.constant dense<0.000000e+00> : vector<8x16xf32>
    %395 = tpu.matmul %394, %7, %cst_198 {dimension_numbers = #tpu.dot_dimension_numbers<[1], [0], [0], [1], [0, 0, 1, 1], [], []>} : vector<8x8xf32>, vector<8x16xf32>, vector<8x16xf32> -> vector<8x16xf32>
    %cst_199 = arith.constant dense<0.000000e+00> : vector<16x16xf32>
    %396 = tpu.matmul %6, %395, %cst_199 {dimension_numbers = #tpu.dot_dimension_numbers<[1], [0], [0], [1], [0, 0, 1, 1], [], []>} : vector<16x8xf32>, vector<8x16xf32>, vector<16x16xf32> -> vector<16x16xf32>
    %c0_200 = arith.constant 0 : index
    %c2_201 = arith.constant 2 : index
    %c1_202 = arith.constant 1 : index
    %c0_203 = arith.constant 0 : index
    %c0_204 = arith.constant 0 : index
    %397 = vector.load %arg8[%c0_200, %c2_201, %c1_202, %c0_203, %c0_204] : memref<1x4x2x16x16xf32, #tpu.memory_space<vmem>>, vector<1x1x1x16x16xf32>
    %398 = vector.shape_cast %397 : vector<1x1x1x16x16xf32> to vector<16x16xf32>
    %399 = arith.addf %396, %398 : vector<16x16xf32>
    %c0_205 = arith.constant 0 : index
    %c2_206 = arith.constant 2 : index
    %c1_207 = arith.constant 1 : index
    %c0_208 = arith.constant 0 : index
    %c0_209 = arith.constant 0 : index
    %400 = vector.load %arg9[%c0_205, %c2_206, %c1_207, %c0_208, %c0_209] : memref<1x4x2x16x16xf32, #tpu.memory_space<vmem>>, vector<1x1x1x16x16xf32>
    %401 = vector.shape_cast %400 : vector<1x1x1x16x16xf32> to vector<16x16xf32>
    %402 = vector.shape_cast %399 : vector<16x16xf32> to vector<1x1x1x16x16xf32>
    tpu.vector_store %arg9[%c0_205, %c2_206, %c1_207, %c0_208, %c0_209], %402 {strides = array<i32>} : memref<1x4x2x16x16xf32, #tpu.memory_space<vmem>>, vector<1x1x1x16x16xf32>,
    %c3_210 = arith.constant 3 : index
    %c0_211 = arith.constant 0 : index
    %403 = memref.load %arg5[%c3_210, %c0_211] : memref<4x8xf32, #tpu.memory_space<smem>>
    %404 = vector.extract_strided_slice %17 {offsets = [0, 0, 0], sizes = [1, 8, 8], strides = [1, 1, 1]} : vector<8x8x8xf32> to vector<1x8x8xf32>
    %405 = vector.shape_cast %404 : vector<1x8x8xf32> to vector<8x8xf32>
    %406 = vector.broadcast %403 : f32 to vector<8x8xf32>
    %407 = arith.mulf %406, %405 : vector<8x8xf32>
    %c3_212 = arith.constant 3 : index
    %c1_213 = arith.constant 1 : index
    %408 = memref.load %arg5[%c3_212, %c1_213] : memref<4x8xf32, #tpu.memory_space<smem>>
    %409 = vector.extract_strided_slice %17 {offsets = [1, 0, 0], sizes = [1, 8, 8], strides = [1, 1, 1]} : vector<8x8x8xf32> to vector<1x8x8xf32>
    %410 = vector.shape_cast %409 : vector<1x8x8xf32> to vector<8x8xf32>
    %411 = vector.broadcast %408 : f32 to vector<8x8xf32>
    %412 = arith.mulf %411, %410 : vector<8x8xf32>
    %413 = arith.addf %407, %412 : vector<8x8xf32>
    %c3_214 = arith.constant 3 : index
    %c2_215 = arith.constant 2 : index
    %414 = memref.load %arg5[%c3_214, %c2_215] : memref<4x8xf32, #tpu.memory_space<smem>>
    %415 = vector.extract_strided_slice %17 {offsets = [2, 0, 0], sizes = [1, 8, 8], strides = [1, 1, 1]} : vector<8x8x8xf32> to vector<1x8x8xf32>
    %416 = vector.shape_cast %415 : vector<1x8x8xf32> to vector<8x8xf32>
    %417 = vector.broadcast %414 : f32 to vector<8x8xf32>
    %418 = arith.mulf %417, %416 : vector<8x8xf32>
    %419 = arith.addf %413, %418 : vector<8x8xf32>
    %c3_216 = arith.constant 3 : index
    %c3_217 = arith.constant 3 : index
    %420 = memref.load %arg5[%c3_216, %c3_217] : memref<4x8xf32, #tpu.memory_space<smem>>
    %421 = vector.extract_strided_slice %17 {offsets = [3, 0, 0], sizes = [1, 8, 8], strides = [1, 1, 1]} : vector<8x8x8xf32> to vector<1x8x8xf32>
    %422 = vector.shape_cast %421 : vector<1x8x8xf32> to vector<8x8xf32>
    %423 = vector.broadcast %420 : f32 to vector<8x8xf32>
    %424 = arith.mulf %423, %422 : vector<8x8xf32>
    %425 = arith.addf %419, %424 : vector<8x8xf32>
    %c3_218 = arith.constant 3 : index
    %c4_219 = arith.constant 4 : index
    %426 = memref.load %arg5[%c3_218, %c4_219] : memref<4x8xf32, #tpu.memory_space<smem>>
    %427 = vector.extract_strided_slice %17 {offsets = [4, 0, 0], sizes = [1, 8, 8], strides = [1, 1, 1]} : vector<8x8x8xf32> to vector<1x8x8xf32>
    %428 = vector.shape_cast %427 : vector<1x8x8xf32> to vector<8x8xf32>
    %429 = vector.broadcast %426 : f32 to vector<8x8xf32>
    %430 = arith.mulf %429, %428 : vector<8x8xf32>
    %431 = arith.addf %425, %430 : vector<8x8xf32>
    %c3_220 = arith.constant 3 : index
    %c5_221 = arith.constant 5 : index
    %432 = memref.load %arg5[%c3_220, %c5_221] : memref<4x8xf32, #tpu.memory_space<smem>>
    %433 = vector.extract_strided_slice %17 {offsets = [5, 0, 0], sizes = [1, 8, 8], strides = [1, 1, 1]} : vector<8x8x8xf32> to vector<1x8x8xf32>
    %434 = vector.shape_cast %433 : vector<1x8x8xf32> to vector<8x8xf32>
    %435 = vector.broadcast %432 : f32 to vector<8x8xf32>
    %436 = arith.mulf %435, %434 : vector<8x8xf32>
    %437 = arith.addf %431, %436 : vector<8x8xf32>
    %c3_222 = arith.constant 3 : index
    %c6_223 = arith.constant 6 : index
    %438 = memref.load %arg5[%c3_222, %c6_223] : memref<4x8xf32, #tpu.memory_space<smem>>
    %439 = vector.extract_strided_slice %17 {offsets = [6, 0, 0], sizes = [1, 8, 8], strides = [1, 1, 1]} : vector<8x8x8xf32> to vector<1x8x8xf32>
    %440 = vector.shape_cast %439 : vector<1x8x8xf32> to vector<8x8xf32>
    %441 = vector.broadcast %438 : f32 to vector<8x8xf32>
    %442 = arith.mulf %441, %440 : vector<8x8xf32>
    %443 = arith.addf %437, %442 : vector<8x8xf32>
    %c3_224 = arith.constant 3 : index
    %c7_225 = arith.constant 7 : index
    %444 = memref.load %arg5[%c3_224, %c7_225] : memref<4x8xf32, #tpu.memory_space<smem>>
    %445 = vector.extract_strided_slice %17 {offsets = [7, 0, 0], sizes = [1, 8, 8], strides = [1, 1, 1]} : vector<8x8x8xf32> to vector<1x8x8xf32>
    %446 = vector.shape_cast %445 : vector<1x8x8xf32> to vector<8x8xf32>
    %447 = vector.broadcast %444 : f32 to vector<8x8xf32>
    %448 = arith.mulf %447, %446 : vector<8x8xf32>
    %449 = arith.addf %443, %448 : vector<8x8xf32>
    %cst_226 = arith.constant dense<0.000000e+00> : vector<8x16xf32>
    %450 = tpu.matmul %449, %7, %cst_226 {dimension_numbers = #tpu.dot_dimension_numbers<[1], [0], [0], [1], [0, 0, 1, 1], [], []>} : vector<8x8xf32>, vector<8x16xf32>, vector<8x16xf32> -> vector<8x16xf32>
    %cst_227 = arith.constant dense<0.000000e+00> : vector<16x16xf32>
    %451 = tpu.matmul %6, %450, %cst_227 {dimension_numbers = #tpu.dot_dimension_numbers<[1], [0], [0], [1], [0, 0, 1, 1], [], []>} : vector<16x8xf32>, vector<8x16xf32>, vector<16x16xf32> -> vector<16x16xf32>
    %c0_228 = arith.constant 0 : index
    %c3_229 = arith.constant 3 : index
    %c1_230 = arith.constant 1 : index
    %c0_231 = arith.constant 0 : index
    %c0_232 = arith.constant 0 : index
    %452 = vector.load %arg8[%c0_228, %c3_229, %c1_230, %c0_231, %c0_232] : memref<1x4x2x16x16xf32, #tpu.memory_space<vmem>>, vector<1x1x1x16x16xf32>
    %453 = vector.shape_cast %452 : vector<1x1x1x16x16xf32> to vector<16x16xf32>
    %454 = arith.addf %451, %453 : vector<16x16xf32>
    %c0_233 = arith.constant 0 : index
    %c3_234 = arith.constant 3 : index
    %c1_235 = arith.constant 1 : index
    %c0_236 = arith.constant 0 : index
    %c0_237 = arith.constant 0 : index
    %455 = vector.load %arg9[%c0_233, %c3_234, %c1_235, %c0_236, %c0_237] : memref<1x4x2x16x16xf32, #tpu.memory_space<vmem>>, vector<1x1x1x16x16xf32>
    %456 = vector.shape_cast %455 : vector<1x1x1x16x16xf32> to vector<16x16xf32>
    %457 = vector.shape_cast %454 : vector<16x16xf32> to vector<1x1x1x16x16xf32>
    tpu.vector_store %arg9[%c0_233, %c3_234, %c1_235, %c0_236, %c0_237], %457 {strides = array<i32>} : memref<1x4x2x16x16xf32, #tpu.memory_space<vmem>>, vector<1x1x1x16x16xf32>,
    return
  }
  func.func @transform_0(%arg0: i32, %arg1: i32) -> (i32, i32, i32, i32, i32) {
    %c1_i32 = arith.constant 1 : i32
    %0 = arith.subi %arg1, %c1_i32 : i32
    %c0_i32 = arith.constant 0 : i32
    %1 = arith.maxsi %0, %c0_i32 : i32
    %c0_i32_0 = arith.constant 0 : i32
    %c0_i32_1 = arith.constant 0 : i32
    %c0_i32_2 = arith.constant 0 : i32
    %c0_i32_3 = arith.constant 0 : i32
    return %arg0, %c0_i32_0, %1, %c0_i32_1, %c0_i32_2 : i32, i32, i32, i32, i32
  }
  func.func @transform_1(%arg0: i32, %arg1: i32) -> (i32, i32, i32, i32, i32) {
    %c0_i32 = arith.constant 0 : i32
    %c0_i32_0 = arith.constant 0 : i32
    %c0_i32_1 = arith.constant 0 : i32
    %c0_i32_2 = arith.constant 0 : i32
    return %arg0, %c0_i32, %arg1, %c0_i32_0, %c0_i32_1 : i32, i32, i32, i32, i32
  }
  func.func @transform_2(%arg0: i32, %arg1: i32) -> (i32, i32, i32, i32, i32) {
    %c1_i32 = arith.constant 1 : i32
    %0 = arith.addi %arg1, %c1_i32 : i32
    %c7_i32 = arith.constant 7 : i32
    %1 = arith.minsi %0, %c7_i32 : i32
    %c0_i32 = arith.constant 0 : i32
    %c0_i32_0 = arith.constant 0 : i32
    %c0_i32_1 = arith.constant 0 : i32
    %c0_i32_2 = arith.constant 0 : i32
    return %arg0, %c0_i32, %1, %c0_i32_0, %c0_i32_1 : i32, i32, i32, i32, i32
  }
  func.func @transform_3(%arg0: i32, %arg1: i32) -> (i32, i32) {
    %c0_i32 = arith.constant 0 : i32
    %c0_i32_0 = arith.constant 0 : i32
    %c0_i32_1 = arith.constant 0 : i32
    return %c0_i32, %c0_i32_0 : i32, i32
  }
  func.func @transform_4(%arg0: i32, %arg1: i32) -> (i32, i32) {
    %c0_i32 = arith.constant 0 : i32
    %c0_i32_0 = arith.constant 0 : i32
    %c0_i32_1 = arith.constant 0 : i32
    return %c0_i32, %c0_i32_0 : i32, i32
  }
  func.func @transform_5(%arg0: i32, %arg1: i32) -> (i32, i32) {
    %c0_i32 = arith.constant 0 : i32
    %c0_i32_0 = arith.constant 0 : i32
    %c0_i32_1 = arith.constant 0 : i32
    return %c0_i32, %c0_i32_0 : i32, i32
  }
  func.func @transform_6(%arg0: i32, %arg1: i32) -> (i32, i32, i32, i32, i32) {
    %c0_i32 = arith.constant 0 : i32
    %c0_i32_0 = arith.constant 0 : i32
    %c0_i32_1 = arith.constant 0 : i32
    %c0_i32_2 = arith.constant 0 : i32
    return %arg0, %c0_i32, %arg1, %c0_i32_0, %c0_i32_1 : i32, i32, i32, i32, i32
  }
  func.func @transform_7(%arg0: i32, %arg1: i32) -> (i32, i32, i32, i32, i32) {
    %c0_i32 = arith.constant 0 : i32
    %c0_i32_0 = arith.constant 0 : i32
    %c0_i32_1 = arith.constant 0 : i32
    %c0_i32_2 = arith.constant 0 : i32
    return %arg0, %c0_i32, %arg1, %c0_i32_0, %c0_i32_1 : i32, i32, i32, i32, i32
  }
}

</mosaic_0001>

<llo_original>
// kernel: tpu_custom_call.1
$region0: #{tpu_custom_call.1}
  #allocation0 [shape = 'u32[]', space=smem, size = 0x4, offset = 0x4, fixed_abs, tag = 'smem constant byte address 0x4 - core index']
  #allocation1 [shape = 'u32[144,128]{1,0:T(1,128)}', space=vmem, size = 0x12000, scoped, tag = 'internal scratch']
  #allocation13 [shape = 's32[]', space=sflag, size = 0x4, offset = 0, fixed_abs, tag = 'sflag constant byte address 0x0 - dummy sync flag']
  #allocation15 [shape = 's32[]', space=sflag, size = 0x4, offset = 0, fixed_abs, tag = 'sflag constant byte address 0x0 - dummy sync flag']
  %s0 = inlined_call_operand.hbm [shape: f32[2,8,8,8,8], index: 0, kind: input, shape index: {}]
  %s1 = inlined_call_operand.hbm [shape: f32[2,8,8,8,8], index: 1, kind: input, shape index: {}]
  %s2 = inlined_call_operand.hbm [shape: f32[2,8,8,8,8], index: 2, kind: input, shape index: {}]
  %s3 = inlined_call_operand.vmem [shape: f32[4,8], index: 3, kind: input, shape index: {}]
  %s4 = inlined_call_operand.vmem [shape: f32[16,8], index: 4, kind: input, shape index: {}]
  %s5 = inlined_call_operand.vmem [shape: f32[8,16], index: 5, kind: input, shape index: {}]
  %s6 = inlined_call_operand.hbm [shape: f32[2,4,16,16,16], index: 6, kind: input, shape index: {}]
  %s7 = inlined_call_operand.hbm [shape: f32[2,4,16,16,16], index: 7, kind: output, shape index: {}]
  %s8 = sld [smem:[#allocation0]]
  $region81: #{tpu_custom_call.1} parent=0
    _
  %s10 = ssub.s32 1, %s8
  %s11 = scalar_select 0, %s10, %s8
  $region1: #{tpu_custom_call.1} parent=0
    #allocation2 [shape = 'u8[65536]{0}', space=vmem, size = 0x10000, scoped, tag = 'input window, operand 0']
    #allocation3 [shape = 's32[2]{0}', space=sflag, size = 0x8, scoped, tag = 'scoped memory for tpu_custom_call.1']
    #allocation4 [shape = 's32[2]{0}', space=sflag, size = 0x8, scoped, tag = 'scoped memory for tpu_custom_call.1']
    #allocation5 [shape = 's32[2]{0}', space=sflag, size = 0x8, scoped, tag = 'scoped memory for tpu_custom_call.1']
    #allocation6 [shape = 'u8[65536]{0}', space=vmem, size = 0x10000, scoped, tag = 'input window, operand 1']
    #allocation7 [shape = 's32[2]{0}', space=sflag, size = 0x8, scoped, tag = 'scoped memory for tpu_custom_call.1']
    #allocation8 [shape = 'u8[65536]{0}', space=vmem, size = 0x10000, scoped, tag = 'input window, operand 2']
    #allocation9 [shape = 'u8[2048]{0}', space=smem, size = 0x800, scoped, tag = 'input window, operand 3, single buffered']
    #allocation10 [shape = 'u8[131072]{0}', space=vmem, size = 0x20000, scoped, tag = 'input window, operand 6']
    #allocation11 [shape = 's32[2]{0}', space=sflag, size = 0x8, scoped, tag = 'scoped memory for tpu_custom_call.1']
    #allocation12 [shape = 'u8[131072]{0}', space=vmem, size = 0x20000, scoped, tag = 'output window, operand 0']
    %12 = vsyncpa [#allocation3], 0
    %s13 = scalar_lea.sflag [#allocation3], 1
    %14 = vsyncpa %s13, 0
    %15 = vsyncpa [#allocation7], 0
    %s16 = scalar_lea.sflag [#allocation7], 1
    %17 = vsyncpa %s16, 0
    %18 = vsyncpa [#allocation5], 0
    %19 = vsyncpa [#allocation11], 0
    %s20 = scalar_lea.sflag [#allocation11], 1
    %21 = vsyncpa %s20, 0
    %22 = vsyncpa [#allocation4], 0
    %s23 = scalar_lea.sflag [#allocation4], 1
    %24 = vsyncpa %s23, 0
    loop: start=0, step=1, limit=18
    $region2: #{tpu_custom_call.1} parent=1 // loop_pre_header
      _
    $region3: #{tpu_custom_call.1} parent=1 // loop_header
      %s26 = sphi 0, %s30
      %p27 = scmp.ge.s32.totalorder %s26, 18
      %s33 = sphi 0, %s45
      %s34 = sphi 0, %s41
      %s35 = sphi 0, %s33
      %s36 = sphi 0, %s34
      %s37 = sphi 0, %s35
      %s38 = sphi 0, %s36
      %s56 = sphi 0, %s58
      %s59 = sphi 0, %s56
      %s60 = sphi 0, %s59
      %s76 = sphi 0, %s60
      %s84 = sphi 0, %s86
      %s87 = sphi 0, %s84
      %s88 = sphi 0, %s87
      %s104 = sphi 0, %s88
      %s118 = sphi 0, %s120
      %s121 = sphi 0, %s118
      %s122 = sphi 0, %s121
      %s138 = sphi 0, %s122
      %s142 = sphi 0, %s142
      %s144 = sphi 0, %s142
      %s145 = sphi 0, %s144
      %s159 = sphi 0, %s145
      %s163 = sphi 0, %s163
      %s165 = sphi 0, %s163
      %s166 = sphi 0, %s165
      %s180 = sphi 0, %s166
      %s184 = sphi 0, %s184
      %s186 = sphi 0, %s184
      %s187 = sphi 0, %s186
      %s201 = sphi 0, %s187
      %s209 = sphi 0, %s211
      %s212 = sphi 0, %s209
      %s213 = sphi 0, %s212
      %s229 = sphi 0, %s213
      %s237 = sphi 0, %s239
      %s240 = sphi 0, %s237
      %s241 = sphi 0, %s240
      %s257 = sphi 0, %s241
    $region4: #{tpu_custom_call.1} parent=1 // loop_header_branch
      %29 = sbr.rel (%p27) target = $region8
    $region5: #{tpu_custom_call.1} parent=1 // loop_body
      %s31 = ssub.s32 %s26, 1
      %s32 = ssub.s32 %s26, 2
      %s39 = sadd.s32 1, %s34
      %p40 = scmp.ge.s32.totalorder %s39, 8
      %s41 = scalar_select %p40, 0, %s39
      %s42 = sadd.s32 1, %s33
      %s43 = scalar_select %p40, %s42, %s33
      %p44 = scmp.ge.s32.totalorder %s43, 2
      %s45 = scalar_select %p44, 0, %s43
      %s46 = ssub.s32 %s34, 1
      %p47 = scmp.gt.s32.totalorder %s46, 0
      %s48 = scalar_select %p47, %s46, 0
      %s49 = ssub.s32 %s41, 1
      %p50 = scmp.gt.s32.totalorder %s49, 0
      %s51 = scalar_select %p50, %s49, 0
      %s52 = ssub.s32 %s33, %s45
      %s53 = ssub.s32 %s48, %s51
      %s54 = sor.u32 %s52, %s53
      %p55 = scmp.eq.s32.totalorder %s54, 0
      %s57 = sadd.s32 %s56, 1
      %s58 = scalar_select %p55, %s56, %s57
      %p61 = pneg %p55
      %p62 = scmp.eq.s32.totalorder %s26, 15
      %p63 = por %p61, %p62
      %p64 = scmp.ne.s32.totalorder %s56, %s59
      %p65 = scmp.eq.s32.totalorder %s26, 0
      %p66 = por %p64, %p65
      %p67 = scmp.ne.s32.totalorder %s56, %s59
      %p68 = scmp.eq.s32.totalorder %s31, 15
      %p69 = por %p67, %p68
      %p70 = scmp.ne.s32.totalorder %s59, %s60
      %p71 = scmp.eq.s32.totalorder %s31, 0
      %p72 = por %p70, %p71
      %p73 = scmp.ne.s32.totalorder %s59, %s60
      %p74 = scmp.eq.s32.totalorder %s32, 15
      %p75 = por %p73, %p74
      %p77 = scmp.ne.s32.totalorder %s60, %s76
      %p78 = scmp.eq.s32.totalorder %s32, 0
      %p79 = por %p77, %p78
      %s80 = ssub.s32 %s33, %s45
      %s81 = ssub.s32 %s34, %s41
      %s82 = sor.u32 %s80, %s81
      %p83 = scmp.eq.s32.totalorder %s82, 0
      %s85 = sadd.s32 %s84, 1
      %s86 = scalar_select %p83, %s84, %s85
      %p89 = pneg %p83
      %p90 = scmp.eq.s32.totalorder %s26, 15
      %p91 = por %p89, %p90
      %p92 = scmp.ne.s32.totalorder %s84, %s87
      %p93 = scmp.eq.s32.totalorder %s26, 0
      %p94 = por %p92, %p93
      %p95 = scmp.ne.s32.totalorder %s84, %s87
      %p96 = scmp.eq.s32.totalorder %s31, 15
      %p97 = por %p95, %p96
      %p98 = scmp.ne.s32.totalorder %s87, %s88
      %p99 = scmp.eq.s32.totalorder %s31, 0
      %p100 = por %p98, %p99
      %p101 = scmp.ne.s32.totalorder %s87, %s88
      %p102 = scmp.eq.s32.totalorder %s32, 15
      %p103 = por %p101, %p102
      %p105 = scmp.ne.s32.totalorder %s88, %s104
      %p106 = scmp.eq.s32.totalorder %s32, 0
      %p107 = por %p105, %p106
      %s108 = sadd.s32 %s34, 1
      %p109 = scmp.lt.s32.totalorder %s108, 7
      %s110 = scalar_select %p109, %s108, 7
      %s111 = sadd.s32 %s41, 1
      %p112 = scmp.lt.s32.totalorder %s111, 7
      %s113 = scalar_select %p112, %s111, 7
      %s114 = ssub.s32 %s33, %s45
      %s115 = ssub.s32 %s110, %s113
      %s116 = sor.u32 %s114, %s115
      %p117 = scmp.eq.s32.totalorder %s116, 0
      %s119 = sadd.s32 %s118, 1
      %s120 = scalar_select %p117, %s118, %s119
      %p123 = pneg %p117
      %p124 = scmp.eq.s32.totalorder %s26, 15
      %p125 = por %p123, %p124
      %p126 = scmp.ne.s32.totalorder %s118, %s121
      %p127 = scmp.eq.s32.totalorder %s26, 0
      %p128 = por %p126, %p127
      %p129 = scmp.ne.s32.totalorder %s118, %s121
      %p130 = scmp.eq.s32.totalorder %s31, 15
      %p131 = por %p129, %p130
      %p132 = scmp.ne.s32.totalorder %s121, %s122
      %p133 = scmp.eq.s32.totalorder %s31, 0
      %p134 = por %p132, %p133
      %p135 = scmp.ne.s32.totalorder %s121, %s122
      %p136 = scmp.eq.s32.totalorder %s32, 15
      %p137 = por %p135, %p136
      %p139 = scmp.ne.s32.totalorder %s122, %s138
      %p140 = scmp.eq.s32.totalorder %s32, 0
      %p141 = por %p139, %p140
      %s143 = sadd.s32 %s142, 1
      %p146 = scmp.eq.s32.totalorder %s26, 15
      %p147 = scmp.ne.s32.totalorder %s142, %s144
      %p148 = scmp.eq.s32.totalorder %s26, 0
      %p149 = por %p147, %p148
      %p150 = scmp.ne.s32.totalorder %s142, %s144
      %p151 = scmp.eq.s32.totalorder %s31, 15
      %p152 = por %p150, %p151
      %p153 = scmp.ne.s32.totalorder %s144, %s145
      %p154 = scmp.eq.s32.totalorder %s31, 0
      %p155 = por %p153, %p154
      %p156 = scmp.ne.s32.totalorder %s144, %s145
      %p157 = scmp.eq.s32.totalorder %s32, 15
      %p158 = por %p156, %p157
      %p160 = scmp.ne.s32.totalorder %s145, %s159
      %p161 = scmp.eq.s32.totalorder %s32, 0
      %p162 = por %p160, %p161
      %s164 = sadd.s32 %s163, 1
      %p167 = scmp.eq.s32.totalorder %s26, 15
      %p168 = scmp.ne.s32.totalorder %s163, %s165
      %p169 = scmp.eq.s32.totalorder %s26, 0
      %p170 = por %p168, %p169
      %p171 = scmp.ne.s32.totalorder %s163, %s165
      %p172 = scmp.eq.s32.totalorder %s31, 15
      %p173 = por %p171, %p172
      %p174 = scmp.ne.s32.totalorder %s165, %s166
      %p175 = scmp.eq.s32.totalorder %s31, 0
      %p176 = por %p174, %p175
      %p177 = scmp.ne.s32.totalorder %s165, %s166
      %p178 = scmp.eq.s32.totalorder %s32, 15
      %p179 = por %p177, %p178
      %p181 = scmp.ne.s32.totalorder %s166, %s180
      %p182 = scmp.eq.s32.totalorder %s32, 0
      %p183 = por %p181, %p182
      %s185 = sadd.s32 %s184, 1
      %p188 = scmp.eq.s32.totalorder %s26, 15
      %p189 = scmp.ne.s32.totalorder %s184, %s186
      %p190 = scmp.eq.s32.totalorder %s26, 0
      %p191 = por %p189, %p190
      %p192 = scmp.ne.s32.totalorder %s184, %s186
      %p193 = scmp.eq.s32.totalorder %s31, 15
      %p194 = por %p192, %p193
      %p195 = scmp.ne.s32.totalorder %s186, %s187
      %p196 = scmp.eq.s32.totalorder %s31, 0
      %p197 = por %p195, %p196
      %p198 = scmp.ne.s32.totalorder %s186, %s187
      %p199 = scmp.eq.s32.totalorder %s32, 15
      %p200 = por %p198, %p199
      %p202 = scmp.ne.s32.totalorder %s187, %s201
      %p203 = scmp.eq.s32.totalorder %s32, 0
      %p204 = por %p202, %p203
      %s205 = ssub.s32 %s33, %s45
      %s206 = ssub.s32 %s34, %s41
      %s207 = sor.u32 %s205, %s206
      %p208 = scmp.eq.s32.totalorder %s207, 0
      %s210 = sadd.s32 %s209, 1
      %s211 = scalar_select %p208, %s209, %s210
      %p214 = pneg %p208
      %p215 = scmp.eq.s32.totalorder %s26, 15
      %p216 = por %p214, %p215
      %p217 = scmp.ne.s32.totalorder %s209, %s212
      %p218 = scmp.eq.s32.totalorder %s26, 0
      %p219 = por %p217, %p218
      %p220 = scmp.ne.s32.totalorder %s209, %s212
      %p221 = scmp.eq.s32.totalorder %s31, 15
      %p222 = por %p220, %p221
      %p223 = scmp.ne.s32.totalorder %s212, %s213
      %p224 = scmp.eq.s32.totalorder %s31, 0
      %p225 = por %p223, %p224
      %p226 = scmp.ne.s32.totalorder %s212, %s213
      %p227 = scmp.eq.s32.totalorder %s32, 15
      %p228 = por %p226, %p227
      %p230 = scmp.ne.s32.totalorder %s213, %s229
      %p231 = scmp.eq.s32.totalorder %s32, 0
      %p232 = por %p230, %p231
      %s233 = ssub.s32 %s33, %s45
      %s234 = ssub.s32 %s34, %s41
      %s235 = sor.u32 %s233, %s234
      %p236 = scmp.eq.s32.totalorder %s235, 0
      %s238 = sadd.s32 %s237, 1
      %s239 = scalar_select %p236, %s237, %s238
      %p242 = pneg %p236
      %p243 = scmp.eq.s32.totalorder %s26, 15
      %p244 = por %p242, %p243
      %p245 = scmp.ne.s32.totalorder %s237, %s240
      %p246 = scmp.eq.s32.totalorder %s26, 0
      %p247 = por %p245, %p246
      %p248 = scmp.ne.s32.totalorder %s237, %s240
      %p249 = scmp.eq.s32.totalorder %s31, 15
      %p250 = por %p248, %p249
      %p251 = scmp.ne.s32.totalorder %s240, %s241
      %p252 = scmp.eq.s32.totalorder %s31, 0
      %p253 = por %p251, %p252
      %p254 = scmp.ne.s32.totalorder %s240, %s241
      %p255 = scmp.eq.s32.totalorder %s32, 15
      %p256 = por %p254, %p255
      %p258 = scmp.ne.s32.totalorder %s241, %s257
      %p259 = scmp.eq.s32.totalorder %s32, 0
      %p260 = por %p258, %p259
      %p261 = scmp.le.s32.totalorder 1, %s26
      %p262 = scmp.lt.s32.totalorder %s26, 17
      %p263 = pnand %p261, %p262
      %p264 = pneg %p263
      // Predicated region
      $region9: #{tpu_custom_call.1} parent=5 // pred_check
        _
      $region10: #{tpu_custom_call.1} parent=5 // pred_check_branch
        %266 = sbr.rel (%p263) target = $region12
      $region11: #{tpu_custom_call.1} parent=5 // pred_region
        %s267 = ssub.s32 %s26, 1
        // Predicated region
        $region13: #{tpu_custom_call.1} parent=11 // pred_check
          %p268 = pneg %p155
        $region14: #{tpu_custom_call.1} parent=11 // pred_check_branch
          %270 = sbr.rel (%p268) target = $region16
        $region15: #{tpu_custom_call.1} parent=11 // pred_region
          %s272 = ssub.s32 64, 64
          %273 = vsyncadd [#allocation5], %s272
          %s275 = sshll.u32 %s3, 4
          %s276 = int_to_ptr.vmem [resolvable:$true] %s275
          %278 = dma.vmem_to_smem %s276, 64, [#allocation9], [#allocation5]
        $region16: #{tpu_custom_call.1} parent=11 // pred_fallthru
          _
        // Predicated region
        $region17: #{tpu_custom_call.1} parent=11 // pred_check
          %p279 = pneg %p176
        $region18: #{tpu_custom_call.1} parent=11 // pred_check_branch
          %281 = sbr.rel (%p279) target = $region20
        $region19: #{tpu_custom_call.1} parent=11 // pred_region
          _
        $region20: #{tpu_custom_call.1} parent=11 // pred_fallthru
          _
        // Predicated region
        $region21: #{tpu_custom_call.1} parent=11 // pred_check
          %p282 = pneg %p197
        $region22: #{tpu_custom_call.1} parent=11 // pred_check_branch
          %284 = sbr.rel (%p282) target = $region24
        $region23: #{tpu_custom_call.1} parent=11 // pred_region
          _
        $region24: #{tpu_custom_call.1} parent=11 // pred_fallthru
          _
      $region12: #{tpu_custom_call.1} parent=5 // pred_fallthru
        _
      %p285 = scmp.lt.s32.totalorder %s26, 16
      // Predicated region
      $region25: #{tpu_custom_call.1} parent=5 // pred_check
        %p286 = pneg %p285
      $region26: #{tpu_custom_call.1} parent=5 // pred_check_branch
        %288 = sbr.rel (%p286) target = $region28
      $region27: #{tpu_custom_call.1} parent=5 // pred_region
        // Predicated region
        $region29: #{tpu_custom_call.1} parent=27 // pred_check
          %p289 = pneg %p66
        $region30: #{tpu_custom_call.1} parent=27 // pred_check_branch
          %291 = sbr.rel (%p289) target = $region32
        $region31: #{tpu_custom_call.1} parent=27 // pred_region
          %s292 = sand.u32 %s56, 1
          %s293 = scalar_lea.sflag [#allocation3], %s292
          %s294 = sand.u32 %s56, 1
          %s295 = smul.addr %s294, 64
          %s296 = scalar_lea.vmem [#allocation2], %s295
          %s297 = ssub.s32 %s34, 1
          %p298 = scmp.gt.s32.totalorder %s297, 0
          %s299 = scalar_select %p298, %s297, 0
          %s301 = ssub.s32 1024, 1024
          %302 = vsyncadd %s293, %s301
          %s303 = smul.addr %s33, 64
          %s304 = sadd.s32 %s299, %s303
          %s305 = smul.addr %s304, 128
          %s306 = scalar_lea.hbm %s0, %s305
          %s307 = sshll.u32 %s296, 4
          %s308 = int_to_ptr.vmem [resolvable:$true] %s307
          %313 = dma.hbm_to_vmem [thread:$0]  %s306, 1024, %s308, %s293, 1024, 128, 8
        $region32: #{tpu_custom_call.1} parent=27 // pred_fallthru
          _
        // Predicated region
        $region33: #{tpu_custom_call.1} parent=27 // pred_check
          %p314 = pneg %p94
        $region34: #{tpu_custom_call.1} parent=27 // pred_check_branch
          %316 = sbr.rel (%p314) target = $region36
        $region35: #{tpu_custom_call.1} parent=27 // pred_region
          %s317 = sand.u32 %s26, 1
          %s318 = scalar_lea.sflag [#allocation7], %s317
          %s319 = sand.u32 %s84, 1
          %s320 = smul.addr %s319, 64
          %s321 = scalar_lea.vmem [#allocation6], %s320
          %s323 = ssub.s32 1024, 1024
          %324 = vsyncadd %s318, %s323
          %s325 = smul.addr %s33, 64
          %s326 = sadd.s32 %s34, %s325
          %s327 = smul.addr %s326, 128
          %s328 = scalar_lea.hbm %s1, %s327
          %s329 = sshll.u32 %s321, 4
          %s330 = int_to_ptr.vmem [resolvable:$true] %s329
          %335 = dma.hbm_to_vmem [thread:$0]  %s328, 1024, %s330, %s318, 1024, 128, 8
        $region36: #{tpu_custom_call.1} parent=27 // pred_fallthru
          _
        // Predicated region
        $region37: #{tpu_custom_call.1} parent=27 // pred_check
          %p336 = pneg %p128
        $region38: #{tpu_custom_call.1} parent=27 // pred_check_branch
          %338 = sbr.rel (%p336) target = $region40
        $region39: #{tpu_custom_call.1} parent=27 // pred_region
          %s339 = sand.u32 %s26, 1
          %s340 = scalar_lea.sflag [#allocation7], %s339
          %s341 = sand.u32 %s118, 1
          %s342 = smul.addr %s341, 64
          %s343 = scalar_lea.vmem [#allocation8], %s342
          %s344 = sadd.s32 %s34, 1
          %p345 = scmp.lt.s32.totalorder %s344, 7
          %s346 = scalar_select %p345, %s344, 7
          %s348 = ssub.s32 1024, 1024
          %349 = vsyncadd %s340, %s348
          %s350 = smul.addr %s33, 64
          %s351 = sadd.s32 %s346, %s350
          %s352 = smul.addr %s351, 128
          %s353 = scalar_lea.hbm %s2, %s352
          %s354 = sshll.u32 %s343, 4
          %s355 = int_to_ptr.vmem [resolvable:$true] %s354
          %360 = dma.hbm_to_vmem [thread:$0]  %s353, 1024, %s355, %s340, 1024, 128, 8
        $region40: #{tpu_custom_call.1} parent=27 // pred_fallthru
          _
        // Predicated region
        $region41: #{tpu_custom_call.1} parent=27 // pred_check
          %p361 = pneg %p219
        $region42: #{tpu_custom_call.1} parent=27 // pred_check_branch
          %363 = sbr.rel (%p361) target = $region44
        $region43: #{tpu_custom_call.1} parent=27 // pred_region
          #allocation14 [shape = 'u32[6]{0}', space=smem, size = 0x18, scoped, tag = 'DMA stride descriptor']
          %s364 = sand.u32 %s209, 1
          %s365 = scalar_lea.sflag [#allocation11], %s364
          %s366 = sand.u32 %s209, 1
          %s367 = smul.addr %s366, 128
          %s368 = scalar_lea.vmem [#allocation10], %s367
          %s369 = smul.u32 2, %s34
          %s371 = ssub.s32 2048, 2048
          %372 = vsyncadd %s365, %s371
          %s373 = smul.addr %s369, 2
          %s374 = smul.addr %s33, 128
          %s375 = sadd.s32 %s373, %s374
          %s376 = smul.addr %s375, 128
          %s377 = scalar_lea.hbm %s6, %s376
          %s379 = sshll.u32 1, 14
          %s380 = sxor.u32 4294967295, %s379
          %s382 = sld [smem:[#allocation0]]
          %s383 = sadd.s32 2, %s382
          %s385 = sshll.u32 7, 26
          %s386 = sxor.u32 4294967295, %s385
          %s387 = sand.u32 0, %s386
          %s388 = sshll.u32 %s383, 26
          %s389 = sor.u32 %s387, %s388
          %s390 = sshll.u32 %s368, 4
          %s391 = int_to_ptr.vmem [resolvable:$true] %s390
          %397 = sst [smem:[#allocation14]] 4096
          %s398 = scalar_lea.smem [#allocation14], 1
          %399 = sst [smem:[%s398]] 512
          %s400 = scalar_lea.smem [#allocation14], 2
          %401 = sst [smem:[%s400]] 4
          %s402 = scalar_lea.smem [#allocation14], 3
          %403 = sst [smem:[%s402]] 128
          %s404 = scalar_lea.smem [#allocation14], 4
          %405 = sst [smem:[%s404]] 128
          %s406 = scalar_lea.smem [#allocation14], 5
          %407 = sst [smem:[%s406]] 8
          %409 = dma.general %s377, 2048, %s391, %s365, [#allocation13], [#allocation14], %s389, 0
        $region44: #{tpu_custom_call.1} parent=27 // pred_fallthru
          _
      $region28: #{tpu_custom_call.1} parent=5 // pred_fallthru
        _
      %p410 = scmp.le.s32.totalorder 1, %s26
      %p411 = scmp.lt.s32.totalorder %s26, 17
      %p412 = pnand %p410, %p411
      %p413 = pneg %p412
      // Predicated region
      $region45: #{tpu_custom_call.1} parent=5 // pred_check
        _
      $region46: #{tpu_custom_call.1} parent=5 // pred_check_branch
        %415 = sbr.rel (%p412) target = $region48
      $region47: #{tpu_custom_call.1} parent=5 // pred_region
        %s416 = ssub.s32 %s26, 1
        %s417 = sand.u32 %s59, 1
        %s418 = scalar_lea.sflag [#allocation3], %s417
        %s419 = sand.u32 %s59, 1
        %s420 = smul.addr %s419, 64
        %s421 = scalar_lea.vmem [#allocation2], %s420
        // Predicated region
        $region49: #{tpu_custom_call.1} parent=47 // pred_check
          %p422 = pneg %p72
        $region50: #{tpu_custom_call.1} parent=47 // pred_check_branch
          %424 = sbr.rel (%p422) target = $region52
        $region51: #{tpu_custom_call.1} parent=47 // pred_region
          %425 = dma.done %s418, 1024
        $region52: #{tpu_custom_call.1} parent=47 // pred_fallthru
          _
        %s426 = sand.u32 %s31, 1
        %s427 = scalar_lea.sflag [#allocation7], %s426
        %s428 = sand.u32 %s87, 1
        %s429 = smul.addr %s428, 64
        %s430 = scalar_lea.vmem [#allocation6], %s429
        // Predicated region
        $region53: #{tpu_custom_call.1} parent=47 // pred_check
          %p431 = pneg %p100
        $region54: #{tpu_custom_call.1} parent=47 // pred_check_branch
          %433 = sbr.rel (%p431) target = $region56
        $region55: #{tpu_custom_call.1} parent=47 // pred_region
          %434 = dma.done %s427, 1024
        $region56: #{tpu_custom_call.1} parent=47 // pred_fallthru
          _
        %s435 = sand.u32 %s31, 1
        %s436 = scalar_lea.sflag [#allocation7], %s435
        %s437 = sand.u32 %s121, 1
        %s438 = smul.addr %s437, 64
        %s439 = scalar_lea.vmem [#allocation8], %s438
        // Predicated region
        $region57: #{tpu_custom_call.1} parent=47 // pred_check
          %p440 = pneg %p134
        $region58: #{tpu_custom_call.1} parent=47 // pred_check_branch
          %442 = sbr.rel (%p440) target = $region60
        $region59: #{tpu_custom_call.1} parent=47 // pred_region
          %443 = dma.done %s436, 1024
        $region60: #{tpu_custom_call.1} parent=47 // pred_fallthru
          _
        // Predicated region
        $region61: #{tpu_custom_call.1} parent=47 // pred_check
          %p444 = pneg %p155
        $region62: #{tpu_custom_call.1} parent=47 // pred_check_branch
          %446 = sbr.rel (%p444) target = $region64
        $region63: #{tpu_custom_call.1} parent=47 // pred_region
          %447 = dma.done [#allocation5], 64
        $region64: #{tpu_custom_call.1} parent=47 // pred_fallthru
          _
        %s448 = sand.u32 %s212, 1
        %s449 = scalar_lea.sflag [#allocation11], %s448
        %s450 = sand.u32 %s212, 1
        %s451 = smul.addr %s450, 128
        %s452 = scalar_lea.vmem [#allocation10], %s451
        // Predicated region
        $region65: #{tpu_custom_call.1} parent=47 // pred_check
          %p453 = pneg %p225
        $region66: #{tpu_custom_call.1} parent=47 // pred_check_branch
          %455 = sbr.rel (%p453) target = $region68
        $region67: #{tpu_custom_call.1} parent=47 // pred_region
          %456 = dma.done %s449, 2048
        $region68: #{tpu_custom_call.1} parent=47 // pred_fallthru
          _
        %457 = sfence
        %s458 = sand.u32 %s59, 1
        %s459 = scalar_lea.sflag [#allocation3], %s458
        %s460 = sand.u32 %s59, 1
        %s461 = smul.addr %s460, 64
        %s462 = scalar_lea.vmem [#allocation2], %s461
        %p463 = pneg %p72
        %p464 = pneg %p69
        %s465 = sand.u32 %s31, 1
        %s466 = scalar_lea.sflag [#allocation7], %s465
        %s467 = sand.u32 %s87, 1
        %s468 = smul.addr %s467, 64
        %s469 = scalar_lea.vmem [#allocation6], %s468
        %p470 = pneg %p100
        %p471 = pneg %p97
        %s472 = sand.u32 %s31, 1
        %s473 = scalar_lea.sflag [#allocation7], %s472
        %s474 = sand.u32 %s121, 1
        %s475 = smul.addr %s474, 64
        %s476 = scalar_lea.vmem [#allocation8], %s475
        %p477 = pneg %p134
        %p478 = pneg %p131
        %p479 = pneg %p155
        %p480 = pneg %p152
        %p481 = pneg %p176
        %p482 = pneg %p173
        %p483 = pneg %p197
        %p484 = pneg %p194
        %s485 = sand.u32 %s212, 1
        %s486 = scalar_lea.sflag [#allocation11], %s485
        %s487 = sand.u32 %s212, 1
        %s488 = smul.addr %s487, 128
        %s489 = scalar_lea.vmem [#allocation10], %s488
        %p490 = pneg %p225
        %p491 = pneg %p222
        %p492 = pneg %p253
        %p493 = pneg %p250
        %s494 = sand.u32 %s240, 1
        %s495 = scalar_lea.sflag [#allocation4], %s494
        %s496 = sand.u32 %s240, 1
        %s497 = smul.addr %s496, 128
        %s498 = scalar_lea.vmem [#allocation12], %s497
        %s499 = ssub.s32 %s36, 1
        %p500 = scmp.gt.s32.totalorder %s499, 0
        %s501 = scalar_select %p500, %s499, 0
        %s502 = sadd.s32 %s36, 1
        %p503 = scmp.lt.s32.totalorder %s502, 7
        %s504 = scalar_select %p503, %s502, 7
        %s505 = smul.u32 2, %s36
        %s506 = smul.u32 2, %s36
        %v507 = vld [vmem:[%s421] sm:$0xff]
        %v508 = vld [vmem:[%s421 + $0x8] sm:$0xff]
        %v509 = vld [vmem:[%s421 + $0x10] sm:$0xff]
        %v510 = vld [vmem:[%s421 + $0x18] sm:$0xff]
        %v511 = vld [vmem:[%s421 + $0x20] sm:$0xff]
        %v512 = vld [vmem:[%s421 + $0x28] sm:$0xff]
        %v513 = vld [vmem:[%s421 + $0x30] sm:$0xff]
        %v514 = vld [vmem:[%s421 + $0x38] sm:$0xff]
        %v515 = vld [vmem:[%s430] sm:$0xff]
        %v516 = vld [vmem:[%s430 + $0x8] sm:$0xff]
        %v517 = vld [vmem:[%s430 + $0x10] sm:$0xff]
        %v518 = vld [vmem:[%s430 + $0x18] sm:$0xff]
        %v519 = vld [vmem:[%s430 + $0x20] sm:$0xff]
        %v520 = vld [vmem:[%s430 + $0x28] sm:$0xff]
        %v521 = vld [vmem:[%s430 + $0x30] sm:$0xff]
        %v522 = vld [vmem:[%s430 + $0x38] sm:$0xff]
        %v523 = vld [vmem:[%s439] sm:$0xff]
        %v524 = vld [vmem:[%s439 + $0x8] sm:$0xff]
        %v525 = vld [vmem:[%s439 + $0x10] sm:$0xff]
        %v526 = vld [vmem:[%s439 + $0x18] sm:$0xff]
        %v527 = vld [vmem:[%s439 + $0x20] sm:$0xff]
        %v528 = vld [vmem:[%s439 + $0x28] sm:$0xff]
        %v529 = vld [vmem:[%s439 + $0x30] sm:$0xff]
        %v530 = vld [vmem:[%s439 + $0x38] sm:$0xff]
        %v531 = vld [vmem:[%s4] sm:$0xff]
        %v532 = vld [vmem:[%s4 + $0x8] sm:$0xff]
        %v533 = vld [vmem:[%s5] sm:$0xff]
        %v534 = vmul.f32 %v507, 0.25
        %v535 = vmul.f32 %v508, 0.25
        %v536 = vmul.f32 %v509, 0.25
        %v537 = vmul.f32 %v510, 0.25
        %v538 = vmul.f32 %v511, 0.25
        %v539 = vmul.f32 %v512, 0.25
        %v540 = vmul.f32 %v513, 0.25
        %v541 = vmul.f32 %v514, 0.25
        %v542 = vmul.f32 %v515, 0.75
        %v543 = vmul.f32 %v516, 0.75
        %v544 = vmul.f32 %v517, 0.75
        %v545 = vmul.f32 %v518, 0.75
        %v546 = vmul.f32 %v519, 0.75
        %v547 = vmul.f32 %v520, 0.75
        %v548 = vmul.f32 %v521, 0.75
        %v549 = vmul.f32 %v522, 0.75
        %v550 = vadd.f32 %v534, %v542
        %v551 = vadd.f32 %v535, %v543
        %v552 = vadd.f32 %v536, %v544
        %v553 = vadd.f32 %v537, %v545
        %v554 = vadd.f32 %v538, %v546
        %v555 = vadd.f32 %v539, %v547
        %v556 = vadd.f32 %v540, %v548
        %v557 = vadd.f32 %v541, %v549
        %v558 = vmul.f32 %v523, 0.25
        %v559 = vmul.f32 %v524, 0.25
        %v560 = vmul.f32 %v525, 0.25
        %v561 = vmul.f32 %v526, 0.25
        %v562 = vmul.f32 %v527, 0.25
        %v563 = vmul.f32 %v528, 0.25
        %v564 = vmul.f32 %v529, 0.25
        %v565 = vmul.f32 %v530, 0.25
        %v566 = vadd.f32 %v542, %v558
        %v567 = vadd.f32 %v543, %v559
        %v568 = vadd.f32 %v544, %v560
        %v569 = vadd.f32 %v545, %v561
        %v570 = vadd.f32 %v546, %v562
        %v571 = vadd.f32 %v547, %v563
        %v572 = vadd.f32 %v548, %v564
        %v573 = vadd.f32 %v549, %v565
        %s574 = sld [smem:[#allocation9]]
        %v575 = vstv %s574
        %v576 = vmul.f32 %v575, %v550
        %s577 = sld [smem:[#allocation9 + $0x1]]
        %v578 = vstv %s577
        %v579 = vmul.f32 %v578, %v551
        %v580 = vadd.f32 %v576, %v579
        %s581 = sld [smem:[#allocation9 + $0x2]]
        %v582 = vstv %s581
        %v583 = vmul.f32 %v582, %v552
        %v584 = vadd.f32 %v580, %v583
        %s585 = sld [smem:[#allocation9 + $0x3]]
        %v586 = vstv %s585
        %v587 = vmul.f32 %v586, %v553
        %v588 = vadd.f32 %v584, %v587
        %s589 = sld [smem:[#allocation9 + $0x4]]
        %v590 = vstv %s589
        %v591 = vmul.f32 %v590, %v554
        %v592 = vadd.f32 %v588, %v591
        %s593 = sld [smem:[#allocation9 + $0x5]]
        %v594 = vstv %s593
        %v595 = vmul.f32 %v594, %v555
        %v596 = vadd.f32 %v592, %v595
        %s597 = sld [smem:[#allocation9 + $0x6]]
        %v598 = vstv %s597
        %v599 = vmul.f32 %v598, %v556
        %v600 = vadd.f32 %v596, %v599
        %s601 = sld [smem:[#allocation9 + $0x7]]
        %v602 = vstv %s601
        %v603 = vmul.f32 %v602, %v557
        %v604 = vadd.f32 %v600, %v603
        %vm605 = vcmask 64512
        %v607 = vsel %vm605, %v604, 0
        %609 = vmatprep.subr.mxu0 0.0
        %610 = vmatpush1.msra.mxu0 %v533
        %611 = vmatprep.subr.mxu0 0.0
        %612 = vmatpush1.msra.mxu0 0.0
        %613 = vmatprep.subr.mxu0 0.0
        %614 = vmatpush1.msra.mxu0 0.0
        %615 = vmatprep.subr.mxu0 0.0
        %616 = vmatpush1.msra.mxu0 0.0
        %617 = vmatprep.subr.mxu0 0.0
        %618 = vmatpush1.msra.mxu0 0.0
        %619 = vmatprep.subr.mxu0 0.0
        %620 = vmatpush1.msra.mxu0 0.0
        %621 = vmatprep.subr.mxu0 0.0
        %622 = vmatpush1.msra.mxu0 0.0
        %623 = vmatprep.subr.mxu0 0.0
        %624 = vmatpush1.msra.mxu0 0.0
        %625 = vmatprep.subr.mxu0 0.0
        %626 = vmatpush1.msra.mxu0 0.0
        %627 = vmatprep.subr.mxu0 0.0
        %628 = vmatpush1.msra.mxu0 0.0
        %629 = vmatprep.subr.mxu0 0.0
        %630 = vmatpush1.msra.mxu0 0.0
        %631 = vmatprep.subr.mxu0 0.0
        %632 = vmatpush1.msra.mxu0 0.0
        %633 = vmatprep.subr.mxu0 0.0
        %634 = vmatpush1.msra.mxu0 0.0
        %635 = vmatprep.subr.mxu0 0.0
        %636 = vmatpush1.msra.mxu0 0.0
        %637 = vmatprep.subr.mxu0 0.0
        %638 = vmatpush1.msra.mxu0 0.0
        %639 = vmatprep.subr.mxu0 0.0
        %640 = vmatpush1.msra.mxu0 0.0
        %641 = vmatprep.subr.mxu0 0.0
        %642 = vmatpush1.msra.mxu0 0.0
        %643 = vmatprep.subr.mxu0 0.0
        %644 = vmatpush1.msra.mxu0 0.0
        %645 = vmatprep.subr.mxu0 0.0
        %646 = vmatpush1.msra.mxu0 0.0
        %647 = vmatprep.subr.mxu0 0.0
        %648 = vmatpush1.msra.mxu0 0.0
        %649 = vmatprep.subr.mxu0 0.0
        %650 = vmatpush1.msra.mxu0 0.0
        %651 = vmatprep.subr.mxu0 0.0
        %652 = vmatpush1.msra.mxu0 0.0
        %653 = vmatprep.subr.mxu0 0.0
        %654 = vmatpush1.msra.mxu0 0.0
        %655 = vmatprep.subr.mxu0 0.0
        %656 = vmatpush1.msra.mxu0 0.0
        %657 = vmatprep.subr.mxu0 0.0
        %658 = vmatpush1.msra.mxu0 0.0
        %659 = vmatprep.subr.mxu0 0.0
        %660 = vmatpush1.msra.mxu0 0.0
        %661 = vmatprep.subr.mxu0 0.0
        %662 = vmatpush1.msra.mxu0 0.0
        %663 = vmatprep.subr.mxu0 0.0
        %664 = vmatpush1.msra.mxu0 0.0
        %665 = vmatprep.subr.mxu0 0.0
        %666 = vmatpush1.msra.mxu0 0.0
        %667 = vmatprep.subr.mxu0 0.0
        %668 = vmatpush1.msra.mxu0 0.0
        %669 = vmatprep.subr.mxu0 0.0
        %670 = vmatpush1.msra.mxu0 0.0
        %671 = vmatprep.subr.mxu0 0.0
        %672 = vmatpush1.msra.mxu0 0.0
        %673 = vmatprep.mubr.f32.mxu0 0.0
        %674 = vmatmul.mubr.f32.gmra.mrb[0].mxu0 %v607
        %v675 = vpop.f32.mrb[0].mxu0
        %v676 = vadd.f32 0.0, %v675
        %v677 = vpop.f32.mrb[0].mxu0
        %678 = vdwg.mxu0
        %v679 = vld [vmem:[%s452] sm:$0xff]
        %v680 = vld [vmem:[%s452 + $0x8] sm:$0xff]
        %v682 = vsel %vm605, %v531, 0
        %v685 = vsel %vm605, %v532, 0
        %687 = vmatprep.subr.mxu0 0.0
        %688 = vmatpush1.msra.mxu0 %v676
        %689 = vmatprep.subr.mxu0 0.0
        %690 = vmatpush1.msra.mxu0 0.0
        %691 = vmatprep.subr.mxu0 0.0
        %692 = vmatpush1.msra.mxu0 0.0
        %693 = vmatprep.subr.mxu0 0.0
        %694 = vmatpush1.msra.mxu0 0.0
        %695 = vmatprep.subr.mxu0 0.0
        %696 = vmatpush1.msra.mxu0 0.0
        %697 = vmatprep.subr.mxu0 0.0
        %698 = vmatpush1.msra.mxu0 0.0
        %699 = vmatprep.subr.mxu0 0.0
        %700 = vmatpush1.msra.mxu0 0.0
        %701 = vmatprep.subr.mxu0 0.0
        %702 = vmatpush1.msra.mxu0 0.0
        %703 = vmatprep.subr.mxu0 0.0
        %704 = vmatpush1.msra.mxu0 0.0
        %705 = vmatprep.subr.mxu0 0.0
        %706 = vmatpush1.msra.mxu0 0.0
        %707 = vmatprep.subr.mxu0 0.0
        %708 = vmatpush1.msra.mxu0 0.0
        %709 = vmatprep.subr.mxu0 0.0
        %710 = vmatpush1.msra.mxu0 0.0
        %711 = vmatprep.subr.mxu0 0.0
        %712 = vmatpush1.msra.mxu0 0.0
        %713 = vmatprep.subr.mxu0 0.0
        %714 = vmatpush1.msra.mxu0 0.0
        %715 = vmatprep.subr.mxu0 0.0
        %716 = vmatpush1.msra.mxu0 0.0
        %717 = vmatprep.subr.mxu0 0.0
        %718 = vmatpush1.msra.mxu0 0.0
        %719 = vmatprep.subr.mxu0 0.0
        %720 = vmatpush1.msra.mxu0 0.0
        %721 = vmatprep.subr.mxu0 0.0
        %722 = vmatpush1.msra.mxu0 0.0
        %723 = vmatprep.subr.mxu0 0.0
        %724 = vmatpush1.msra.mxu0 0.0
        %725 = vmatprep.subr.mxu0 0.0
        %726 = vmatpush1.msra.mxu0 0.0
        %727 = vmatprep.subr.mxu0 0.0
        %728 = vmatpush1.msra.mxu0 0.0
        %729 = vmatprep.subr.mxu0 0.0
        %730 = vmatpush1.msra.mxu0 0.0
        %731 = vmatprep.subr.mxu0 0.0
        %732 = vmatpush1.msra.mxu0 0.0
        %733 = vmatprep.subr.mxu0 0.0
        %734 = vmatpush1.msra.mxu0 0.0
        %735 = vmatprep.subr.mxu0 0.0
        %736 = vmatpush1.msra.mxu0 0.0
        %737 = vmatprep.subr.mxu0 0.0
        %738 = vmatpush1.msra.mxu0 0.0
        %739 = vmatprep.subr.mxu0 0.0
        %740 = vmatpush1.msra.mxu0 0.0
        %741 = vmatprep.subr.mxu0 0.0
        %742 = vmatpush1.msra.mxu0 0.0
        %743 = vmatprep.subr.mxu0 0.0
        %744 = vmatpush1.msra.mxu0 0.0
        %745 = vmatprep.subr.mxu0 0.0
        %746 = vmatpush1.msra.mxu0 0.0
        %747 = vmatprep.subr.mxu0 0.0
        %748 = vmatpush1.msra.mxu0 0.0
        %749 = vmatprep.subr.mxu0 0.0
        %750 = vmatpush1.msra.mxu0 0.0
        %751 = vmatprep.mubr.f32.mxu0 0.0
        %752 = vmatmul.mubr.f32.gmra.mrb[0].mxu0 %v682
        %v753 = vpop.f32.mrb[0].mxu0
        %v754 = vadd.f32 %v679, %v753
        %v755 = vpop.f32.mrb[0].mxu0
        %756 = vmatprep.mubr.f32.mxu0 0.0
        %757 = vmatmul.mubr.f32.gmra.mrb[0].mxu0 %v685
        %v758 = vpop.f32.mrb[0].mxu0
        %v759 = vadd.f32 %v680, %v758
        %v760 = vpop.f32.mrb[0].mxu0
        %761 = vdwg.mxu0
        %vm762 = vcmask 130048
        %763 = vst.msk [vmem:[%s498] sm:$0xff] %vm762, %v754
        %764 = vst.msk [vmem:[%s498 + $0x8] sm:$0xff] %vm762, %v759
        %s765 = sld [smem:[#allocation9 + $0x80]]
        %v766 = vstv %s765
        %v767 = vmul.f32 %v766, %v550
        %s768 = sld [smem:[#allocation9 + $0x81]]
        %v769 = vstv %s768
        %v770 = vmul.f32 %v769, %v551
        %v771 = vadd.f32 %v767, %v770
        %s772 = sld [smem:[#allocation9 + $0x82]]
        %v773 = vstv %s772
        %v774 = vmul.f32 %v773, %v552
        %v775 = vadd.f32 %v771, %v774
        %s776 = sld [smem:[#allocation9 + $0x83]]
        %v777 = vstv %s776
        %v778 = vmul.f32 %v777, %v553
        %v779 = vadd.f32 %v775, %v778
        %s780 = sld [smem:[#allocation9 + $0x84]]
        %v781 = vstv %s780
        %v782 = vmul.f32 %v781, %v554
        %v783 = vadd.f32 %v779, %v782
        %s784 = sld [smem:[#allocation9 + $0x85]]
        %v785 = vstv %s784
        %v786 = vmul.f32 %v785, %v555
        %v787 = vadd.f32 %v783, %v786
        %s788 = sld [smem:[#allocation9 + $0x86]]
        %v789 = vstv %s788
        %v790 = vmul.f32 %v789, %v556
        %v791 = vadd.f32 %v787, %v790
        %s792 = sld [smem:[#allocation9 + $0x87]]
        %v793 = vstv %s792
        %v794 = vmul.f32 %v793, %v557
        %v795 = vadd.f32 %v791, %v794
        %v797 = vsel %vm605, %v795, 0
        %799 = vmatprep.subr.mxu0 0.0
        %800 = vmatpush1.msra.mxu0 %v533
        %801 = vmatprep.subr.mxu0 0.0
        %802 = vmatpush1.msra.mxu0 0.0
        %803 = vmatprep.subr.mxu0 0.0
        %804 = vmatpush1.msra.mxu0 0.0
        %805 = vmatprep.subr.mxu0 0.0
        %806 = vmatpush1.msra.mxu0 0.0
        %807 = vmatprep.subr.mxu0 0.0
        %808 = vmatpush1.msra.mxu0 0.0
        %809 = vmatprep.subr.mxu0 0.0
        %810 = vmatpush1.msra.mxu0 0.0
        %811 = vmatprep.subr.mxu0 0.0
        %812 = vmatpush1.msra.mxu0 0.0
        %813 = vmatprep.subr.mxu0 0.0
        %814 = vmatpush1.msra.mxu0 0.0
        %815 = vmatprep.subr.mxu0 0.0
        %816 = vmatpush1.msra.mxu0 0.0
        %817 = vmatprep.subr.mxu0 0.0
        %818 = vmatpush1.msra.mxu0 0.0
        %819 = vmatprep.subr.mxu0 0.0
        %820 = vmatpush1.msra.mxu0 0.0
        %821 = vmatprep.subr.mxu0 0.0
        %822 = vmatpush1.msra.mxu0 0.0
        %823 = vmatprep.subr.mxu0 0.0
        %824 = vmatpush1.msra.mxu0 0.0
        %825 = vmatprep.subr.mxu0 0.0
        %826 = vmatpush1.msra.mxu0 0.0
        %827 = vmatprep.subr.mxu0 0.0
        %828 = vmatpush1.msra.mxu0 0.0
        %829 = vmatprep.subr.mxu0 0.0
        %830 = vmatpush1.msra.mxu0 0.0
        %831 = vmatprep.subr.mxu0 0.0
        %832 = vmatpush1.msra.mxu0 0.0
        %833 = vmatprep.subr.mxu0 0.0
        %834 = vmatpush1.msra.mxu0 0.0
        %835 = vmatprep.subr.mxu0 0.0
        %836 = vmatpush1.msra.mxu0 0.0
        %837 = vmatprep.subr.mxu0 0.0
        %838 = vmatpush1.msra.mxu0 0.0
        %839 = vmatprep.subr.mxu0 0.0
        %840 = vmatpush1.msra.mxu0 0.0
        %841 = vmatprep.subr.mxu0 0.0
        %842 = vmatpush1.msra.mxu0 0.0
        %843 = vmatprep.subr.mxu0 0.0
        %844 = vmatpush1.msra.mxu0 0.0
        %845 = vmatprep.subr.mxu0 0.0
        %846 = vmatpush1.msra.mxu0 0.0
        %847 = vmatprep.subr.mxu0 0.0
        %848 = vmatpush1.msra.mxu0 0.0
        %849 = vmatprep.subr.mxu0 0.0
        %850 = vmatpush1.msra.mxu0 0.0
        %851 = vmatprep.subr.mxu0 0.0
        %852 = vmatpush1.msra.mxu0 0.0
        %853 = vmatprep.subr.mxu0 0.0
        %854 = vmatpush1.msra.mxu0 0.0
        %855 = vmatprep.subr.mxu0 0.0
        %856 = vmatpush1.msra.mxu0 0.0
        %857 = vmatprep.subr.mxu0 0.0
        %858 = vmatpush1.msra.mxu0 0.0
        %859 = vmatprep.subr.mxu0 0.0
        %860 = vmatpush1.msra.mxu0 0.0
        %861 = vmatprep.subr.mxu0 0.0
        %862 = vmatpush1.msra.mxu0 0.0
        %863 = vmatprep.mubr.f32.mxu0 0.0
        %864 = vmatmul.mubr.f32.gmra.mrb[0].mxu0 %v797
        %v865 = vpop.f32.mrb[0].mxu0
        %v866 = vadd.f32 0.0, %v865
        %v867 = vpop.f32.mrb[0].mxu0
        %868 = vdwg.mxu0
        %s869 = scalar_lea.vmem %s452, 32 [#allocation10]
        %v870 = vld [vmem:[%s869] sm:$0xff]
        %v871 = vld [vmem:[%s869 + $0x8] sm:$0xff]
        %872 = vmatprep.subr.mxu0 0.0
        %873 = vmatpush1.msra.mxu0 %v866
        %874 = vmatprep.subr.mxu0 0.0
        %875 = vmatpush1.msra.mxu0 0.0
        %876 = vmatprep.subr.mxu0 0.0
        %877 = vmatpush1.msra.mxu0 0.0
        %878 = vmatprep.subr.mxu0 0.0
        %879 = vmatpush1.msra.mxu0 0.0
        %880 = vmatprep.subr.mxu0 0.0
        %881 = vmatpush1.msra.mxu0 0.0
        %882 = vmatprep.subr.mxu0 0.0
        %883 = vmatpush1.msra.mxu0 0.0
        %884 = vmatprep.subr.mxu0 0.0
        %885 = vmatpush1.msra.mxu0 0.0
        %886 = vmatprep.subr.mxu0 0.0
        %887 = vmatpush1.msra.mxu0 0.0
        %888 = vmatprep.subr.mxu0 0.0
        %889 = vmatpush1.msra.mxu0 0.0
        %890 = vmatprep.subr.mxu0 0.0
        %891 = vmatpush1.msra.mxu0 0.0
        %892 = vmatprep.subr.mxu0 0.0
        %893 = vmatpush1.msra.mxu0 0.0
        %894 = vmatprep.subr.mxu0 0.0
        %895 = vmatpush1.msra.mxu0 0.0
        %896 = vmatprep.subr.mxu0 0.0
        %897 = vmatpush1.msra.mxu0 0.0
        %898 = vmatprep.subr.mxu0 0.0
        %899 = vmatpush1.msra.mxu0 0.0
        %900 = vmatprep.subr.mxu0 0.0
        %901 = vmatpush1.msra.mxu0 0.0
        %902 = vmatprep.subr.mxu0 0.0
        %903 = vmatpush1.msra.mxu0 0.0
        %904 = vmatprep.subr.mxu0 0.0
        %905 = vmatpush1.msra.mxu0 0.0
        %906 = vmatprep.subr.mxu0 0.0
        %907 = vmatpush1.msra.mxu0 0.0
        %908 = vmatprep.subr.mxu0 0.0
        %909 = vmatpush1.msra.mxu0 0.0
        %910 = vmatprep.subr.mxu0 0.0
        %911 = vmatpush1.msra.mxu0 0.0
        %912 = vmatprep.subr.mxu0 0.0
        %913 = vmatpush1.msra.mxu0 0.0
        %914 = vmatprep.subr.mxu0 0.0
        %915 = vmatpush1.msra.mxu0 0.0
        %916 = vmatprep.subr.mxu0 0.0
        %917 = vmatpush1.msra.mxu0 0.0
        %918 = vmatprep.subr.mxu0 0.0
        %919 = vmatpush1.msra.mxu0 0.0
        %920 = vmatprep.subr.mxu0 0.0
        %921 = vmatpush1.msra.mxu0 0.0
        %922 = vmatprep.subr.mxu0 0.0
        %923 = vmatpush1.msra.mxu0 0.0
        %924 = vmatprep.subr.mxu0 0.0
        %925 = vmatpush1.msra.mxu0 0.0
        %926 = vmatprep.subr.mxu0 0.0
        %927 = vmatpush1.msra.mxu0 0.0
        %928 = vmatprep.subr.mxu0 0.0
        %929 = vmatpush1.msra.mxu0 0.0
        %930 = vmatprep.subr.mxu0 0.0
        %931 = vmatpush1.msra.mxu0 0.0
        %932 = vmatprep.subr.mxu0 0.0
        %933 = vmatpush1.msra.mxu0 0.0
        %934 = vmatprep.subr.mxu0 0.0
        %935 = vmatpush1.msra.mxu0 0.0
        %936 = vmatprep.mubr.f32.mxu0 0.0
        %937 = vmatmul.mubr.f32.gmra.mrb[0].mxu0 %v682
        %v938 = vpop.f32.mrb[0].mxu0
        %v939 = vadd.f32 %v870, %v938
        %v940 = vpop.f32.mrb[0].mxu0
        %941 = vmatprep.mubr.f32.mxu0 0.0
        %942 = vmatmul.mubr.f32.gmra.mrb[0].mxu0 %v685
        %v943 = vpop.f32.mrb[0].mxu0
        %v944 = vadd.f32 %v871, %v943
        %v945 = vpop.f32.mrb[0].mxu0
        %946 = vdwg.mxu0
        %s947 = scalar_lea.vmem %s498, 32 [#allocation12]
        %948 = vst.msk [vmem:[%s947] sm:$0xff] %vm762, %v939
        %949 = vst.msk [vmem:[%s947 + $0x8] sm:$0xff] %vm762, %v944
        %s950 = sld [smem:[#allocation9 + $0x100]]
        %v951 = vstv %s950
        %v952 = vmul.f32 %v951, %v550
        %s953 = sld [smem:[#allocation9 + $0x101]]
        %v954 = vstv %s953
        %v955 = vmul.f32 %v954, %v551
        %v956 = vadd.f32 %v952, %v955
        %s957 = sld [smem:[#allocation9 + $0x102]]
        %v958 = vstv %s957
        %v959 = vmul.f32 %v958, %v552
        %v960 = vadd.f32 %v956, %v959
        %s961 = sld [smem:[#allocation9 + $0x103]]
        %v962 = vstv %s961
        %v963 = vmul.f32 %v962, %v553
        %v964 = vadd.f32 %v960, %v963
        %s965 = sld [smem:[#allocation9 + $0x104]]
        %v966 = vstv %s965
        %v967 = vmul.f32 %v966, %v554
        %v968 = vadd.f32 %v964, %v967
        %s969 = sld [smem:[#allocation9 + $0x105]]
        %v970 = vstv %s969
        %v971 = vmul.f32 %v970, %v555
        %v972 = vadd.f32 %v968, %v971
        %s973 = sld [smem:[#allocation9 + $0x106]]
        %v974 = vstv %s973
        %v975 = vmul.f32 %v974, %v556
        %v976 = vadd.f32 %v972, %v975
        %s977 = sld [smem:[#allocation9 + $0x107]]
        %v978 = vstv %s977
        %v979 = vmul.f32 %v978, %v557
        %v980 = vadd.f32 %v976, %v979
        %v982 = vsel %vm605, %v980, 0
        %984 = vmatprep.subr.mxu0 0.0
        %985 = vmatpush1.msra.mxu0 %v533
        %986 = vmatprep.subr.mxu0 0.0
        %987 = vmatpush1.msra.mxu0 0.0
        %988 = vmatprep.subr.mxu0 0.0
        %989 = vmatpush1.msra.mxu0 0.0
        %990 = vmatprep.subr.mxu0 0.0
        %991 = vmatpush1.msra.mxu0 0.0
        %992 = vmatprep.subr.mxu0 0.0
        %993 = vmatpush1.msra.mxu0 0.0
        %994 = vmatprep.subr.mxu0 0.0
        %995 = vmatpush1.msra.mxu0 0.0
        %996 = vmatprep.subr.mxu0 0.0
        %997 = vmatpush1.msra.mxu0 0.0
        %998 = vmatprep.subr.mxu0 0.0
        %999 = vmatpush1.msra.mxu0 0.0
        %1000 = vmatprep.subr.mxu0 0.0
        %1001 = vmatpush1.msra.mxu0 0.0
        %1002 = vmatprep.subr.mxu0 0.0
        %1003 = vmatpush1.msra.mxu0 0.0
        %1004 = vmatprep.subr.mxu0 0.0
        %1005 = vmatpush1.msra.mxu0 0.0
        %1006 = vmatprep.subr.mxu0 0.0
        %1007 = vmatpush1.msra.mxu0 0.0
        %1008 = vmatprep.subr.mxu0 0.0
        %1009 = vmatpush1.msra.mxu0 0.0
        %1010 = vmatprep.subr.mxu0 0.0
        %1011 = vmatpush1.msra.mxu0 0.0
        %1012 = vmatprep.subr.mxu0 0.0
        %1013 = vmatpush1.msra.mxu0 0.0
        %1014 = vmatprep.subr.mxu0 0.0
        %1015 = vmatpush1.msra.mxu0 0.0
        %1016 = vmatprep.subr.mxu0 0.0
        %1017 = vmatpush1.msra.mxu0 0.0
        %1018 = vmatprep.subr.mxu0 0.0
        %1019 = vmatpush1.msra.mxu0 0.0
        %1020 = vmatprep.subr.mxu0 0.0
        %1021 = vmatpush1.msra.mxu0 0.0
        %1022 = vmatprep.subr.mxu0 0.0
        %1023 = vmatpush1.msra.mxu0 0.0
        %1024 = vmatprep.subr.mxu0 0.0
        %1025 = vmatpush1.msra.mxu0 0.0
        %1026 = vmatprep.subr.mxu0 0.0
        %1027 = vmatpush1.msra.mxu0 0.0
        %1028 = vmatprep.subr.mxu0 0.0
        %1029 = vmatpush1.msra.mxu0 0.0
        %1030 = vmatprep.subr.mxu0 0.0
        %1031 = vmatpush1.msra.mxu0 0.0
        %1032 = vmatprep.subr.mxu0 0.0
        %1033 = vmatpush1.msra.mxu0 0.0
        %1034 = vmatprep.subr.mxu0 0.0
        %1035 = vmatpush1.msra.mxu0 0.0
        %1036 = vmatprep.subr.mxu0 0.0
        %1037 = vmatpush1.msra.mxu0 0.0
        %1038 = vmatprep.subr.mxu0 0.0
        %1039 = vmatpush1.msra.mxu0 0.0
        %1040 = vmatprep.subr.mxu0 0.0
        %1041 = vmatpush1.msra.mxu0 0.0
        %1042 = vmatprep.subr.mxu0 0.0
        %1043 = vmatpush1.msra.mxu0 0.0
        %1044 = vmatprep.subr.mxu0 0.0
        %1045 = vmatpush1.msra.mxu0 0.0
        %1046 = vmatprep.subr.mxu0 0.0
        %1047 = vmatpush1.msra.mxu0 0.0
        %1048 = vmatprep.mubr.f32.mxu0 0.0
        %1049 = vmatmul.mubr.f32.gmra.mrb[0].mxu0 %v982
        %v1050 = vpop.f32.mrb[0].mxu0
        %v1051 = vadd.f32 0.0, %v1050
        %v1052 = vpop.f32.mrb[0].mxu0
        %1053 = vdwg.mxu0
        %s1054 = scalar_lea.vmem %s452, 64 [#allocation10]
        %v1055 = vld [vmem:[%s1054] sm:$0xff]
        %v1056 = vld [vmem:[%s1054 + $0x8] sm:$0xff]
        %1057 = vmatprep.subr.mxu0 0.0
        %1058 = vmatpush1.msra.mxu0 %v1051
        %1059 = vmatprep.subr.mxu0 0.0
        %1060 = vmatpush1.msra.mxu0 0.0
        %1061 = vmatprep.subr.mxu0 0.0
        %1062 = vmatpush1.msra.mxu0 0.0
        %1063 = vmatprep.subr.mxu0 0.0
        %1064 = vmatpush1.msra.mxu0 0.0
        %1065 = vmatprep.subr.mxu0 0.0
        %1066 = vmatpush1.msra.mxu0 0.0
        %1067 = vmatprep.subr.mxu0 0.0
        %1068 = vmatpush1.msra.mxu0 0.0
        %1069 = vmatprep.subr.mxu0 0.0
        %1070 = vmatpush1.msra.mxu0 0.0
        %1071 = vmatprep.subr.mxu0 0.0
        %1072 = vmatpush1.msra.mxu0 0.0
        %1073 = vmatprep.subr.mxu0 0.0
        %1074 = vmatpush1.msra.mxu0 0.0
        %1075 = vmatprep.subr.mxu0 0.0
        %1076 = vmatpush1.msra.mxu0 0.0
        %1077 = vmatprep.subr.mxu0 0.0
        %1078 = vmatpush1.msra.mxu0 0.0
        %1079 = vmatprep.subr.mxu0 0.0
        %1080 = vmatpush1.msra.mxu0 0.0
        %1081 = vmatprep.subr.mxu0 0.0
        %1082 = vmatpush1.msra.mxu0 0.0
        %1083 = vmatprep.subr.mxu0 0.0
        %1084 = vmatpush1.msra.mxu0 0.0
        %1085 = vmatprep.subr.mxu0 0.0
        %1086 = vmatpush1.msra.mxu0 0.0
        %1087 = vmatprep.subr.mxu0 0.0
        %1088 = vmatpush1.msra.mxu0 0.0
        %1089 = vmatprep.subr.mxu0 0.0
        %1090 = vmatpush1.msra.mxu0 0.0
        %1091 = vmatprep.subr.mxu0 0.0
        %1092 = vmatpush1.msra.mxu0 0.0
        %1093 = vmatprep.subr.mxu0 0.0
        %1094 = vmatpush1.msra.mxu0 0.0
        %1095 = vmatprep.subr.mxu0 0.0
        %1096 = vmatpush1.msra.mxu0 0.0
        %1097 = vmatprep.subr.mxu0 0.0
        %1098 = vmatpush1.msra.mxu0 0.0
        %1099 = vmatprep.subr.mxu0 0.0
        %1100 = vmatpush1.msra.mxu0 0.0
        %1101 = vmatprep.subr.mxu0 0.0
        %1102 = vmatpush1.msra.mxu0 0.0
        %1103 = vmatprep.subr.mxu0 0.0
        %1104 = vmatpush1.msra.mxu0 0.0
        %1105 = vmatprep.subr.mxu0 0.0
        %1106 = vmatpush1.msra.mxu0 0.0
        %1107 = vmatprep.subr.mxu0 0.0
        %1108 = vmatpush1.msra.mxu0 0.0
        %1109 = vmatprep.subr.mxu0 0.0
        %1110 = vmatpush1.msra.mxu0 0.0
        %1111 = vmatprep.subr.mxu0 0.0
        %1112 = vmatpush1.msra.mxu0 0.0
        %1113 = vmatprep.subr.mxu0 0.0
        %1114 = vmatpush1.msra.mxu0 0.0
        %1115 = vmatprep.subr.mxu0 0.0
        %1116 = vmatpush1.msra.mxu0 0.0
        %1117 = vmatprep.subr.mxu0 0.0
        %1118 = vmatpush1.msra.mxu0 0.0
        %1119 = vmatprep.subr.mxu0 0.0
        %1120 = vmatpush1.msra.mxu0 0.0
        %1121 = vmatprep.mubr.f32.mxu0 0.0
        %1122 = vmatmul.mubr.f32.gmra.mrb[0].mxu0 %v682
        %v1123 = vpop.f32.mrb[0].mxu0
        %v1124 = vadd.f32 %v1055, %v1123
        %v1125 = vpop.f32.mrb[0].mxu0
        %1126 = vmatprep.mubr.f32.mxu0 0.0
        %1127 = vmatmul.mubr.f32.gmra.mrb[0].mxu0 %v685
        %v1128 = vpop.f32.mrb[0].mxu0
        %v1129 = vadd.f32 %v1056, %v1128
        %v1130 = vpop.f32.mrb[0].mxu0
        %1131 = vdwg.mxu0
        %s1132 = scalar_lea.vmem %s498, 64 [#allocation12]
        %1133 = vst.msk [vmem:[%s1132] sm:$0xff] %vm762, %v1124
        %1134 = vst.msk [vmem:[%s1132 + $0x8] sm:$0xff] %vm762, %v1129
        %s1135 = sld [smem:[#allocation9 + $0x180]]
        %v1136 = vstv %s1135
        %v1137 = vmul.f32 %v1136, %v550
        %s1138 = sld [smem:[#allocation9 + $0x181]]
        %v1139 = vstv %s1138
        %v1140 = vmul.f32 %v1139, %v551
        %v1141 = vadd.f32 %v1137, %v1140
        %s1142 = sld [smem:[#allocation9 + $0x182]]
        %v1143 = vstv %s1142
        %v1144 = vmul.f32 %v1143, %v552
        %v1145 = vadd.f32 %v1141, %v1144
        %s1146 = sld [smem:[#allocation9 + $0x183]]
        %v1147 = vstv %s1146
        %v1148 = vmul.f32 %v1147, %v553
        %v1149 = vadd.f32 %v1145, %v1148
        %s1150 = sld [smem:[#allocation9 + $0x184]]
        %v1151 = vstv %s1150
        %v1152 = vmul.f32 %v1151, %v554
        %v1153 = vadd.f32 %v1149, %v1152
        %s1154 = sld [smem:[#allocation9 + $0x185]]
        %v1155 = vstv %s1154
        %v1156 = vmul.f32 %v1155, %v555
        %v1157 = vadd.f32 %v1153, %v1156
        %s1158 = sld [smem:[#allocation9 + $0x186]]
        %v1159 = vstv %s1158
        %v1160 = vmul.f32 %v1159, %v556
        %v1161 = vadd.f32 %v1157, %v1160
        %s1162 = sld [smem:[#allocation9 + $0x187]]
        %v1163 = vstv %s1162
        %v1164 = vmul.f32 %v1163, %v557
        %v1165 = vadd.f32 %v1161, %v1164
        %v1167 = vsel %vm605, %v1165, 0
        %1169 = vmatprep.subr.mxu0 0.0
        %1170 = vmatpush1.msra.mxu0 %v533
        %1171 = vmatprep.subr.mxu0 0.0
        %1172 = vmatpush1.msra.mxu0 0.0
        %1173 = vmatprep.subr.mxu0 0.0
        %1174 = vmatpush1.msra.mxu0 0.0
        %1175 = vmatprep.subr.mxu0 0.0
        %1176 = vmatpush1.msra.mxu0 0.0
        %1177 = vmatprep.subr.mxu0 0.0
        %1178 = vmatpush1.msra.mxu0 0.0
        %1179 = vmatprep.subr.mxu0 0.0
        %1180 = vmatpush1.msra.mxu0 0.0
        %1181 = vmatprep.subr.mxu0 0.0
        %1182 = vmatpush1.msra.mxu0 0.0
        %1183 = vmatprep.subr.mxu0 0.0
        %1184 = vmatpush1.msra.mxu0 0.0
        %1185 = vmatprep.subr.mxu0 0.0
        %1186 = vmatpush1.msra.mxu0 0.0
        %1187 = vmatprep.subr.mxu0 0.0
        %1188 = vmatpush1.msra.mxu0 0.0
        %1189 = vmatprep.subr.mxu0 0.0
        %1190 = vmatpush1.msra.mxu0 0.0
        %1191 = vmatprep.subr.mxu0 0.0
        %1192 = vmatpush1.msra.mxu0 0.0
        %1193 = vmatprep.subr.mxu0 0.0
        %1194 = vmatpush1.msra.mxu0 0.0
        %1195 = vmatprep.subr.mxu0 0.0
        %1196 = vmatpush1.msra.mxu0 0.0
        %1197 = vmatprep.subr.mxu0 0.0
        %1198 = vmatpush1.msra.mxu0 0.0
        %1199 = vmatprep.subr.mxu0 0.0
        %1200 = vmatpush1.msra.mxu0 0.0
        %1201 = vmatprep.subr.mxu0 0.0
        %1202 = vmatpush1.msra.mxu0 0.0
        %1203 = vmatprep.subr.mxu0 0.0
        %1204 = vmatpush1.msra.mxu0 0.0
        %1205 = vmatprep.subr.mxu0 0.0
        %1206 = vmatpush1.msra.mxu0 0.0
        %1207 = vmatprep.subr.mxu0 0.0
        %1208 = vmatpush1.msra.mxu0 0.0
        %1209 = vmatprep.subr.mxu0 0.0
        %1210 = vmatpush1.msra.mxu0 0.0
        %1211 = vmatprep.subr.mxu0 0.0
        %1212 = vmatpush1.msra.mxu0 0.0
        %1213 = vmatprep.subr.mxu0 0.0
        %1214 = vmatpush1.msra.mxu0 0.0
        %1215 = vmatprep.subr.mxu0 0.0
        %1216 = vmatpush1.msra.mxu0 0.0
        %1217 = vmatprep.subr.mxu0 0.0
        %1218 = vmatpush1.msra.mxu0 0.0
        %1219 = vmatprep.subr.mxu0 0.0
        %1220 = vmatpush1.msra.mxu0 0.0
        %1221 = vmatprep.subr.mxu0 0.0
        %1222 = vmatpush1.msra.mxu0 0.0
        %1223 = vmatprep.subr.mxu0 0.0
        %1224 = vmatpush1.msra.mxu0 0.0
        %1225 = vmatprep.subr.mxu0 0.0
        %1226 = vmatpush1.msra.mxu0 0.0
        %1227 = vmatprep.subr.mxu0 0.0
        %1228 = vmatpush1.msra.mxu0 0.0
        %1229 = vmatprep.subr.mxu0 0.0
        %1230 = vmatpush1.msra.mxu0 0.0
        %1231 = vmatprep.subr.mxu0 0.0
        %1232 = vmatpush1.msra.mxu0 0.0
        %1233 = vmatprep.mubr.f32.mxu0 0.0
        %1234 = vmatmul.mubr.f32.gmra.mrb[0].mxu0 %v1167
        %v1235 = vpop.f32.mrb[0].mxu0
        %v1236 = vadd.f32 0.0, %v1235
        %v1237 = vpop.f32.mrb[0].mxu0
        %1238 = vdwg.mxu0
        %s1239 = scalar_lea.vmem %s452, 96 [#allocation10]
        %v1240 = vld [vmem:[%s1239] sm:$0xff]
        %v1241 = vld [vmem:[%s1239 + $0x8] sm:$0xff]
        %1242 = vmatprep.subr.mxu0 0.0
        %1243 = vmatpush1.msra.mxu0 %v1236
        %1244 = vmatprep.subr.mxu0 0.0
        %1245 = vmatpush1.msra.mxu0 0.0
        %1246 = vmatprep.subr.mxu0 0.0
        %1247 = vmatpush1.msra.mxu0 0.0
        %1248 = vmatprep.subr.mxu0 0.0
        %1249 = vmatpush1.msra.mxu0 0.0
        %1250 = vmatprep.subr.mxu0 0.0
        %1251 = vmatpush1.msra.mxu0 0.0
        %1252 = vmatprep.subr.mxu0 0.0
        %1253 = vmatpush1.msra.mxu0 0.0
        %1254 = vmatprep.subr.mxu0 0.0
        %1255 = vmatpush1.msra.mxu0 0.0
        %1256 = vmatprep.subr.mxu0 0.0
        %1257 = vmatpush1.msra.mxu0 0.0
        %1258 = vmatprep.subr.mxu0 0.0
        %1259 = vmatpush1.msra.mxu0 0.0
        %1260 = vmatprep.subr.mxu0 0.0
        %1261 = vmatpush1.msra.mxu0 0.0
        %1262 = vmatprep.subr.mxu0 0.0
        %1263 = vmatpush1.msra.mxu0 0.0
        %1264 = vmatprep.subr.mxu0 0.0
        %1265 = vmatpush1.msra.mxu0 0.0
        %1266 = vmatprep.subr.mxu0 0.0
        %1267 = vmatpush1.msra.mxu0 0.0
        %1268 = vmatprep.subr.mxu0 0.0
        %1269 = vmatpush1.msra.mxu0 0.0
        %1270 = vmatprep.subr.mxu0 0.0
        %1271 = vmatpush1.msra.mxu0 0.0
        %1272 = vmatprep.subr.mxu0 0.0
        %1273 = vmatpush1.msra.mxu0 0.0
        %1274 = vmatprep.subr.mxu0 0.0
        %1275 = vmatpush1.msra.mxu0 0.0
        %1276 = vmatprep.subr.mxu0 0.0
        %1277 = vmatpush1.msra.mxu0 0.0
        %1278 = vmatprep.subr.mxu0 0.0
        %1279 = vmatpush1.msra.mxu0 0.0
        %1280 = vmatprep.subr.mxu0 0.0
        %1281 = vmatpush1.msra.mxu0 0.0
        %1282 = vmatprep.subr.mxu0 0.0
        %1283 = vmatpush1.msra.mxu0 0.0
        %1284 = vmatprep.subr.mxu0 0.0
        %1285 = vmatpush1.msra.mxu0 0.0
        %1286 = vmatprep.subr.mxu0 0.0
        %1287 = vmatpush1.msra.mxu0 0.0
        %1288 = vmatprep.subr.mxu0 0.0
        %1289 = vmatpush1.msra.mxu0 0.0
        %1290 = vmatprep.subr.mxu0 0.0
        %1291 = vmatpush1.msra.mxu0 0.0
        %1292 = vmatprep.subr.mxu0 0.0
        %1293 = vmatpush1.msra.mxu0 0.0
        %1294 = vmatprep.subr.mxu0 0.0
        %1295 = vmatpush1.msra.mxu0 0.0
        %1296 = vmatprep.subr.mxu0 0.0
        %1297 = vmatpush1.msra.mxu0 0.0
        %1298 = vmatprep.subr.mxu0 0.0
        %1299 = vmatpush1.msra.mxu0 0.0
        %1300 = vmatprep.subr.mxu0 0.0
        %1301 = vmatpush1.msra.mxu0 0.0
        %1302 = vmatprep.subr.mxu0 0.0
        %1303 = vmatpush1.msra.mxu0 0.0
        %1304 = vmatprep.subr.mxu0 0.0
        %1305 = vmatpush1.msra.mxu0 0.0
        %1306 = vmatprep.mubr.f32.mxu0 0.0
        %1307 = vmatmul.mubr.f32.gmra.mrb[0].mxu0 %v682
        %v1308 = vpop.f32.mrb[0].mxu0
        %v1309 = vadd.f32 %v1240, %v1308
        %v1310 = vpop.f32.mrb[0].mxu0
        %1311 = vmatprep.mubr.f32.mxu0 0.0
        %1312 = vmatmul.mubr.f32.gmra.mrb[0].mxu0 %v685
        %v1313 = vpop.f32.mrb[0].mxu0
        %v1314 = vadd.f32 %v1241, %v1313
        %v1315 = vpop.f32.mrb[0].mxu0
        %1316 = vdwg.mxu0
        %s1317 = scalar_lea.vmem %s498, 96 [#allocation12]
        %1318 = vst.msk [vmem:[%s1317] sm:$0xff] %vm762, %v1309
        %1319 = vst.msk [vmem:[%s1317 + $0x8] sm:$0xff] %vm762, %v1314
        %s1320 = sld [smem:[#allocation9]]
        %v1321 = vstv %s1320
        %v1322 = vmul.f32 %v1321, %v566
        %s1323 = sld [smem:[#allocation9 + $0x1]]
        %v1324 = vstv %s1323
        %v1325 = vmul.f32 %v1324, %v567
        %v1326 = vadd.f32 %v1322, %v1325
        %s1327 = sld [smem:[#allocation9 + $0x2]]
        %v1328 = vstv %s1327
        %v1329 = vmul.f32 %v1328, %v568
        %v1330 = vadd.f32 %v1326, %v1329
        %s1331 = sld [smem:[#allocation9 + $0x3]]
        %v1332 = vstv %s1331
        %v1333 = vmul.f32 %v1332, %v569
        %v1334 = vadd.f32 %v1330, %v1333
        %s1335 = sld [smem:[#allocation9 + $0x4]]
        %v1336 = vstv %s1335
        %v1337 = vmul.f32 %v1336, %v570
        %v1338 = vadd.f32 %v1334, %v1337
        %s1339 = sld [smem:[#allocation9 + $0x5]]
        %v1340 = vstv %s1339
        %v1341 = vmul.f32 %v1340, %v571
        %v1342 = vadd.f32 %v1338, %v1341
        %s1343 = sld [smem:[#allocation9 + $0x6]]
        %v1344 = vstv %s1343
        %v1345 = vmul.f32 %v1344, %v572
        %v1346 = vadd.f32 %v1342, %v1345
        %s1347 = sld [smem:[#allocation9 + $0x7]]
        %v1348 = vstv %s1347
        %v1349 = vmul.f32 %v1348, %v573
        %v1350 = vadd.f32 %v1346, %v1349
        %v1352 = vsel %vm605, %v1350, 0
        %1354 = vmatprep.subr.mxu0 0.0
        %1355 = vmatpush1.msra.mxu0 %v533
        %1356 = vmatprep.subr.mxu0 0.0
        %1357 = vmatpush1.msra.mxu0 0.0
        %1358 = vmatprep.subr.mxu0 0.0
        %1359 = vmatpush1.msra.mxu0 0.0
        %1360 = vmatprep.subr.mxu0 0.0
        %1361 = vmatpush1.msra.mxu0 0.0
        %1362 = vmatprep.subr.mxu0 0.0
        %1363 = vmatpush1.msra.mxu0 0.0
        %1364 = vmatprep.subr.mxu0 0.0
        %1365 = vmatpush1.msra.mxu0 0.0
        %1366 = vmatprep.subr.mxu0 0.0
        %1367 = vmatpush1.msra.mxu0 0.0
        %1368 = vmatprep.subr.mxu0 0.0
        %1369 = vmatpush1.msra.mxu0 0.0
        %1370 = vmatprep.subr.mxu0 0.0
        %1371 = vmatpush1.msra.mxu0 0.0
        %1372 = vmatprep.subr.mxu0 0.0
        %1373 = vmatpush1.msra.mxu0 0.0
        %1374 = vmatprep.subr.mxu0 0.0
        %1375 = vmatpush1.msra.mxu0 0.0
        %1376 = vmatprep.subr.mxu0 0.0
        %1377 = vmatpush1.msra.mxu0 0.0
        %1378 = vmatprep.subr.mxu0 0.0
        %1379 = vmatpush1.msra.mxu0 0.0
        %1380 = vmatprep.subr.mxu0 0.0
        %1381 = vmatpush1.msra.mxu0 0.0
        %1382 = vmatprep.subr.mxu0 0.0
        %1383 = vmatpush1.msra.mxu0 0.0
        %1384 = vmatprep.subr.mxu0 0.0
        %1385 = vmatpush1.msra.mxu0 0.0
        %1386 = vmatprep.subr.mxu0 0.0
        %1387 = vmatpush1.msra.mxu0 0.0
        %1388 = vmatprep.subr.mxu0 0.0
        %1389 = vmatpush1.msra.mxu0 0.0
        %1390 = vmatprep.subr.mxu0 0.0
        %1391 = vmatpush1.msra.mxu0 0.0
        %1392 = vmatprep.subr.mxu0 0.0
        %1393 = vmatpush1.msra.mxu0 0.0
        %1394 = vmatprep.subr.mxu0 0.0
        %1395 = vmatpush1.msra.mxu0 0.0
        %1396 = vmatprep.subr.mxu0 0.0
        %1397 = vmatpush1.msra.mxu0 0.0
        %1398 = vmatprep.subr.mxu0 0.0
        %1399 = vmatpush1.msra.mxu0 0.0
        %1400 = vmatprep.subr.mxu0 0.0
        %1401 = vmatpush1.msra.mxu0 0.0
        %1402 = vmatprep.subr.mxu0 0.0
        %1403 = vmatpush1.msra.mxu0 0.0
        %1404 = vmatprep.subr.mxu0 0.0
        %1405 = vmatpush1.msra.mxu0 0.0
        %1406 = vmatprep.subr.mxu0 0.0
        %1407 = vmatpush1.msra.mxu0 0.0
        %1408 = vmatprep.subr.mxu0 0.0
        %1409 = vmatpush1.msra.mxu0 0.0
        %1410 = vmatprep.subr.mxu0 0.0
        %1411 = vmatpush1.msra.mxu0 0.0
        %1412 = vmatprep.subr.mxu0 0.0
        %1413 = vmatpush1.msra.mxu0 0.0
        %1414 = vmatprep.subr.mxu0 0.0
        %1415 = vmatpush1.msra.mxu0 0.0
        %1416 = vmatprep.subr.mxu0 0.0
        %1417 = vmatpush1.msra.mxu0 0.0
        %1418 = vmatprep.mubr.f32.mxu0 0.0
        %1419 = vmatmul.mubr.f32.gmra.mrb[0].mxu0 %v1352
        %v1420 = vpop.f32.mrb[0].mxu0
        %v1421 = vadd.f32 0.0, %v1420
        %v1422 = vpop.f32.mrb[0].mxu0
        %1423 = vdwg.mxu0
        %s1424 = scalar_lea.vmem %s452, 16 [#allocation10]
        %v1425 = vld [vmem:[%s1424] sm:$0xff]
        %v1426 = vld [vmem:[%s1424 + $0x8] sm:$0xff]
        %1427 = vmatprep.subr.mxu0 0.0
        %1428 = vmatpush1.msra.mxu0 %v1421
        %1429 = vmatprep.subr.mxu0 0.0
        %1430 = vmatpush1.msra.mxu0 0.0
        %1431 = vmatprep.subr.mxu0 0.0
        %1432 = vmatpush1.msra.mxu0 0.0
        %1433 = vmatprep.subr.mxu0 0.0
        %1434 = vmatpush1.msra.mxu0 0.0
        %1435 = vmatprep.subr.mxu0 0.0
        %1436 = vmatpush1.msra.mxu0 0.0
        %1437 = vmatprep.subr.mxu0 0.0
        %1438 = vmatpush1.msra.mxu0 0.0
        %1439 = vmatprep.subr.mxu0 0.0
        %1440 = vmatpush1.msra.mxu0 0.0
        %1441 = vmatprep.subr.mxu0 0.0
        %1442 = vmatpush1.msra.mxu0 0.0
        %1443 = vmatprep.subr.mxu0 0.0
        %1444 = vmatpush1.msra.mxu0 0.0
        %1445 = vmatprep.subr.mxu0 0.0
        %1446 = vmatpush1.msra.mxu0 0.0
        %1447 = vmatprep.subr.mxu0 0.0
        %1448 = vmatpush1.msra.mxu0 0.0
        %1449 = vmatprep.subr.mxu0 0.0
        %1450 = vmatpush1.msra.mxu0 0.0
        %1451 = vmatprep.subr.mxu0 0.0
        %1452 = vmatpush1.msra.mxu0 0.0
        %1453 = vmatprep.subr.mxu0 0.0
        %1454 = vmatpush1.msra.mxu0 0.0
        %1455 = vmatprep.subr.mxu0 0.0
        %1456 = vmatpush1.msra.mxu0 0.0
        %1457 = vmatprep.subr.mxu0 0.0
        %1458 = vmatpush1.msra.mxu0 0.0
        %1459 = vmatprep.subr.mxu0 0.0
        %1460 = vmatpush1.msra.mxu0 0.0
        %1461 = vmatprep.subr.mxu0 0.0
        %1462 = vmatpush1.msra.mxu0 0.0
        %1463 = vmatprep.subr.mxu0 0.0
        %1464 = vmatpush1.msra.mxu0 0.0
        %1465 = vmatprep.subr.mxu0 0.0
        %1466 = vmatpush1.msra.mxu0 0.0
        %1467 = vmatprep.subr.mxu0 0.0
        %1468 = vmatpush1.msra.mxu0 0.0
        %1469 = vmatprep.subr.mxu0 0.0
        %1470 = vmatpush1.msra.mxu0 0.0
        %1471 = vmatprep.subr.mxu0 0.0
        %1472 = vmatpush1.msra.mxu0 0.0
        %1473 = vmatprep.subr.mxu0 0.0
        %1474 = vmatpush1.msra.mxu0 0.0
        %1475 = vmatprep.subr.mxu0 0.0
        %1476 = vmatpush1.msra.mxu0 0.0
        %1477 = vmatprep.subr.mxu0 0.0
        %1478 = vmatpush1.msra.mxu0 0.0
        %1479 = vmatprep.subr.mxu0 0.0
        %1480 = vmatpush1.msra.mxu0 0.0
        %1481 = vmatprep.subr.mxu0 0.0
        %1482 = vmatpush1.msra.mxu0 0.0
        %1483 = vmatprep.subr.mxu0 0.0
        %1484 = vmatpush1.msra.mxu0 0.0
        %1485 = vmatprep.subr.mxu0 0.0
        %1486 = vmatpush1.msra.mxu0 0.0
        %1487 = vmatprep.subr.mxu0 0.0
        %1488 = vmatpush1.msra.mxu0 0.0
        %1489 = vmatprep.subr.mxu0 0.0
        %1490 = vmatpush1.msra.mxu0 0.0
        %1491 = vmatprep.mubr.f32.mxu0 0.0
        %1492 = vmatmul.mubr.f32.gmra.mrb[0].mxu0 %v682
        %v1493 = vpop.f32.mrb[0].mxu0
        %v1494 = vadd.f32 %v1425, %v1493
        %v1495 = vpop.f32.mrb[0].mxu0
        %1496 = vmatprep.mubr.f32.mxu0 0.0
        %1497 = vmatmul.mubr.f32.gmra.mrb[0].mxu0 %v685
        %v1498 = vpop.f32.mrb[0].mxu0
        %v1499 = vadd.f32 %v1426, %v1498
        %v1500 = vpop.f32.mrb[0].mxu0
        %1501 = vdwg.mxu0
        %s1502 = scalar_lea.vmem %s498, 16 [#allocation12]
        %1503 = vst.msk [vmem:[%s1502] sm:$0xff] %vm762, %v1494
        %1504 = vst.msk [vmem:[%s1502 + $0x8] sm:$0xff] %vm762, %v1499
        %s1505 = sld [smem:[#allocation9 + $0x80]]
        %v1506 = vstv %s1505
        %v1507 = vmul.f32 %v1506, %v566
        %s1508 = sld [smem:[#allocation9 + $0x81]]
        %v1509 = vstv %s1508
        %v1510 = vmul.f32 %v1509, %v567
        %v1511 = vadd.f32 %v1507, %v1510
        %s1512 = sld [smem:[#allocation9 + $0x82]]
        %v1513 = vstv %s1512
        %v1514 = vmul.f32 %v1513, %v568
        %v1515 = vadd.f32 %v1511, %v1514
        %s1516 = sld [smem:[#allocation9 + $0x83]]
        %v1517 = vstv %s1516
        %v1518 = vmul.f32 %v1517, %v569
        %v1519 = vadd.f32 %v1515, %v1518
        %s1520 = sld [smem:[#allocation9 + $0x84]]
        %v1521 = vstv %s1520
        %v1522 = vmul.f32 %v1521, %v570
        %v1523 = vadd.f32 %v1519, %v1522
        %s1524 = sld [smem:[#allocation9 + $0x85]]
        %v1525 = vstv %s1524
        %v1526 = vmul.f32 %v1525, %v571
        %v1527 = vadd.f32 %v1523, %v1526
        %s1528 = sld [smem:[#allocation9 + $0x86]]
        %v1529 = vstv %s1528
        %v1530 = vmul.f32 %v1529, %v572
        %v1531 = vadd.f32 %v1527, %v1530
        %s1532 = sld [smem:[#allocation9 + $0x87]]
        %v1533 = vstv %s1532
        %v1534 = vmul.f32 %v1533, %v573
        %v1535 = vadd.f32 %v1531, %v1534
        %v1537 = vsel %vm605, %v1535, 0
        %1539 = vmatprep.subr.mxu0 0.0
        %1540 = vmatpush1.msra.mxu0 %v533
        %1541 = vmatprep.subr.mxu0 0.0
        %1542 = vmatpush1.msra.mxu0 0.0
        %1543 = vmatprep.subr.mxu0 0.0
        %1544 = vmatpush1.msra.mxu0 0.0
        %1545 = vmatprep.subr.mxu0 0.0
        %1546 = vmatpush1.msra.mxu0 0.0
        %1547 = vmatprep.subr.mxu0 0.0
        %1548 = vmatpush1.msra.mxu0 0.0
        %1549 = vmatprep.subr.mxu0 0.0
        %1550 = vmatpush1.msra.mxu0 0.0
        %1551 = vmatprep.subr.mxu0 0.0
        %1552 = vmatpush1.msra.mxu0 0.0
        %1553 = vmatprep.subr.mxu0 0.0
        %1554 = vmatpush1.msra.mxu0 0.0
        %1555 = vmatprep.subr.mxu0 0.0
        %1556 = vmatpush1.msra.mxu0 0.0
        %1557 = vmatprep.subr.mxu0 0.0
        %1558 = vmatpush1.msra.mxu0 0.0
        %1559 = vmatprep.subr.mxu0 0.0
        %1560 = vmatpush1.msra.mxu0 0.0
        %1561 = vmatprep.subr.mxu0 0.0
        %1562 = vmatpush1.msra.mxu0 0.0
        %1563 = vmatprep.subr.mxu0 0.0
        %1564 = vmatpush1.msra.mxu0 0.0
        %1565 = vmatprep.subr.mxu0 0.0
        %1566 = vmatpush1.msra.mxu0 0.0
        %1567 = vmatprep.subr.mxu0 0.0
        %1568 = vmatpush1.msra.mxu0 0.0
        %1569 = vmatprep.subr.mxu0 0.0
        %1570 = vmatpush1.msra.mxu0 0.0
        %1571 = vmatprep.subr.mxu0 0.0
        %1572 = vmatpush1.msra.mxu0 0.0
        %1573 = vmatprep.subr.mxu0 0.0
        %1574 = vmatpush1.msra.mxu0 0.0
        %1575 = vmatprep.subr.mxu0 0.0
        %1576 = vmatpush1.msra.mxu0 0.0
        %1577 = vmatprep.subr.mxu0 0.0
        %1578 = vmatpush1.msra.mxu0 0.0
        %1579 = vmatprep.subr.mxu0 0.0
        %1580 = vmatpush1.msra.mxu0 0.0
        %1581 = vmatprep.subr.mxu0 0.0
        %1582 = vmatpush1.msra.mxu0 0.0
        %1583 = vmatprep.subr.mxu0 0.0
        %1584 = vmatpush1.msra.mxu0 0.0
        %1585 = vmatprep.subr.mxu0 0.0
        %1586 = vmatpush1.msra.mxu0 0.0
        %1587 = vmatprep.subr.mxu0 0.0
        %1588 = vmatpush1.msra.mxu0 0.0
        %1589 = vmatprep.subr.mxu0 0.0
        %1590 = vmatpush1.msra.mxu0 0.0
        %1591 = vmatprep.subr.mxu0 0.0
        %1592 = vmatpush1.msra.mxu0 0.0
        %1593 = vmatprep.subr.mxu0 0.0
        %1594 = vmatpush1.msra.mxu0 0.0
        %1595 = vmatprep.subr.mxu0 0.0
        %1596 = vmatpush1.msra.mxu0 0.0
        %1597 = vmatprep.subr.mxu0 0.0
        %1598 = vmatpush1.msra.mxu0 0.0
        %1599 = vmatprep.subr.mxu0 0.0
        %1600 = vmatpush1.msra.mxu0 0.0
        %1601 = vmatprep.subr.mxu0 0.0
        %1602 = vmatpush1.msra.mxu0 0.0
        %1603 = vmatprep.mubr.f32.mxu0 0.0
        %1604 = vmatmul.mubr.f32.gmra.mrb[0].mxu0 %v1537
        %v1605 = vpop.f32.mrb[0].mxu0
        %v1606 = vadd.f32 0.0, %v1605
        %v1607 = vpop.f32.mrb[0].mxu0
        %1608 = vdwg.mxu0
        %s1609 = scalar_lea.vmem %s452, 48 [#allocation10]
        %v1610 = vld [vmem:[%s1609] sm:$0xff]
        %v1611 = vld [vmem:[%s1609 + $0x8] sm:$0xff]
        %1612 = vmatprep.subr.mxu0 0.0
        %1613 = vmatpush1.msra.mxu0 %v1606
        %1614 = vmatprep.subr.mxu0 0.0
        %1615 = vmatpush1.msra.mxu0 0.0
        %1616 = vmatprep.subr.mxu0 0.0
        %1617 = vmatpush1.msra.mxu0 0.0
        %1618 = vmatprep.subr.mxu0 0.0
        %1619 = vmatpush1.msra.mxu0 0.0
        %1620 = vmatprep.subr.mxu0 0.0
        %1621 = vmatpush1.msra.mxu0 0.0
        %1622 = vmatprep.subr.mxu0 0.0
        %1623 = vmatpush1.msra.mxu0 0.0
        %1624 = vmatprep.subr.mxu0 0.0
        %1625 = vmatpush1.msra.mxu0 0.0
        %1626 = vmatprep.subr.mxu0 0.0
        %1627 = vmatpush1.msra.mxu0 0.0
        %1628 = vmatprep.subr.mxu0 0.0
        %1629 = vmatpush1.msra.mxu0 0.0
        %1630 = vmatprep.subr.mxu0 0.0
        %1631 = vmatpush1.msra.mxu0 0.0
        %1632 = vmatprep.subr.mxu0 0.0
        %1633 = vmatpush1.msra.mxu0 0.0
        %1634 = vmatprep.subr.mxu0 0.0
        %1635 = vmatpush1.msra.mxu0 0.0
        %1636 = vmatprep.subr.mxu0 0.0
        %1637 = vmatpush1.msra.mxu0 0.0
        %1638 = vmatprep.subr.mxu0 0.0
        %1639 = vmatpush1.msra.mxu0 0.0
        %1640 = vmatprep.subr.mxu0 0.0
        %1641 = vmatpush1.msra.mxu0 0.0
        %1642 = vmatprep.subr.mxu0 0.0
        %1643 = vmatpush1.msra.mxu0 0.0
        %1644 = vmatprep.subr.mxu0 0.0
        %1645 = vmatpush1.msra.mxu0 0.0
        %1646 = vmatprep.subr.mxu0 0.0
        %1647 = vmatpush1.msra.mxu0 0.0
        %1648 = vmatprep.subr.mxu0 0.0
        %1649 = vmatpush1.msra.mxu0 0.0
        %1650 = vmatprep.subr.mxu0 0.0
        %1651 = vmatpush1.msra.mxu0 0.0
        %1652 = vmatprep.subr.mxu0 0.0
        %1653 = vmatpush1.msra.mxu0 0.0
        %1654 = vmatprep.subr.mxu0 0.0
        %1655 = vmatpush1.msra.mxu0 0.0
        %1656 = vmatprep.subr.mxu0 0.0
        %1657 = vmatpush1.msra.mxu0 0.0
        %1658 = vmatprep.subr.mxu0 0.0
        %1659 = vmatpush1.msra.mxu0 0.0
        %1660 = vmatprep.subr.mxu0 0.0
        %1661 = vmatpush1.msra.mxu0 0.0
        %1662 = vmatprep.subr.mxu0 0.0
        %1663 = vmatpush1.msra.mxu0 0.0
        %1664 = vmatprep.subr.mxu0 0.0
        %1665 = vmatpush1.msra.mxu0 0.0
        %1666 = vmatprep.subr.mxu0 0.0
        %1667 = vmatpush1.msra.mxu0 0.0
        %1668 = vmatprep.subr.mxu0 0.0
        %1669 = vmatpush1.msra.mxu0 0.0
        %1670 = vmatprep.subr.mxu0 0.0
        %1671 = vmatpush1.msra.mxu0 0.0
        %1672 = vmatprep.subr.mxu0 0.0
        %1673 = vmatpush1.msra.mxu0 0.0
        %1674 = vmatprep.subr.mxu0 0.0
        %1675 = vmatpush1.msra.mxu0 0.0
        %1676 = vmatprep.mubr.f32.mxu0 0.0
        %1677 = vmatmul.mubr.f32.gmra.mrb[0].mxu0 %v682
        %v1678 = vpop.f32.mrb[0].mxu0
        %v1679 = vadd.f32 %v1610, %v1678
        %v1680 = vpop.f32.mrb[0].mxu0
        %1681 = vmatprep.mubr.f32.mxu0 0.0
        %1682 = vmatmul.mubr.f32.gmra.mrb[0].mxu0 %v685
        %v1683 = vpop.f32.mrb[0].mxu0
        %v1684 = vadd.f32 %v1611, %v1683
        %v1685 = vpop.f32.mrb[0].mxu0
        %1686 = vdwg.mxu0
        %s1687 = scalar_lea.vmem %s498, 48 [#allocation12]
        %1688 = vst.msk [vmem:[%s1687] sm:$0xff] %vm762, %v1679
        %1689 = vst.msk [vmem:[%s1687 + $0x8] sm:$0xff] %vm762, %v1684
        %s1690 = sld [smem:[#allocation9 + $0x100]]
        %v1691 = vstv %s1690
        %v1692 = vmul.f32 %v1691, %v566
        %s1693 = sld [smem:[#allocation9 + $0x101]]
        %v1694 = vstv %s1693
        %v1695 = vmul.f32 %v1694, %v567
        %v1696 = vadd.f32 %v1692, %v1695
        %s1697 = sld [smem:[#allocation9 + $0x102]]
        %v1698 = vstv %s1697
        %v1699 = vmul.f32 %v1698, %v568
        %v1700 = vadd.f32 %v1696, %v1699
        %s1701 = sld [smem:[#allocation9 + $0x103]]
        %v1702 = vstv %s1701
        %v1703 = vmul.f32 %v1702, %v569
        %v1704 = vadd.f32 %v1700, %v1703
        %s1705 = sld [smem:[#allocation9 + $0x104]]
        %v1706 = vstv %s1705
        %v1707 = vmul.f32 %v1706, %v570
        %v1708 = vadd.f32 %v1704, %v1707
        %s1709 = sld [smem:[#allocation9 + $0x105]]
        %v1710 = vstv %s1709
        %v1711 = vmul.f32 %v1710, %v571
        %v1712 = vadd.f32 %v1708, %v1711
        %s1713 = sld [smem:[#allocation9 + $0x106]]
        %v1714 = vstv %s1713
        %v1715 = vmul.f32 %v1714, %v572
        %v1716 = vadd.f32 %v1712, %v1715
        %s1717 = sld [smem:[#allocation9 + $0x107]]
        %v1718 = vstv %s1717
        %v1719 = vmul.f32 %v1718, %v573
        %v1720 = vadd.f32 %v1716, %v1719
        %v1722 = vsel %vm605, %v1720, 0
        %1724 = vmatprep.subr.mxu0 0.0
        %1725 = vmatpush1.msra.mxu0 %v533
        %1726 = vmatprep.subr.mxu0 0.0
        %1727 = vmatpush1.msra.mxu0 0.0
        %1728 = vmatprep.subr.mxu0 0.0
        %1729 = vmatpush1.msra.mxu0 0.0
        %1730 = vmatprep.subr.mxu0 0.0
        %1731 = vmatpush1.msra.mxu0 0.0
        %1732 = vmatprep.subr.mxu0 0.0
        %1733 = vmatpush1.msra.mxu0 0.0
        %1734 = vmatprep.subr.mxu0 0.0
        %1735 = vmatpush1.msra.mxu0 0.0
        %1736 = vmatprep.subr.mxu0 0.0
        %1737 = vmatpush1.msra.mxu0 0.0
        %1738 = vmatprep.subr.mxu0 0.0
        %1739 = vmatpush1.msra.mxu0 0.0
        %1740 = vmatprep.subr.mxu0 0.0
        %1741 = vmatpush1.msra.mxu0 0.0
        %1742 = vmatprep.subr.mxu0 0.0
        %1743 = vmatpush1.msra.mxu0 0.0
        %1744 = vmatprep.subr.mxu0 0.0
        %1745 = vmatpush1.msra.mxu0 0.0
        %1746 = vmatprep.subr.mxu0 0.0
        %1747 = vmatpush1.msra.mxu0 0.0
        %1748 = vmatprep.subr.mxu0 0.0
        %1749 = vmatpush1.msra.mxu0 0.0
        %1750 = vmatprep.subr.mxu0 0.0
        %1751 = vmatpush1.msra.mxu0 0.0
        %1752 = vmatprep.subr.mxu0 0.0
        %1753 = vmatpush1.msra.mxu0 0.0
        %1754 = vmatprep.subr.mxu0 0.0
        %1755 = vmatpush1.msra.mxu0 0.0
        %1756 = vmatprep.subr.mxu0 0.0
        %1757 = vmatpush1.msra.mxu0 0.0
        %1758 = vmatprep.subr.mxu0 0.0
        %1759 = vmatpush1.msra.mxu0 0.0
        %1760 = vmatprep.subr.mxu0 0.0
        %1761 = vmatpush1.msra.mxu0 0.0
        %1762 = vmatprep.subr.mxu0 0.0
        %1763 = vmatpush1.msra.mxu0 0.0
        %1764 = vmatprep.subr.mxu0 0.0
        %1765 = vmatpush1.msra.mxu0 0.0
        %1766 = vmatprep.subr.mxu0 0.0
        %1767 = vmatpush1.msra.mxu0 0.0
        %1768 = vmatprep.subr.mxu0 0.0
        %1769 = vmatpush1.msra.mxu0 0.0
        %1770 = vmatprep.subr.mxu0 0.0
        %1771 = vmatpush1.msra.mxu0 0.0
        %1772 = vmatprep.subr.mxu0 0.0
        %1773 = vmatpush1.msra.mxu0 0.0
        %1774 = vmatprep.subr.mxu0 0.0
        %1775 = vmatpush1.msra.mxu0 0.0
        %1776 = vmatprep.subr.mxu0 0.0
        %1777 = vmatpush1.msra.mxu0 0.0
        %1778 = vmatprep.subr.mxu0 0.0
        %1779 = vmatpush1.msra.mxu0 0.0
        %1780 = vmatprep.subr.mxu0 0.0
        %1781 = vmatpush1.msra.mxu0 0.0
        %1782 = vmatprep.subr.mxu0 0.0
        %1783 = vmatpush1.msra.mxu0 0.0
        %1784 = vmatprep.subr.mxu0 0.0
        %1785 = vmatpush1.msra.mxu0 0.0
        %1786 = vmatprep.subr.mxu0 0.0
        %1787 = vmatpush1.msra.mxu0 0.0
        %1788 = vmatprep.mubr.f32.mxu0 0.0
        %1789 = vmatmul.mubr.f32.gmra.mrb[0].mxu0 %v1722
        %v1790 = vpop.f32.mrb[0].mxu0
        %v1791 = vadd.f32 0.0, %v1790
        %v1792 = vpop.f32.mrb[0].mxu0
        %1793 = vdwg.mxu0
        %s1794 = scalar_lea.vmem %s452, 80 [#allocation10]
        %v1795 = vld [vmem:[%s1794] sm:$0xff]
        %v1796 = vld [vmem:[%s1794 + $0x8] sm:$0xff]
        %1797 = vmatprep.subr.mxu0 0.0
        %1798 = vmatpush1.msra.mxu0 %v1791
        %1799 = vmatprep.subr.mxu0 0.0
        %1800 = vmatpush1.msra.mxu0 0.0
        %1801 = vmatprep.subr.mxu0 0.0
        %1802 = vmatpush1.msra.mxu0 0.0
        %1803 = vmatprep.subr.mxu0 0.0
        %1804 = vmatpush1.msra.mxu0 0.0
        %1805 = vmatprep.subr.mxu0 0.0
        %1806 = vmatpush1.msra.mxu0 0.0
        %1807 = vmatprep.subr.mxu0 0.0
        %1808 = vmatpush1.msra.mxu0 0.0
        %1809 = vmatprep.subr.mxu0 0.0
        %1810 = vmatpush1.msra.mxu0 0.0
        %1811 = vmatprep.subr.mxu0 0.0
        %1812 = vmatpush1.msra.mxu0 0.0
        %1813 = vmatprep.subr.mxu0 0.0
        %1814 = vmatpush1.msra.mxu0 0.0
        %1815 = vmatprep.subr.mxu0 0.0
        %1816 = vmatpush1.msra.mxu0 0.0
        %1817 = vmatprep.subr.mxu0 0.0
        %1818 = vmatpush1.msra.mxu0 0.0
        %1819 = vmatprep.subr.mxu0 0.0
        %1820 = vmatpush1.msra.mxu0 0.0
        %1821 = vmatprep.subr.mxu0 0.0
        %1822 = vmatpush1.msra.mxu0 0.0
        %1823 = vmatprep.subr.mxu0 0.0
        %1824 = vmatpush1.msra.mxu0 0.0
        %1825 = vmatprep.subr.mxu0 0.0
        %1826 = vmatpush1.msra.mxu0 0.0
        %1827 = vmatprep.subr.mxu0 0.0
        %1828 = vmatpush1.msra.mxu0 0.0
        %1829 = vmatprep.subr.mxu0 0.0
        %1830 = vmatpush1.msra.mxu0 0.0
        %1831 = vmatprep.subr.mxu0 0.0
        %1832 = vmatpush1.msra.mxu0 0.0
        %1833 = vmatprep.subr.mxu0 0.0
        %1834 = vmatpush1.msra.mxu0 0.0
        %1835 = vmatprep.subr.mxu0 0.0
        %1836 = vmatpush1.msra.mxu0 0.0
        %1837 = vmatprep.subr.mxu0 0.0
        %1838 = vmatpush1.msra.mxu0 0.0
        %1839 = vmatprep.subr.mxu0 0.0
        %1840 = vmatpush1.msra.mxu0 0.0
        %1841 = vmatprep.subr.mxu0 0.0
        %1842 = vmatpush1.msra.mxu0 0.0
        %1843 = vmatprep.subr.mxu0 0.0
        %1844 = vmatpush1.msra.mxu0 0.0
        %1845 = vmatprep.subr.mxu0 0.0
        %1846 = vmatpush1.msra.mxu0 0.0
        %1847 = vmatprep.subr.mxu0 0.0
        %1848 = vmatpush1.msra.mxu0 0.0
        %1849 = vmatprep.subr.mxu0 0.0
        %1850 = vmatpush1.msra.mxu0 0.0
        %1851 = vmatprep.subr.mxu0 0.0
        %1852 = vmatpush1.msra.mxu0 0.0
        %1853 = vmatprep.subr.mxu0 0.0
        %1854 = vmatpush1.msra.mxu0 0.0
        %1855 = vmatprep.subr.mxu0 0.0
        %1856 = vmatpush1.msra.mxu0 0.0
        %1857 = vmatprep.subr.mxu0 0.0
        %1858 = vmatpush1.msra.mxu0 0.0
        %1859 = vmatprep.subr.mxu0 0.0
        %1860 = vmatpush1.msra.mxu0 0.0
        %1861 = vmatprep.mubr.f32.mxu0 0.0
        %1862 = vmatmul.mubr.f32.gmra.mrb[0].mxu0 %v682
        %v1863 = vpop.f32.mrb[0].mxu0
        %v1864 = vadd.f32 %v1795, %v1863
        %v1865 = vpop.f32.mrb[0].mxu0
        %1866 = vmatprep.mubr.f32.mxu0 0.0
        %1867 = vmatmul.mubr.f32.gmra.mrb[0].mxu0 %v685
        %v1868 = vpop.f32.mrb[0].mxu0
        %v1869 = vadd.f32 %v1796, %v1868
        %v1870 = vpop.f32.mrb[0].mxu0
        %1871 = vdwg.mxu0
        %s1872 = scalar_lea.vmem %s498, 80 [#allocation12]
        %1873 = vst.msk [vmem:[%s1872] sm:$0xff] %vm762, %v1864
        %1874 = vst.msk [vmem:[%s1872 + $0x8] sm:$0xff] %vm762, %v1869
        %s1875 = sld [smem:[#allocation9 + $0x180]]
        %v1876 = vstv %s1875
        %v1877 = vmul.f32 %v1876, %v566
        %s1878 = sld [smem:[#allocation9 + $0x181]]
        %v1879 = vstv %s1878
        %v1880 = vmul.f32 %v1879, %v567
        %v1881 = vadd.f32 %v1877, %v1880
        %s1882 = sld [smem:[#allocation9 + $0x182]]
        %v1883 = vstv %s1882
        %v1884 = vmul.f32 %v1883, %v568
        %v1885 = vadd.f32 %v1881, %v1884
        %s1886 = sld [smem:[#allocation9 + $0x183]]
        %v1887 = vstv %s1886
        %v1888 = vmul.f32 %v1887, %v569
        %v1889 = vadd.f32 %v1885, %v1888
        %s1890 = sld [smem:[#allocation9 + $0x184]]
        %v1891 = vstv %s1890
        %v1892 = vmul.f32 %v1891, %v570
        %v1893 = vadd.f32 %v1889, %v1892
        %s1894 = sld [smem:[#allocation9 + $0x185]]
        %v1895 = vstv %s1894
        %v1896 = vmul.f32 %v1895, %v571
        %v1897 = vadd.f32 %v1893, %v1896
        %s1898 = sld [smem:[#allocation9 + $0x186]]
        %v1899 = vstv %s1898
        %v1900 = vmul.f32 %v1899, %v572
        %v1901 = vadd.f32 %v1897, %v1900
        %s1902 = sld [smem:[#allocation9 + $0x187]]
        %v1903 = vstv %s1902
        %v1904 = vmul.f32 %v1903, %v573
        %v1905 = vadd.f32 %v1901, %v1904
        %v1907 = vsel %vm605, %v1905, 0
        %1909 = vmatprep.subr.mxu0 0.0
        %1910 = vmatpush1.msra.mxu0 %v533
        %1911 = vmatprep.subr.mxu0 0.0
        %1912 = vmatpush1.msra.mxu0 0.0
        %1913 = vmatprep.subr.mxu0 0.0
        %1914 = vmatpush1.msra.mxu0 0.0
        %1915 = vmatprep.subr.mxu0 0.0
        %1916 = vmatpush1.msra.mxu0 0.0
        %1917 = vmatprep.subr.mxu0 0.0
        %1918 = vmatpush1.msra.mxu0 0.0
        %1919 = vmatprep.subr.mxu0 0.0
        %1920 = vmatpush1.msra.mxu0 0.0
        %1921 = vmatprep.subr.mxu0 0.0
        %1922 = vmatpush1.msra.mxu0 0.0
        %1923 = vmatprep.subr.mxu0 0.0
        %1924 = vmatpush1.msra.mxu0 0.0
        %1925 = vmatprep.subr.mxu0 0.0
        %1926 = vmatpush1.msra.mxu0 0.0
        %1927 = vmatprep.subr.mxu0 0.0
        %1928 = vmatpush1.msra.mxu0 0.0
        %1929 = vmatprep.subr.mxu0 0.0
        %1930 = vmatpush1.msra.mxu0 0.0
        %1931 = vmatprep.subr.mxu0 0.0
        %1932 = vmatpush1.msra.mxu0 0.0
        %1933 = vmatprep.subr.mxu0 0.0
        %1934 = vmatpush1.msra.mxu0 0.0
        %1935 = vmatprep.subr.mxu0 0.0
        %1936 = vmatpush1.msra.mxu0 0.0
        %1937 = vmatprep.subr.mxu0 0.0
        %1938 = vmatpush1.msra.mxu0 0.0
        %1939 = vmatprep.subr.mxu0 0.0
        %1940 = vmatpush1.msra.mxu0 0.0
        %1941 = vmatprep.subr.mxu0 0.0
        %1942 = vmatpush1.msra.mxu0 0.0
        %1943 = vmatprep.subr.mxu0 0.0
        %1944 = vmatpush1.msra.mxu0 0.0
        %1945 = vmatprep.subr.mxu0 0.0
        %1946 = vmatpush1.msra.mxu0 0.0
        %1947 = vmatprep.subr.mxu0 0.0
        %1948 = vmatpush1.msra.mxu0 0.0
        %1949 = vmatprep.subr.mxu0 0.0
        %1950 = vmatpush1.msra.mxu0 0.0
        %1951 = vmatprep.subr.mxu0 0.0
        %1952 = vmatpush1.msra.mxu0 0.0
        %1953 = vmatprep.subr.mxu0 0.0
        %1954 = vmatpush1.msra.mxu0 0.0
        %1955 = vmatprep.subr.mxu0 0.0
        %1956 = vmatpush1.msra.mxu0 0.0
        %1957 = vmatprep.subr.mxu0 0.0
        %1958 = vmatpush1.msra.mxu0 0.0
        %1959 = vmatprep.subr.mxu0 0.0
        %1960 = vmatpush1.msra.mxu0 0.0
        %1961 = vmatprep.subr.mxu0 0.0
        %1962 = vmatpush1.msra.mxu0 0.0
        %1963 = vmatprep.subr.mxu0 0.0
        %1964 = vmatpush1.msra.mxu0 0.0
        %1965 = vmatprep.subr.mxu0 0.0
        %1966 = vmatpush1.msra.mxu0 0.0
        %1967 = vmatprep.subr.mxu0 0.0
        %1968 = vmatpush1.msra.mxu0 0.0
        %1969 = vmatprep.subr.mxu0 0.0
        %1970 = vmatpush1.msra.mxu0 0.0
        %1971 = vmatprep.subr.mxu0 0.0
        %1972 = vmatpush1.msra.mxu0 0.0
        %1973 = vmatprep.mubr.f32.mxu0 0.0
        %1974 = vmatmul.mubr.f32.gmra.mrb[0].mxu0 %v1907
        %v1975 = vpop.f32.mrb[0].mxu0
        %v1976 = vadd.f32 0.0, %v1975
        %v1977 = vpop.f32.mrb[0].mxu0
        %1978 = vdwg.mxu0
        %s1979 = scalar_lea.vmem %s452, 112 [#allocation10]
        %v1980 = vld [vmem:[%s1979] sm:$0xff]
        %v1981 = vld [vmem:[%s1979 + $0x8] sm:$0xff]
        %1982 = vmatprep.subr.mxu0 0.0
        %1983 = vmatpush1.msra.mxu0 %v1976
        %1984 = vmatprep.subr.mxu0 0.0
        %1985 = vmatpush1.msra.mxu0 0.0
        %1986 = vmatprep.subr.mxu0 0.0
        %1987 = vmatpush1.msra.mxu0 0.0
        %1988 = vmatprep.subr.mxu0 0.0
        %1989 = vmatpush1.msra.mxu0 0.0
        %1990 = vmatprep.subr.mxu0 0.0
        %1991 = vmatpush1.msra.mxu0 0.0
        %1992 = vmatprep.subr.mxu0 0.0
        %1993 = vmatpush1.msra.mxu0 0.0
        %1994 = vmatprep.subr.mxu0 0.0
        %1995 = vmatpush1.msra.mxu0 0.0
        %1996 = vmatprep.subr.mxu0 0.0
        %1997 = vmatpush1.msra.mxu0 0.0
        %1998 = vmatprep.subr.mxu0 0.0
        %1999 = vmatpush1.msra.mxu0 0.0
        %2000 = vmatprep.subr.mxu0 0.0
        %2001 = vmatpush1.msra.mxu0 0.0
        %2002 = vmatprep.subr.mxu0 0.0
        %2003 = vmatpush1.msra.mxu0 0.0
        %2004 = vmatprep.subr.mxu0 0.0
        %2005 = vmatpush1.msra.mxu0 0.0
        %2006 = vmatprep.subr.mxu0 0.0
        %2007 = vmatpush1.msra.mxu0 0.0
        %2008 = vmatprep.subr.mxu0 0.0
        %2009 = vmatpush1.msra.mxu0 0.0
        %2010 = vmatprep.subr.mxu0 0.0
        %2011 = vmatpush1.msra.mxu0 0.0
        %2012 = vmatprep.subr.mxu0 0.0
        %2013 = vmatpush1.msra.mxu0 0.0
        %2014 = vmatprep.subr.mxu0 0.0
        %2015 = vmatpush1.msra.mxu0 0.0
        %2016 = vmatprep.subr.mxu0 0.0
        %2017 = vmatpush1.msra.mxu0 0.0
        %2018 = vmatprep.subr.mxu0 0.0
        %2019 = vmatpush1.msra.mxu0 0.0
        %2020 = vmatprep.subr.mxu0 0.0
        %2021 = vmatpush1.msra.mxu0 0.0
        %2022 = vmatprep.subr.mxu0 0.0
        %2023 = vmatpush1.msra.mxu0 0.0
        %2024 = vmatprep.subr.mxu0 0.0
        %2025 = vmatpush1.msra.mxu0 0.0
        %2026 = vmatprep.subr.mxu0 0.0
        %2027 = vmatpush1.msra.mxu0 0.0
        %2028 = vmatprep.subr.mxu0 0.0
        %2029 = vmatpush1.msra.mxu0 0.0
        %2030 = vmatprep.subr.mxu0 0.0
        %2031 = vmatpush1.msra.mxu0 0.0
        %2032 = vmatprep.subr.mxu0 0.0
        %2033 = vmatpush1.msra.mxu0 0.0
        %2034 = vmatprep.subr.mxu0 0.0
        %2035 = vmatpush1.msra.mxu0 0.0
        %2036 = vmatprep.subr.mxu0 0.0
        %2037 = vmatpush1.msra.mxu0 0.0
        %2038 = vmatprep.subr.mxu0 0.0
        %2039 = vmatpush1.msra.mxu0 0.0
        %2040 = vmatprep.subr.mxu0 0.0
        %2041 = vmatpush1.msra.mxu0 0.0
        %2042 = vmatprep.subr.mxu0 0.0
        %2043 = vmatpush1.msra.mxu0 0.0
        %2044 = vmatprep.subr.mxu0 0.0
        %2045 = vmatpush1.msra.mxu0 0.0
        %2046 = vmatprep.mubr.f32.mxu0 0.0
        %2047 = vmatmul.mubr.f32.gmra.mrb[0].mxu0 %v682
        %v2048 = vpop.f32.mrb[0].mxu0
        %v2049 = vadd.f32 %v1980, %v2048
        %v2050 = vpop.f32.mrb[0].mxu0
        %2051 = vmatprep.mubr.f32.mxu0 0.0
        %2052 = vmatmul.mubr.f32.gmra.mrb[0].mxu0 %v685
        %v2053 = vpop.f32.mrb[0].mxu0
        %v2054 = vadd.f32 %v1981, %v2053
        %v2055 = vpop.f32.mrb[0].mxu0
        %2056 = vdwg.mxu0
        %s2057 = scalar_lea.vmem %s498, 112 [#allocation12]
        %2058 = vst.msk [vmem:[%s2057] sm:$0xff] %vm762, %v2049
        %2059 = vst.msk [vmem:[%s2057 + $0x8] sm:$0xff] %vm762, %v2054
        %s2060 = sand.u32 %s240, 1
        %s2061 = scalar_lea.sflag [#allocation4], %s2060
        %s2062 = sand.u32 %s240, 1
        %s2063 = smul.addr %s2062, 128
        %s2064 = scalar_lea.vmem [#allocation12], %s2063
        // Predicated region
        $region69: #{tpu_custom_call.1} parent=47 // pred_check
          %p2065 = pneg %p250
        $region70: #{tpu_custom_call.1} parent=47 // pred_check_branch
          %2067 = sbr.rel (%p2065) target = $region72
        $region71: #{tpu_custom_call.1} parent=47 // pred_region
          #allocation16 [shape = 'u32[6]{0}', space=smem, size = 0x18, scoped, tag = 'DMA stride descriptor']
          %s2068 = smul.u32 2, %s36
          %s2070 = ssub.s32 2048, 2048
          %2071 = vsyncadd %s2061, %s2070
          %s2072 = smul.addr %s2068, 2
          %s2073 = smul.addr %s35, 128
          %s2074 = sadd.s32 %s2072, %s2073
          %s2075 = smul.addr %s2074, 128
          %s2076 = scalar_lea.hbm %s7, %s2075
          %s2078 = sshll.u32 1, 14
          %s2079 = sxor.u32 4294967295, %s2078
          %s2082 = sshll.u32 7, 18
          %s2083 = sxor.u32 4294967295, %s2082
          %s2084 = sand.u32 0, %s2083
          %s2086 = sor.u32 %s2084, 0
          %s2088 = sshll.u32 3, 24
          %s2089 = sxor.u32 4294967295, %s2088
          %s2090 = sand.u32 %s2086, %s2089
          %s2092 = sor.u32 %s2090, 0
          %s2093 = sshll.u32 %s2064, 4
          %s2094 = int_to_ptr.vmem [resolvable:$true] %s2093
          %2100 = sst [smem:[#allocation16]] 512
          %s2101 = scalar_lea.smem [#allocation16], 1
          %2102 = sst [smem:[%s2101]] 4096
          %s2103 = scalar_lea.smem [#allocation16], 2
          %2104 = sst [smem:[%s2103]] 4
          %s2105 = scalar_lea.smem [#allocation16], 3
          %2106 = sst [smem:[%s2105]] 128
          %s2107 = scalar_lea.smem [#allocation16], 4
          %2108 = sst [smem:[%s2107]] 128
          %s2109 = scalar_lea.smem [#allocation16], 5
          %2110 = sst [smem:[%s2109]] 8
          %2112 = dma.general %s2094, 2048, %s2076, %s2061, [#allocation15], [#allocation16], %s2092, 0
        $region72: #{tpu_custom_call.1} parent=47 // pred_fallthru
          _
      $region48: #{tpu_custom_call.1} parent=5 // pred_fallthru
        _
      %p2113 = scmp.le.s32.totalorder 2, %s26
      // Predicated region
      $region73: #{tpu_custom_call.1} parent=5 // pred_check
        %p2114 = pneg %p2113
      $region74: #{tpu_custom_call.1} parent=5 // pred_check_branch
        %2116 = sbr.rel (%p2114) target = $region76
      $region75: #{tpu_custom_call.1} parent=5 // pred_region
        %s2117 = ssub.s32 %s26, 2
        // Predicated region
        $region77: #{tpu_custom_call.1} parent=75 // pred_check
          %p2118 = pneg %p256
        $region78: #{tpu_custom_call.1} parent=75 // pred_check_branch
          %2120 = sbr.rel (%p2118) target = $region80
        $region79: #{tpu_custom_call.1} parent=75 // pred_region
          %s2121 = sand.u32 %s241, 1
          %s2122 = scalar_lea.sflag [#allocation4], %s2121
          %s2123 = sand.u32 %s241, 1
          %s2124 = smul.addr %s2123, 128
          %s2125 = scalar_lea.vmem [#allocation12], %s2124
          %2126 = dma.done %s2122, 2048
        $region80: #{tpu_custom_call.1} parent=75 // pred_fallthru
          _
      $region76: #{tpu_custom_call.1} parent=5 // pred_fallthru
        _
    $region6: #{tpu_custom_call.1} parent=1 // loop_footer
      %s30 = sadd.s32 1, %s26
    $region7: #{tpu_custom_call.1} parent=1 // loop_footer_branch
      %25 = sbr.rel target = $region3
    $region8: #{tpu_custom_call.1} parent=1 // loop_exit
      _
    %2127 = vsyncpa [#allocation3], 1
    %s2128 = scalar_lea.sflag [#allocation3], 1
    %2129 = vsyncpa %s2128, 1
    %2130 = vsyncpa [#allocation7], 1
    %s2131 = scalar_lea.sflag [#allocation7], 1
    %2132 = vsyncpa %s2131, 1
    %2133 = vsyncpa [#allocation11], 1
    %s2134 = scalar_lea.sflag [#allocation11], 1
    %2135 = vsyncpa %s2134, 1
    %2136 = vsyncpa [#allocation4], 1
    %s2137 = scalar_lea.sflag [#allocation4], 1
    %2138 = vsyncpa %s2137, 1
    %2139 = vsyncpa [#allocation5], 1
    %s2140 = scalar_lea.sflag [#allocation5], 1
    %2141 = vsyncpa %s2140, 1

</llo_original>
